<compile_context>
chip_gen: v5e
topology: v5e:2x2
jax: 0.10.0
libtpu: 0.0.40
codegen_flags: <defaults>
</compile_context>

<pallas_src>
import math

import jax
import jax.numpy as jnp
from jax.experimental import pallas as pl
from jax.experimental.pallas import tpu as pltpu

# ----------------------------- configuration (small, deterministic) ------------------
B = 2                 # batch
IMG_C = 3             # input channels
IMG_HW = 32           # input spatial size
PATCH = 8             # VQGAN downsample factor (stand-in: patch size)
GRID_HW = IMG_HW // PATCH
NUM_TOKENS = GRID_HW * GRID_HW          # configs['num_image_tokens'] = 16
NSEQ = B * NUM_TOKENS                   # batch folded into rows = 32
PATCH_DIM = IMG_C * PATCH * PATCH       # 192
LATENT = 16                             # VQ latent dim
NUM_CODES = 64                          # configs['num_codebook_vectors']
MASK_TOKEN_ID = NUM_CODES               # self.mask_token_id
DMODEL = 32                             # transformer hidden
NUM_HEADS = 4
HEAD_DIM = DMODEL // NUM_HEADS
MLP_DIM = 4 * DMODEL                    # 128
NUM_LAYERS = 2
CHOICE_TEMPERATURE = 4.5                # unused in forward (inpainting only)
NEG_INF = -1e30

# ----------------------------- packed-slab layout constants --------------------------
VQ_IN = 256                   # padded contraction dim of the VQ matmul
VQ_BIAS_COL = PATCH_DIM       # 192: constant-1 column (carries ||c||^2 - 2 b_enc.c term)
VQ_MASK_COL = PATCH_DIM + 1   # 193: per-token bernoulli mask flag (0/1)
EMB_ROWS = NUM_CODES + 1 + NUM_TOKENS   # 81: tok_emb (65) ++ pos_emb (16)
POS_BASE = NUM_CODES + 1                # 65
W_SLAB_LANES = 4 * DMODEL + MLP_DIM     # 256: [w_qkv 96 | w_o 32 | w1 128]
HEAD_PAD = 128                # 128-lane padded logits head
LOG2_TOKENS = NUM_TOKENS.bit_length() - 1
assert (1 << LOG2_TOKENS) == NUM_TOKENS


# ----------------------------- small in-kernel helpers -------------------------------
def _layernorm(x, g, b, eps=1e-5):
    mu = jnp.mean(x, axis=-1, keepdims=True)
    var = jnp.mean((x - mu) ** 2, axis=-1, keepdims=True)
    return (x - mu) * jax.lax.rsqrt(var + eps) * g + b


def _softmax_lastdim(s):
    m = jnp.max(s, axis=-1, keepdims=True)
    e = jnp.exp(s - m)
    # approx reciprocal runs on the EUP slot; rows sum to ~1 (not bit-exact softmax)
    return e * pl.reciprocal(jnp.sum(e, axis=-1, keepdims=True), approx=True)


# ----------------------------- the single fused kernel -------------------------------
def fused_maskgit_kernel(patches_ref, vqw_ref, emb_ref, wslab_ref, bslab_ref, w2_ref,
                         logits_ref, idx_ref):
    f32 = jnp.float32
    bf16 = jnp.bfloat16

    # ---- VQ encode: encoder projection, ||c||^2 and b_enc term folded into one matmul.
    #      score[n,k] = -2 p_n.(W_enc c_k) + ||c_k||^2 - 2 b_enc.c_k  (argmin-equivalent) ----
    score = jnp.dot(patches_ref[...], vqw_ref[...], preferred_element_type=f32)  # (N, K)
    min_s = jnp.min(score, axis=-1, keepdims=True)                                # (N, 1)
    kiota = jax.lax.broadcasted_iota(jnp.int32, score.shape, 1)
    # first-occurrence argmin over codes (matches torch.argmin tie-breaking)
    idx = jnp.min(jnp.where(score == min_s, kiota, NUM_CODES), axis=-1, keepdims=True)
    idx = jnp.minimum(idx, NUM_CODES - 1)      # guard: never emit mask id even on NaN scores
    idx_ref[...] = idx                          # (N, 1) int32

    # ---- bernoulli masking (mask flag precomputed on host, carried in the patch slab) ----
    mask_col = patches_ref[:, VQ_MASK_COL:VQ_MASK_COL + 1]                        # (N, 1)
    masked_idx = jnp.where(mask_col > 0.5, MASK_TOKEN_ID, idx)                    # (N, 1)

    # ---- token + positional embedding fused into a single one-hot matmul (N, C)@(C, D) ----
    col = jax.lax.broadcasted_iota(jnp.int32, (NSEQ, EMB_ROWS), 1)
    row = jax.lax.broadcasted_iota(jnp.int32, (NSEQ, EMB_ROWS), 0)
    pos_col = (row & (NUM_TOKENS - 1)) + POS_BASE           # position id within each image
    onehot = jnp.where((col == masked_idx) | (col == pos_col), 1.0, 0.0).astype(bf16)
    x = jnp.dot(onehot, emb_ref[...], preferred_element_type=f32)                 # (N, D)

    # ---- block-diagonal attention bias (removes cross-batch attention), built in-kernel ----
    rb = jax.lax.broadcasted_iota(jnp.int32, (NSEQ, NSEQ), 0) >> LOG2_TOKENS
    cb = jax.lax.broadcasted_iota(jnp.int32, (NSEQ, NSEQ), 1) >> LOG2_TOKENS
    attn_bias = jnp.where(rb == cb, 0.0, NEG_INF).astype(f32)

    scale = 1.0 / math.sqrt(HEAD_DIM)
    for l in range(NUM_LAYERS):
        bvec = bslab_ref[l]                                          # (8, 128) f32
        ln1_g, ln1_b = bvec[0:1, 0:DMODEL], bvec[1:2, 0:DMODEL]
        ln2_g, ln2_b = bvec[2:3, 0:DMODEL], bvec[3:4, 0:DMODEL]
        b_qkv = bvec[4:5, 0:3 * DMODEL]
        b_o = bvec[5:6, 0:DMODEL]
        b1 = bvec[6:7, 0:MLP_DIM]
        b2 = bvec[7:8, 0:DMODEL]

        w_qkv = wslab_ref[l, :, 0:3 * DMODEL]                        # (D, 96)  bf16
        w_o = wslab_ref[l, :, 3 * DMODEL:4 * DMODEL]                 # (D, D)   bf16
        w_1 = wslab_ref[l, :, 4 * DMODEL:4 * DMODEL + MLP_DIM]       # (D, 128) bf16

        # --- attention: one QKV matmul, per-head static lane slices, one output matmul ---
        h1 = _layernorm(x, ln1_g, ln1_b)
        qkv = jnp.dot(h1.astype(bf16), w_qkv, preferred_element_type=f32) + b_qkv  # (N, 3D)
        o_heads = []
        for h in range(NUM_HEADS):
            q = qkv[:, h * HEAD_DIM:(h + 1) * HEAD_DIM]
            k = qkv[:, DMODEL + h * HEAD_DIM:DMODEL + (h + 1) * HEAD_DIM]
            v = qkv[:, 2 * DMODEL + h * HEAD_DIM:2 * DMODEL + (h + 1) * HEAD_DIM]
            s = jax.lax.dot_general(q.astype(bf16), k.astype(bf16),
                                    (((1,), (1,)), ((), ())),
                                    preferred_element_type=f32) * scale + attn_bias
            p = _softmax_lastdim(s)
            o_heads.append(jnp.dot(p.astype(bf16), v.astype(bf16),
                                   preferred_element_type=f32))                     # (N, Dh)
        o = jnp.concatenate(o_heads, axis=-1)                                       # (N, D)
        x = x + jnp.dot(o.astype(bf16), w_o, preferred_element_type=f32) + b_o

        # --- MLP ---
        h2 = _layernorm(x, ln2_g, ln2_b)
        m = jnp.dot(h2.astype(bf16), w_1, preferred_element_type=f32) + b1
        m = jax.nn.gelu(m, approximate=True)  # TODO(synk): reference nn.GELU is exact erf; tanh approx used
        x = x + jnp.dot(m.astype(bf16), w2_ref[l], preferred_element_type=f32) + b2

    # ---- final LN + logits head (128-lane padded -> unmasked lane-dense stores) ----
    bvec = bslab_ref[NUM_LAYERS]
    hf = _layernorm(x, bvec[0:1, 0:DMODEL], bvec[1:2, 0:DMODEL])
    w_head = wslab_ref[NUM_LAYERS, :, 0:HEAD_PAD]                    # (D, 128) bf16
    b_head = bvec[2:3, 0:HEAD_PAD]                                   # (1, 128) f32
    logits_ref[...] = jnp.dot(hf.astype(bf16), w_head, preferred_element_type=f32) + b_head


# ----------------------------- glue: params, packing, forward -------------------------
def init_params(key):
    ks = jax.random.split(key, 8)

    def nrm(k, shape, scale=0.02):
        return scale * jax.random.normal(k, shape, jnp.float32)

    params = {
        "w_enc": nrm(ks[0], (PATCH_DIM, LATENT)),
        "b_enc": jnp.zeros((1, LATENT), jnp.float32),
        "codebook": nrm(ks[1], (NUM_CODES, LATENT), 1.0),
        "tok_emb": nrm(ks[2], (NUM_CODES + 1, DMODEL)),   # +1 for the mask token
        "pos_emb": nrm(ks[3], (NUM_TOKENS, DMODEL)),
        "ln_f_g": jnp.ones((1, DMODEL), jnp.float32),
        "ln_f_b": jnp.zeros((1, DMODEL), jnp.float32),
        "w_head": nrm(ks[4], (DMODEL, NUM_CODES)),
        "b_head": jnp.zeros((1, NUM_CODES), jnp.float32),
        "layers": [],
    }
    lks = jax.random.split(ks[5], NUM_LAYERS)
    for i in range(NUM_LAYERS):
        kk = jax.random.split(lks[i], 4)
        params["layers"].append({
            "ln1_g": jnp.ones((1, DMODEL), jnp.float32),
            "ln1_b": jnp.zeros((1, DMODEL), jnp.float32),
            "w_qkv": nrm(kk[0], (DMODEL, 3 * DMODEL)),
            "b_qkv": jnp.zeros((1, 3 * DMODEL), jnp.float32),
            "w_o": nrm(kk[1], (DMODEL, DMODEL)),
            "b_o": jnp.zeros((1, DMODEL), jnp.float32),
            "ln2_g": jnp.ones((1, DMODEL), jnp.float32),
            "ln2_b": jnp.zeros((1, DMODEL), jnp.float32),
            "w1": nrm(kk[2], (DMODEL, MLP_DIM)),
            "b1": jnp.zeros((1, MLP_DIM), jnp.float32),
            "w2": nrm(kk[3], (MLP_DIM, DMODEL)),
            "b2": jnp.zeros((1, DMODEL), jnp.float32),
        })
    return params


def patchify(x):
    # NCHW -> (B*T, C*P*P); equivalent to extracting stride-P conv patches
    Bb, C, H, W = x.shape
    xp = x.reshape(Bb, C, H // PATCH, PATCH, W // PATCH, PATCH)
    xp = xp.transpose(0, 2, 4, 1, 3, 5).reshape(Bb, NUM_TOKENS, C * PATCH * PATCH)
    return xp.reshape(Bb * NUM_TOKENS, C * PATCH * PATCH)


def pack_params(params):
    """Pack all weights into a few lane-dense slabs. Done ONCE, outside the forward."""
    # VQ weight slab: rows [0:192] = -2 * W_enc @ C^T, row 192 = ||c||^2 - 2 b_enc.c, rest 0
    codebook = params["codebook"]
    w_fold = params["w_enc"] @ codebook.T                                    # (PD, K)
    c0 = jnp.sum(codebook ** 2, axis=-1) - 2.0 * (params["b_enc"][0] @ codebook.T)  # (K,)
    vq_w = jnp.zeros((VQ_IN, NUM_CODES), jnp.float32)
    vq_w = vq_w.at[:PATCH_DIM].set(-2.0 * w_fold)
    vq_w = vq_w.at[VQ_BIAS_COL].set(c0)

    # token + positional embedding slab (81, D)
    emb = jnp.concatenate([params["tok_emb"], params["pos_emb"]], axis=0).astype(jnp.bfloat16)

    # per-layer weight slab (+1 extra "layer" holding the padded head weight) and bias slab
    wslab = jnp.zeros((NUM_LAYERS + 1, DMODEL, W_SLAB_LANES), jnp.float32)
    bslab = jnp.zeros((NUM_LAYERS + 1, 8, 128), jnp.float32)
    for l, lp in enumerate(params["layers"]):
        wslab = wslab.at[l, :, 0:3 * DMODEL].set(lp["w_qkv"])
        wslab = wslab.at[l, :, 3 * DMODEL:4 * DMODEL].set(lp["w_o"])
        wslab = wslab.at[l, :, 4 * DMODEL:4 * DMODEL + MLP_DIM].set(lp["w1"])
        bslab = bslab.at[l, 0, 0:DMODEL].set(lp["ln1_g"][0])
        bslab = bslab.at[l, 1, 0:DMODEL].set(lp["ln1_b"][0])
        bslab = bslab.at[l, 2, 0:DMODEL].set(lp["ln2_g"][0])
        bslab = bslab.at[l, 3, 0:DMODEL].set(lp["ln2_b"][0])
        bslab = bslab.at[l, 4, 0:3 * DMODEL].set(lp["b_qkv"][0])
        bslab = bslab.at[l, 5, 0:DMODEL].set(lp["b_o"][0])
        bslab = bslab.at[l, 6, 0:MLP_DIM].set(lp["b1"][0])
        bslab = bslab.at[l, 7, 0:DMODEL].set(lp["b2"][0])
    wslab = wslab.at[NUM_LAYERS, :, 0:NUM_CODES].set(params["w_head"])   # zero-padded to 128
    bslab = bslab.at[NUM_LAYERS, 0, 0:DMODEL].set(params["ln_f_g"][0])
    bslab = bslab.at[NUM_LAYERS, 1, 0:DMODEL].set(params["ln_f_b"][0])
    bslab = bslab.at[NUM_LAYERS, 2, 0:NUM_CODES].set(params["b_head"][0])

    w2 = jnp.stack([lp["w2"] for lp in params["layers"]]).astype(jnp.bfloat16)  # (L, 128, 32)

    return dict(vq_w=vq_w, emb=emb, wslab=wslab.astype(jnp.bfloat16), bslab=bslab, w2=w2)


@jax.jit
def maskgit_forward(packed, x, rng):
    Bb = x.shape[0]

    # per-call activation slab: patches ++ constant-1 col (VQ bias term) ++ bernoulli mask col
    patches = patchify(x)                                                    # (N, PD)
    k1, k2 = jax.random.split(rng)
    ratio = jax.random.uniform(k1, (), jnp.float32)                          # random_ratio
    noise = jax.random.uniform(k2, (NSEQ,), jnp.float32)
    mask_flag = (noise < ratio).astype(jnp.float32)                          # P(mask)=ratio
    pslab = jnp.zeros((NSEQ, VQ_IN), jnp.float32)
    pslab = pslab.at[:, 0:PATCH_DIM].set(patches)
    pslab = pslab.at[:, VQ_BIAS_COL].set(1.0)
    pslab = pslab.at[:, VQ_MASK_COL].set(mask_flag)

    vmem = pl.BlockSpec(memory_space=pltpu.MemorySpace.VMEM)
    logits_pad, idx_col = pl.pallas_call(
        fused_maskgit_kernel,
        out_shape=(jax.ShapeDtypeStruct((NSEQ, HEAD_PAD), jnp.float32),
                   jax.ShapeDtypeStruct((NSEQ, 1), jnp.int32)),
        in_specs=[vmem] * 6,
        out_specs=(vmem, vmem),
    )(pslab, packed["vq_w"], packed["emb"], packed["wslab"], packed["bslab"], packed["w2"])

    logits = logits_pad[:, :NUM_CODES].reshape(Bb, NUM_TOKENS, NUM_CODES)
    original_indices = idx_col.reshape(Bb, NUM_TOKENS)
    return logits, original_indices


# ----------------------------- main ---------------------------------------------------
if __name__ == "__main__":
    root = jax.random.PRNGKey(0)
    k_param, k_input, k_fwd = jax.random.split(root, 3)

    params = init_params(k_param)
    packed = pack_params(params)
    x = jax.random.normal(k_input, (B, IMG_C, IMG_HW, IMG_HW), jnp.float32)  # NCHW

    logits, original_indices = maskgit_forward(packed, x, k_fwd)
    jax.block_until_ready((logits, original_indices))

    assert logits.shape == (B, NUM_TOKENS, NUM_CODES)
    assert original_indices.shape == (B, NUM_TOKENS)
    assert bool(jnp.all(jnp.isfinite(logits)))
    assert bool(jnp.all((original_indices >= 0) & (original_indices < NUM_CODES)))
    print("KERNEL_OK")
</pallas_src>

<mosaic_0001>
module attributes {stable_mosaic.version = 11 : i64} {
  func.func @fused_maskgit_kernel(%arg0: memref<32x256xf32, #tpu.memory_space<vmem>>, %arg1: memref<256x64xf32, #tpu.memory_space<vmem>>, %arg2: memref<81x32xbf16, #tpu.memory_space<vmem>>, %arg3: memref<3x32x256xbf16, #tpu.memory_space<vmem>>, %arg4: memref<3x8x128xf32, #tpu.memory_space<vmem>>, %arg5: memref<2x128x32xbf16, #tpu.memory_space<vmem>>, %arg6: memref<32x128xf32, #tpu.memory_space<vmem>>, %arg7: memref<32x1xi32, #tpu.memory_space<vmem>>) attributes {dimension_semantics = [], scalar_prefetch = 0 : i64, scratch_operands = 0 : i64, tpu.core_type = #tpu.core_type<tc>} {
    %c0 = arith.constant 0 : index
    %c0_0 = arith.constant 0 : index
    %0 = vector.load %arg0[%c0, %c0_0] : memref<32x256xf32, #tpu.memory_space<vmem>>, vector<32x256xf32>
    %c0_1 = arith.constant 0 : index
    %c0_2 = arith.constant 0 : index
    %1 = vector.load %arg1[%c0_1, %c0_2] : memref<256x64xf32, #tpu.memory_space<vmem>>, vector<256x64xf32>
    %cst = arith.constant dense<0.000000e+00> : vector<32x64xf32>
    %2 = tpu.matmul %0, %1, %cst {dimension_numbers = #tpu.dot_dimension_numbers<[1], [0], [0], [1], [0, 0, 1, 1], [], []>} : vector<32x256xf32>, vector<256x64xf32>, vector<32x64xf32> -> vector<32x64xf32>
    %cst_3 = arith.constant dense<0x7F800000> : vector<32xf32>
    %3 = vector.multi_reduction <minimumf>, %2, %cst_3 [1] : vector<32x64xf32> to vector<32xf32>
    %4 = vector.shape_cast %3 : vector<32xf32> to vector<32x1xf32>
    %5 = tpu.iota {dimensions = array<i32: 1>} : vector<32x64xi32>
    %6 = vector.broadcast %4 : vector<32x1xf32> to vector<32x64xf32>
    %7 = arith.cmpf oeq, %2, %6 : vector<32x64xf32>
    %c64_i32 = arith.constant 64 : i32
    %8 = vector.broadcast %c64_i32 : i32 to vector<32x64xi32>
    %9 = arith.select %7, %5, %8 : vector<32x64xi1>, vector<32x64xi32>
    %cst_4 = arith.constant dense<2147483647> : vector<32xi32>
    %10 = vector.multi_reduction <minsi>, %9, %cst_4 [1] : vector<32x64xi32> to vector<32xi32>
    %11 = vector.shape_cast %10 : vector<32xi32> to vector<32x1xi32>
    %c63_i32 = arith.constant 63 : i32
    %12 = vector.broadcast %c63_i32 : i32 to vector<32x1xi32>
    %13 = arith.minsi %11, %12 : vector<32x1xi32>
    %c0_5 = arith.constant 0 : index
    %c0_6 = arith.constant 0 : index
    %14 = vector.load %arg7[%c0_5, %c0_6] : memref<32x1xi32, #tpu.memory_space<vmem>>, vector<32x1xi32>
    tpu.vector_store %arg7[%c0_5, %c0_6], %13 {strides = array<i32>} : memref<32x1xi32, #tpu.memory_space<vmem>>, vector<32x1xi32>,
    %c0_7 = arith.constant 0 : index
    %c193 = arith.constant 193 : index
    %15 = vector.load %arg0[%c0_7, %c193] : memref<32x256xf32, #tpu.memory_space<vmem>>, vector<32x1xf32>
    %cst_8 = arith.constant 5.000000e-01 : f32
    %16 = vector.broadcast %cst_8 : f32 to vector<32x1xf32>
    %17 = arith.cmpf ogt, %15, %16 : vector<32x1xf32>
    %c64_i32_9 = arith.constant 64 : i32
    %18 = vector.broadcast %c64_i32_9 : i32 to vector<32x1xi32>
    %19 = arith.select %17, %18, %13 : vector<32x1xi1>, vector<32x1xi32>
    %20 = tpu.iota {dimensions = array<i32: 1>} : vector<32x81xi32>
    %21 = tpu.iota {dimensions = array<i32: 0>} : vector<32x81xi32>
    %c15_i32 = arith.constant 15 : i32
    %22 = vector.broadcast %c15_i32 : i32 to vector<32x81xi32>
    %23 = arith.andi %21, %22 : vector<32x81xi32>
    %c65_i32 = arith.constant 65 : i32
    %24 = vector.broadcast %c65_i32 : i32 to vector<32x81xi32>
    %25 = arith.addi %23, %24 : vector<32x81xi32>
    %26 = vector.broadcast %19 : vector<32x1xi32> to vector<32x81xi32>
    %27 = arith.cmpi eq, %20, %26 : vector<32x81xi32>
    %28 = arith.cmpi eq, %20, %25 : vector<32x81xi32>
    %29 = arith.ori %27, %28 : vector<32x81xi1>
    %cst_10 = arith.constant 1.000000e+00 : f32
    %cst_11 = arith.constant 0.000000e+00 : f32
    %30 = vector.broadcast %cst_10 : f32 to vector<32x81xf32>
    %31 = vector.broadcast %cst_11 : f32 to vector<32x81xf32>
    %32 = arith.select %29, %30, %31 : vector<32x81xi1>, vector<32x81xf32>
    %33 = arith.truncf %32 : vector<32x81xf32> to vector<32x81xbf16>
    %c0_12 = arith.constant 0 : index
    %c0_13 = arith.constant 0 : index
    %34 = vector.load %arg2[%c0_12, %c0_13] : memref<81x32xbf16, #tpu.memory_space<vmem>>, vector<81x32xbf16>
    %cst_14 = arith.constant dense<0.000000e+00> : vector<32x32xf32>
    %35 = tpu.matmul %33, %34, %cst_14 {dimension_numbers = #tpu.dot_dimension_numbers<[1], [0], [0], [1], [0, 0, 1, 1], [], []>} : vector<32x81xbf16>, vector<81x32xbf16>, vector<32x32xf32> -> vector<32x32xf32>
    %36 = tpu.iota {dimensions = array<i32: 0>} : vector<32x32xi32>
    %c4_i32 = arith.constant 4 : i32
    %37 = vector.broadcast %c4_i32 : i32 to vector<32x32xi32>
    %38 = arith.shrsi %36, %37 : vector<32x32xi32>
    %39 = tpu.iota {dimensions = array<i32: 1>} : vector<32x32xi32>
    %c4_i32_15 = arith.constant 4 : i32
    %40 = vector.broadcast %c4_i32_15 : i32 to vector<32x32xi32>
    %41 = arith.shrsi %39, %40 : vector<32x32xi32>
    %42 = arith.cmpi eq, %38, %41 : vector<32x32xi32>
    %cst_16 = arith.constant 0.000000e+00 : f32
    %cst_17 = arith.constant -1.000000e+30 : f32
    %43 = vector.broadcast %cst_16 : f32 to vector<32x32xf32>
    %44 = vector.broadcast %cst_17 : f32 to vector<32x32xf32>
    %45 = arith.select %42, %43, %44 : vector<32x32xi1>, vector<32x32xf32>
    %c0_18 = arith.constant 0 : index
    %c0_19 = arith.constant 0 : index
    %c0_20 = arith.constant 0 : index
    %46 = vector.load %arg4[%c0_18, %c0_19, %c0_20] : memref<3x8x128xf32, #tpu.memory_space<vmem>>, vector<1x8x128xf32>
    %47 = vector.shape_cast %46 : vector<1x8x128xf32> to vector<8x128xf32>
    %48 = vector.extract_strided_slice %47 {offsets = [0, 0], sizes = [1, 32], strides = [1, 1]} : vector<8x128xf32> to vector<1x32xf32>
    %49 = vector.extract_strided_slice %47 {offsets = [1, 0], sizes = [1, 32], strides = [1, 1]} : vector<8x128xf32> to vector<1x32xf32>
    %50 = vector.extract_strided_slice %47 {offsets = [2, 0], sizes = [1, 32], strides = [1, 1]} : vector<8x128xf32> to vector<1x32xf32>
    %51 = vector.extract_strided_slice %47 {offsets = [3, 0], sizes = [1, 32], strides = [1, 1]} : vector<8x128xf32> to vector<1x32xf32>
    %52 = vector.extract_strided_slice %47 {offsets = [4, 0], sizes = [1, 96], strides = [1, 1]} : vector<8x128xf32> to vector<1x96xf32>
    %53 = vector.extract_strided_slice %47 {offsets = [5, 0], sizes = [1, 32], strides = [1, 1]} : vector<8x128xf32> to vector<1x32xf32>
    %54 = vector.extract_strided_slice %47 {offsets = [6, 0], sizes = [1, 128], strides = [1, 1]} : vector<8x128xf32> to vector<1x128xf32>
    %55 = vector.extract_strided_slice %47 {offsets = [7, 0], sizes = [1, 32], strides = [1, 1]} : vector<8x128xf32> to vector<1x32xf32>
    %c0_21 = arith.constant 0 : index
    %c0_22 = arith.constant 0 : index
    %c0_23 = arith.constant 0 : index
    %56 = vector.load %arg3[%c0_21, %c0_22, %c0_23] : memref<3x32x256xbf16, #tpu.memory_space<vmem>>, vector<1x32x96xbf16>
    %57 = vector.shape_cast %56 : vector<1x32x96xbf16> to vector<32x96xbf16>
    %c0_24 = arith.constant 0 : index
    %c0_25 = arith.constant 0 : index
    %c96 = arith.constant 96 : index
    %58 = vector.load %arg3[%c0_24, %c0_25, %c96] : memref<3x32x256xbf16, #tpu.memory_space<vmem>>, vector<1x32x32xbf16>
    %59 = vector.shape_cast %58 : vector<1x32x32xbf16> to vector<32x32xbf16>
    %c0_26 = arith.constant 0 : index
    %c0_27 = arith.constant 0 : index
    %c128 = arith.constant 128 : index
    %60 = vector.load %arg3[%c0_26, %c0_27, %c128] : memref<3x32x256xbf16, #tpu.memory_space<vmem>>, vector<1x32x128xbf16>
    %61 = vector.shape_cast %60 : vector<1x32x128xbf16> to vector<32x128xbf16>
    %cst_28 = arith.constant dense<0.000000e+00> : vector<32xf32>
    %62 = vector.multi_reduction <add>, %35, %cst_28 [1] : vector<32x32xf32> to vector<32xf32>
    %63 = vector.shape_cast %62 : vector<32xf32> to vector<32x1xf32>
    %cst_29 = arith.constant 3.200000e+01 : f32
    %64 = vector.broadcast %cst_29 : f32 to vector<32x1xf32>
    %65 = arith.divf %63, %64 : vector<32x1xf32>
    %66 = vector.broadcast %65 : vector<32x1xf32> to vector<32x32xf32>
    %67 = arith.subf %35, %66 : vector<32x32xf32>
    %68 = arith.mulf %67, %67 : vector<32x32xf32>
    %cst_30 = arith.constant dense<0.000000e+00> : vector<32xf32>
    %69 = vector.multi_reduction <add>, %68, %cst_30 [1] : vector<32x32xf32> to vector<32xf32>
    %70 = vector.shape_cast %69 : vector<32xf32> to vector<32x1xf32>
    %cst_31 = arith.constant 3.200000e+01 : f32
    %71 = vector.broadcast %cst_31 : f32 to vector<32x1xf32>
    %72 = arith.divf %70, %71 : vector<32x1xf32>
    %73 = vector.broadcast %65 : vector<32x1xf32> to vector<32x32xf32>
    %74 = arith.subf %35, %73 : vector<32x32xf32>
    %cst_32 = arith.constant 9.99999974E-6 : f32
    %75 = vector.broadcast %cst_32 : f32 to vector<32x1xf32>
    %76 = arith.addf %72, %75 : vector<32x1xf32>
    %77 = math.rsqrt %76 : vector<32x1xf32>
    %78 = vector.broadcast %77 : vector<32x1xf32> to vector<32x32xf32>
    %79 = arith.mulf %74, %78 : vector<32x32xf32>
    %80 = vector.broadcast %48 : vector<1x32xf32> to vector<32x32xf32>
    %81 = arith.mulf %79, %80 : vector<32x32xf32>
    %82 = vector.broadcast %49 : vector<1x32xf32> to vector<32x32xf32>
    %83 = arith.addf %81, %82 : vector<32x32xf32>
    %84 = arith.truncf %83 : vector<32x32xf32> to vector<32x32xbf16>
    %cst_33 = arith.constant dense<0.000000e+00> : vector<32x96xf32>
    %85 = tpu.matmul %84, %57, %cst_33 {dimension_numbers = #tpu.dot_dimension_numbers<[1], [0], [0], [1], [0, 0, 1, 1], [], []>} : vector<32x32xbf16>, vector<32x96xbf16>, vector<32x96xf32> -> vector<32x96xf32>
    %86 = vector.broadcast %52 : vector<1x96xf32> to vector<32x96xf32>
    %87 = arith.addf %85, %86 : vector<32x96xf32>
    %88 = vector.extract_strided_slice %87 {offsets = [0, 0], sizes = [32, 8], strides = [1, 1]} : vector<32x96xf32> to vector<32x8xf32>
    %89 = vector.extract_strided_slice %87 {offsets = [0, 32], sizes = [32, 8], strides = [1, 1]} : vector<32x96xf32> to vector<32x8xf32>
    %90 = vector.extract_strided_slice %87 {offsets = [0, 64], sizes = [32, 8], strides = [1, 1]} : vector<32x96xf32> to vector<32x8xf32>
    %91 = arith.truncf %88 : vector<32x8xf32> to vector<32x8xbf16>
    %92 = arith.truncf %89 : vector<32x8xf32> to vector<32x8xbf16>
    %cst_34 = arith.constant dense<0.000000e+00> : vector<32x32xf32>
    %93 = tpu.matmul %91, %92, %cst_34 {dimension_numbers = #tpu.dot_dimension_numbers<[1], [1], [0], [0], [0, 0, 1, 0], [], []>} : vector<32x8xbf16>, vector<32x8xbf16>, vector<32x32xf32> -> vector<32x32xf32>
    %cst_35 = arith.constant 0.353553385 : f32
    %94 = vector.broadcast %cst_35 : f32 to vector<32x32xf32>
    %95 = arith.mulf %93, %94 : vector<32x32xf32>
    %96 = arith.addf %95, %45 : vector<32x32xf32>
    %cst_36 = arith.constant dense<0xFF800000> : vector<32xf32>
    %97 = vector.multi_reduction <maximumf>, %96, %cst_36 [1] : vector<32x32xf32> to vector<32xf32>
    %98 = vector.shape_cast %97 : vector<32xf32> to vector<32x1xf32>
    %99 = vector.broadcast %98 : vector<32x1xf32> to vector<32x32xf32>
    %100 = arith.subf %96, %99 : vector<32x32xf32>
    %101 = math.exp %100 : vector<32x32xf32>
    %cst_37 = arith.constant dense<0.000000e+00> : vector<32xf32>
    %102 = vector.multi_reduction <add>, %101, %cst_37 [1] : vector<32x32xf32> to vector<32xf32>
    %103 = vector.shape_cast %102 : vector<32xf32> to vector<32x1xf32>
    %104 = tpu.reciprocal %103 {approx = true} : vector<32x1xf32> -> vector<32x1xf32>
    %105 = vector.broadcast %104 : vector<32x1xf32> to vector<32x32xf32>
    %106 = arith.mulf %101, %105 : vector<32x32xf32>
    %107 = arith.truncf %106 : vector<32x32xf32> to vector<32x32xbf16>
    %108 = arith.truncf %90 : vector<32x8xf32> to vector<32x8xbf16>
    %cst_38 = arith.constant dense<0.000000e+00> : vector<32x8xf32>
    %109 = tpu.matmul %107, %108, %cst_38 {dimension_numbers = #tpu.dot_dimension_numbers<[1], [0], [0], [1], [0, 0, 1, 1], [], []>} : vector<32x32xbf16>, vector<32x8xbf16>, vector<32x8xf32> -> vector<32x8xf32>
    %110 = vector.extract_strided_slice %87 {offsets = [0, 8], sizes = [32, 8], strides = [1, 1]} : vector<32x96xf32> to vector<32x8xf32>
    %111 = vector.extract_strided_slice %87 {offsets = [0, 40], sizes = [32, 8], strides = [1, 1]} : vector<32x96xf32> to vector<32x8xf32>
    %112 = vector.extract_strided_slice %87 {offsets = [0, 72], sizes = [32, 8], strides = [1, 1]} : vector<32x96xf32> to vector<32x8xf32>
    %113 = arith.truncf %110 : vector<32x8xf32> to vector<32x8xbf16>
    %114 = arith.truncf %111 : vector<32x8xf32> to vector<32x8xbf16>
    %cst_39 = arith.constant dense<0.000000e+00> : vector<32x32xf32>
    %115 = tpu.matmul %113, %114, %cst_39 {dimension_numbers = #tpu.dot_dimension_numbers<[1], [1], [0], [0], [0, 0, 1, 0], [], []>} : vector<32x8xbf16>, vector<32x8xbf16>, vector<32x32xf32> -> vector<32x32xf32>
    %cst_40 = arith.constant 0.353553385 : f32
    %116 = vector.broadcast %cst_40 : f32 to vector<32x32xf32>
    %117 = arith.mulf %115, %116 : vector<32x32xf32>
    %118 = arith.addf %117, %45 : vector<32x32xf32>
    %cst_41 = arith.constant dense<0xFF800000> : vector<32xf32>
    %119 = vector.multi_reduction <maximumf>, %118, %cst_41 [1] : vector<32x32xf32> to vector<32xf32>
    %120 = vector.shape_cast %119 : vector<32xf32> to vector<32x1xf32>
    %121 = vector.broadcast %120 : vector<32x1xf32> to vector<32x32xf32>
    %122 = arith.subf %118, %121 : vector<32x32xf32>
    %123 = math.exp %122 : vector<32x32xf32>
    %cst_42 = arith.constant dense<0.000000e+00> : vector<32xf32>
    %124 = vector.multi_reduction <add>, %123, %cst_42 [1] : vector<32x32xf32> to vector<32xf32>
    %125 = vector.shape_cast %124 : vector<32xf32> to vector<32x1xf32>
    %126 = tpu.reciprocal %125 {approx = true} : vector<32x1xf32> -> vector<32x1xf32>
    %127 = vector.broadcast %126 : vector<32x1xf32> to vector<32x32xf32>
    %128 = arith.mulf %123, %127 : vector<32x32xf32>
    %129 = arith.truncf %128 : vector<32x32xf32> to vector<32x32xbf16>
    %130 = arith.truncf %112 : vector<32x8xf32> to vector<32x8xbf16>
    %cst_43 = arith.constant dense<0.000000e+00> : vector<32x8xf32>
    %131 = tpu.matmul %129, %130, %cst_43 {dimension_numbers = #tpu.dot_dimension_numbers<[1], [0], [0], [1], [0, 0, 1, 1], [], []>} : vector<32x32xbf16>, vector<32x8xbf16>, vector<32x8xf32> -> vector<32x8xf32>
    %132 = vector.extract_strided_slice %87 {offsets = [0, 16], sizes = [32, 8], strides = [1, 1]} : vector<32x96xf32> to vector<32x8xf32>
    %133 = vector.extract_strided_slice %87 {offsets = [0, 48], sizes = [32, 8], strides = [1, 1]} : vector<32x96xf32> to vector<32x8xf32>
    %134 = vector.extract_strided_slice %87 {offsets = [0, 80], sizes = [32, 8], strides = [1, 1]} : vector<32x96xf32> to vector<32x8xf32>
    %135 = arith.truncf %132 : vector<32x8xf32> to vector<32x8xbf16>
    %136 = arith.truncf %133 : vector<32x8xf32> to vector<32x8xbf16>
    %cst_44 = arith.constant dense<0.000000e+00> : vector<32x32xf32>
    %137 = tpu.matmul %135, %136, %cst_44 {dimension_numbers = #tpu.dot_dimension_numbers<[1], [1], [0], [0], [0, 0, 1, 0], [], []>} : vector<32x8xbf16>, vector<32x8xbf16>, vector<32x32xf32> -> vector<32x32xf32>
    %cst_45 = arith.constant 0.353553385 : f32
    %138 = vector.broadcast %cst_45 : f32 to vector<32x32xf32>
    %139 = arith.mulf %137, %138 : vector<32x32xf32>
    %140 = arith.addf %139, %45 : vector<32x32xf32>
    %cst_46 = arith.constant dense<0xFF800000> : vector<32xf32>
    %141 = vector.multi_reduction <maximumf>, %140, %cst_46 [1] : vector<32x32xf32> to vector<32xf32>
    %142 = vector.shape_cast %141 : vector<32xf32> to vector<32x1xf32>
    %143 = vector.broadcast %142 : vector<32x1xf32> to vector<32x32xf32>
    %144 = arith.subf %140, %143 : vector<32x32xf32>
    %145 = math.exp %144 : vector<32x32xf32>
    %cst_47 = arith.constant dense<0.000000e+00> : vector<32xf32>
    %146 = vector.multi_reduction <add>, %145, %cst_47 [1] : vector<32x32xf32> to vector<32xf32>
    %147 = vector.shape_cast %146 : vector<32xf32> to vector<32x1xf32>
    %148 = tpu.reciprocal %147 {approx = true} : vector<32x1xf32> -> vector<32x1xf32>
    %149 = vector.broadcast %148 : vector<32x1xf32> to vector<32x32xf32>
    %150 = arith.mulf %145, %149 : vector<32x32xf32>
    %151 = arith.truncf %150 : vector<32x32xf32> to vector<32x32xbf16>
    %152 = arith.truncf %134 : vector<32x8xf32> to vector<32x8xbf16>
    %cst_48 = arith.constant dense<0.000000e+00> : vector<32x8xf32>
    %153 = tpu.matmul %151, %152, %cst_48 {dimension_numbers = #tpu.dot_dimension_numbers<[1], [0], [0], [1], [0, 0, 1, 1], [], []>} : vector<32x32xbf16>, vector<32x8xbf16>, vector<32x8xf32> -> vector<32x8xf32>
    %154 = vector.extract_strided_slice %87 {offsets = [0, 24], sizes = [32, 8], strides = [1, 1]} : vector<32x96xf32> to vector<32x8xf32>
    %155 = vector.extract_strided_slice %87 {offsets = [0, 56], sizes = [32, 8], strides = [1, 1]} : vector<32x96xf32> to vector<32x8xf32>
    %156 = vector.extract_strided_slice %87 {offsets = [0, 88], sizes = [32, 8], strides = [1, 1]} : vector<32x96xf32> to vector<32x8xf32>
    %157 = arith.truncf %154 : vector<32x8xf32> to vector<32x8xbf16>
    %158 = arith.truncf %155 : vector<32x8xf32> to vector<32x8xbf16>
    %cst_49 = arith.constant dense<0.000000e+00> : vector<32x32xf32>
    %159 = tpu.matmul %157, %158, %cst_49 {dimension_numbers = #tpu.dot_dimension_numbers<[1], [1], [0], [0], [0, 0, 1, 0], [], []>} : vector<32x8xbf16>, vector<32x8xbf16>, vector<32x32xf32> -> vector<32x32xf32>
    %cst_50 = arith.constant 0.353553385 : f32
    %160 = vector.broadcast %cst_50 : f32 to vector<32x32xf32>
    %161 = arith.mulf %159, %160 : vector<32x32xf32>
    %162 = arith.addf %161, %45 : vector<32x32xf32>
    %cst_51 = arith.constant dense<0xFF800000> : vector<32xf32>
    %163 = vector.multi_reduction <maximumf>, %162, %cst_51 [1] : vector<32x32xf32> to vector<32xf32>
    %164 = vector.shape_cast %163 : vector<32xf32> to vector<32x1xf32>
    %165 = vector.broadcast %164 : vector<32x1xf32> to vector<32x32xf32>
    %166 = arith.subf %162, %165 : vector<32x32xf32>
    %167 = math.exp %166 : vector<32x32xf32>
    %cst_52 = arith.constant dense<0.000000e+00> : vector<32xf32>
    %168 = vector.multi_reduction <add>, %167, %cst_52 [1] : vector<32x32xf32> to vector<32xf32>
    %169 = vector.shape_cast %168 : vector<32xf32> to vector<32x1xf32>
    %170 = tpu.reciprocal %169 {approx = true} : vector<32x1xf32> -> vector<32x1xf32>
    %171 = vector.broadcast %170 : vector<32x1xf32> to vector<32x32xf32>
    %172 = arith.mulf %167, %171 : vector<32x32xf32>
    %173 = arith.truncf %172 : vector<32x32xf32> to vector<32x32xbf16>
    %174 = arith.truncf %156 : vector<32x8xf32> to vector<32x8xbf16>
    %cst_53 = arith.constant dense<0.000000e+00> : vector<32x8xf32>
    %175 = tpu.matmul %173, %174, %cst_53 {dimension_numbers = #tpu.dot_dimension_numbers<[1], [0], [0], [1], [0, 0, 1, 1], [], []>} : vector<32x32xbf16>, vector<32x8xbf16>, vector<32x8xf32> -> vector<32x8xf32>
    %176 = tpu.concatenate %109, %131, %153, %175 in 1 : vector<32x8xf32>, vector<32x8xf32>, vector<32x8xf32>, vector<32x8xf32> -> vector<32x32xf32>
    %177 = arith.truncf %176 : vector<32x32xf32> to vector<32x32xbf16>
    %cst_54 = arith.constant dense<0.000000e+00> : vector<32x32xf32>
    %178 = tpu.matmul %177, %59, %cst_54 {dimension_numbers = #tpu.dot_dimension_numbers<[1], [0], [0], [1], [0, 0, 1, 1], [], []>} : vector<32x32xbf16>, vector<32x32xbf16>, vector<32x32xf32> -> vector<32x32xf32>
    %179 = arith.addf %35, %178 : vector<32x32xf32>
    %180 = vector.broadcast %53 : vector<1x32xf32> to vector<32x32xf32>
    %181 = arith.addf %179, %180 : vector<32x32xf32>
    %cst_55 = arith.constant dense<0.000000e+00> : vector<32xf32>
    %182 = vector.multi_reduction <add>, %181, %cst_55 [1] : vector<32x32xf32> to vector<32xf32>
    %183 = vector.shape_cast %182 : vector<32xf32> to vector<32x1xf32>
    %cst_56 = arith.constant 3.200000e+01 : f32
    %184 = vector.broadcast %cst_56 : f32 to vector<32x1xf32>
    %185 = arith.divf %183, %184 : vector<32x1xf32>
    %186 = vector.broadcast %185 : vector<32x1xf32> to vector<32x32xf32>
    %187 = arith.subf %181, %186 : vector<32x32xf32>
    %188 = arith.mulf %187, %187 : vector<32x32xf32>
    %cst_57 = arith.constant dense<0.000000e+00> : vector<32xf32>
    %189 = vector.multi_reduction <add>, %188, %cst_57 [1] : vector<32x32xf32> to vector<32xf32>
    %190 = vector.shape_cast %189 : vector<32xf32> to vector<32x1xf32>
    %cst_58 = arith.constant 3.200000e+01 : f32
    %191 = vector.broadcast %cst_58 : f32 to vector<32x1xf32>
    %192 = arith.divf %190, %191 : vector<32x1xf32>
    %193 = vector.broadcast %185 : vector<32x1xf32> to vector<32x32xf32>
    %194 = arith.subf %181, %193 : vector<32x32xf32>
    %cst_59 = arith.constant 9.99999974E-6 : f32
    %195 = vector.broadcast %cst_59 : f32 to vector<32x1xf32>
    %196 = arith.addf %192, %195 : vector<32x1xf32>
    %197 = math.rsqrt %196 : vector<32x1xf32>
    %198 = vector.broadcast %197 : vector<32x1xf32> to vector<32x32xf32>
    %199 = arith.mulf %194, %198 : vector<32x32xf32>
    %200 = vector.broadcast %50 : vector<1x32xf32> to vector<32x32xf32>
    %201 = arith.mulf %199, %200 : vector<32x32xf32>
    %202 = vector.broadcast %51 : vector<1x32xf32> to vector<32x32xf32>
    %203 = arith.addf %201, %202 : vector<32x32xf32>
    %204 = arith.truncf %203 : vector<32x32xf32> to vector<32x32xbf16>
    %cst_60 = arith.constant dense<0.000000e+00> : vector<32x128xf32>
    %205 = tpu.matmul %204, %61, %cst_60 {dimension_numbers = #tpu.dot_dimension_numbers<[1], [0], [0], [1], [0, 0, 1, 1], [], []>} : vector<32x32xbf16>, vector<32x128xbf16>, vector<32x128xf32> -> vector<32x128xf32>
    %206 = vector.broadcast %54 : vector<1x128xf32> to vector<32x128xf32>
    %207 = arith.addf %205, %206 : vector<32x128xf32>
    %208 = arith.mulf %207, %207 : vector<32x128xf32>
    %209 = arith.mulf %207, %208 : vector<32x128xf32>
    %cst_61 = arith.constant 4.471500e-02 : f32
    %210 = vector.broadcast %cst_61 : f32 to vector<32x128xf32>
    %211 = arith.mulf %210, %209 : vector<32x128xf32>
    %212 = arith.addf %207, %211 : vector<32x128xf32>
    %cst_62 = arith.constant 0.797884583 : f32
    %213 = vector.broadcast %cst_62 : f32 to vector<32x128xf32>
    %214 = arith.mulf %213, %212 : vector<32x128xf32>
    %215 = math.tanh %214 : vector<32x128xf32>
    %cst_63 = arith.constant 1.000000e+00 : f32
    %216 = vector.broadcast %cst_63 : f32 to vector<32x128xf32>
    %217 = arith.addf %216, %215 : vector<32x128xf32>
    %cst_64 = arith.constant 5.000000e-01 : f32
    %218 = vector.broadcast %cst_64 : f32 to vector<32x128xf32>
    %219 = arith.mulf %218, %217 : vector<32x128xf32>
    %220 = arith.mulf %207, %219 : vector<32x128xf32>
    %221 = arith.truncf %220 : vector<32x128xf32> to vector<32x128xbf16>
    %c0_65 = arith.constant 0 : index
    %c0_66 = arith.constant 0 : index
    %c0_67 = arith.constant 0 : index
    %222 = vector.load %arg5[%c0_65, %c0_66, %c0_67] : memref<2x128x32xbf16, #tpu.memory_space<vmem>>, vector<1x128x32xbf16>
    %223 = vector.shape_cast %222 : vector<1x128x32xbf16> to vector<128x32xbf16>
    %cst_68 = arith.constant dense<0.000000e+00> : vector<32x32xf32>
    %224 = tpu.matmul %221, %223, %cst_68 {dimension_numbers = #tpu.dot_dimension_numbers<[1], [0], [0], [1], [0, 0, 1, 1], [], []>} : vector<32x128xbf16>, vector<128x32xbf16>, vector<32x32xf32> -> vector<32x32xf32>
    %225 = arith.addf %181, %224 : vector<32x32xf32>
    %226 = vector.broadcast %55 : vector<1x32xf32> to vector<32x32xf32>
    %227 = arith.addf %225, %226 : vector<32x32xf32>
    %c1 = arith.constant 1 : index
    %c0_69 = arith.constant 0 : index
    %c0_70 = arith.constant 0 : index
    %228 = vector.load %arg4[%c1, %c0_69, %c0_70] : memref<3x8x128xf32, #tpu.memory_space<vmem>>, vector<1x8x128xf32>
    %229 = vector.shape_cast %228 : vector<1x8x128xf32> to vector<8x128xf32>
    %230 = vector.extract_strided_slice %229 {offsets = [0, 0], sizes = [1, 32], strides = [1, 1]} : vector<8x128xf32> to vector<1x32xf32>
    %231 = vector.extract_strided_slice %229 {offsets = [1, 0], sizes = [1, 32], strides = [1, 1]} : vector<8x128xf32> to vector<1x32xf32>
    %232 = vector.extract_strided_slice %229 {offsets = [2, 0], sizes = [1, 32], strides = [1, 1]} : vector<8x128xf32> to vector<1x32xf32>
    %233 = vector.extract_strided_slice %229 {offsets = [3, 0], sizes = [1, 32], strides = [1, 1]} : vector<8x128xf32> to vector<1x32xf32>
    %234 = vector.extract_strided_slice %229 {offsets = [4, 0], sizes = [1, 96], strides = [1, 1]} : vector<8x128xf32> to vector<1x96xf32>
    %235 = vector.extract_strided_slice %229 {offsets = [5, 0], sizes = [1, 32], strides = [1, 1]} : vector<8x128xf32> to vector<1x32xf32>
    %236 = vector.extract_strided_slice %229 {offsets = [6, 0], sizes = [1, 128], strides = [1, 1]} : vector<8x128xf32> to vector<1x128xf32>
    %237 = vector.extract_strided_slice %229 {offsets = [7, 0], sizes = [1, 32], strides = [1, 1]} : vector<8x128xf32> to vector<1x32xf32>
    %c1_71 = arith.constant 1 : index
    %c0_72 = arith.constant 0 : index
    %c0_73 = arith.constant 0 : index
    %238 = vector.load %arg3[%c1_71, %c0_72, %c0_73] : memref<3x32x256xbf16, #tpu.memory_space<vmem>>, vector<1x32x96xbf16>
    %239 = vector.shape_cast %238 : vector<1x32x96xbf16> to vector<32x96xbf16>
    %c1_74 = arith.constant 1 : index
    %c0_75 = arith.constant 0 : index
    %c96_76 = arith.constant 96 : index
    %240 = vector.load %arg3[%c1_74, %c0_75, %c96_76] : memref<3x32x256xbf16, #tpu.memory_space<vmem>>, vector<1x32x32xbf16>
    %241 = vector.shape_cast %240 : vector<1x32x32xbf16> to vector<32x32xbf16>
    %c1_77 = arith.constant 1 : index
    %c0_78 = arith.constant 0 : index
    %c128_79 = arith.constant 128 : index
    %242 = vector.load %arg3[%c1_77, %c0_78, %c128_79] : memref<3x32x256xbf16, #tpu.memory_space<vmem>>, vector<1x32x128xbf16>
    %243 = vector.shape_cast %242 : vector<1x32x128xbf16> to vector<32x128xbf16>
    %cst_80 = arith.constant dense<0.000000e+00> : vector<32xf32>
    %244 = vector.multi_reduction <add>, %227, %cst_80 [1] : vector<32x32xf32> to vector<32xf32>
    %245 = vector.shape_cast %244 : vector<32xf32> to vector<32x1xf32>
    %cst_81 = arith.constant 3.200000e+01 : f32
    %246 = vector.broadcast %cst_81 : f32 to vector<32x1xf32>
    %247 = arith.divf %245, %246 : vector<32x1xf32>
    %248 = vector.broadcast %247 : vector<32x1xf32> to vector<32x32xf32>
    %249 = arith.subf %227, %248 : vector<32x32xf32>
    %250 = arith.mulf %249, %249 : vector<32x32xf32>
    %cst_82 = arith.constant dense<0.000000e+00> : vector<32xf32>
    %251 = vector.multi_reduction <add>, %250, %cst_82 [1] : vector<32x32xf32> to vector<32xf32>
    %252 = vector.shape_cast %251 : vector<32xf32> to vector<32x1xf32>
    %cst_83 = arith.constant 3.200000e+01 : f32
    %253 = vector.broadcast %cst_83 : f32 to vector<32x1xf32>
    %254 = arith.divf %252, %253 : vector<32x1xf32>
    %255 = vector.broadcast %247 : vector<32x1xf32> to vector<32x32xf32>
    %256 = arith.subf %227, %255 : vector<32x32xf32>
    %cst_84 = arith.constant 9.99999974E-6 : f32
    %257 = vector.broadcast %cst_84 : f32 to vector<32x1xf32>
    %258 = arith.addf %254, %257 : vector<32x1xf32>
    %259 = math.rsqrt %258 : vector<32x1xf32>
    %260 = vector.broadcast %259 : vector<32x1xf32> to vector<32x32xf32>
    %261 = arith.mulf %256, %260 : vector<32x32xf32>
    %262 = vector.broadcast %230 : vector<1x32xf32> to vector<32x32xf32>
    %263 = arith.mulf %261, %262 : vector<32x32xf32>
    %264 = vector.broadcast %231 : vector<1x32xf32> to vector<32x32xf32>
    %265 = arith.addf %263, %264 : vector<32x32xf32>
    %266 = arith.truncf %265 : vector<32x32xf32> to vector<32x32xbf16>
    %cst_85 = arith.constant dense<0.000000e+00> : vector<32x96xf32>
    %267 = tpu.matmul %266, %239, %cst_85 {dimension_numbers = #tpu.dot_dimension_numbers<[1], [0], [0], [1], [0, 0, 1, 1], [], []>} : vector<32x32xbf16>, vector<32x96xbf16>, vector<32x96xf32> -> vector<32x96xf32>
    %268 = vector.broadcast %234 : vector<1x96xf32> to vector<32x96xf32>
    %269 = arith.addf %267, %268 : vector<32x96xf32>
    %270 = vector.extract_strided_slice %269 {offsets = [0, 0], sizes = [32, 8], strides = [1, 1]} : vector<32x96xf32> to vector<32x8xf32>
    %271 = vector.extract_strided_slice %269 {offsets = [0, 32], sizes = [32, 8], strides = [1, 1]} : vector<32x96xf32> to vector<32x8xf32>
    %272 = vector.extract_strided_slice %269 {offsets = [0, 64], sizes = [32, 8], strides = [1, 1]} : vector<32x96xf32> to vector<32x8xf32>
    %273 = arith.truncf %270 : vector<32x8xf32> to vector<32x8xbf16>
    %274 = arith.truncf %271 : vector<32x8xf32> to vector<32x8xbf16>
    %cst_86 = arith.constant dense<0.000000e+00> : vector<32x32xf32>
    %275 = tpu.matmul %273, %274, %cst_86 {dimension_numbers = #tpu.dot_dimension_numbers<[1], [1], [0], [0], [0, 0, 1, 0], [], []>} : vector<32x8xbf16>, vector<32x8xbf16>, vector<32x32xf32> -> vector<32x32xf32>
    %cst_87 = arith.constant 0.353553385 : f32
    %276 = vector.broadcast %cst_87 : f32 to vector<32x32xf32>
    %277 = arith.mulf %275, %276 : vector<32x32xf32>
    %278 = arith.addf %277, %45 : vector<32x32xf32>
    %cst_88 = arith.constant dense<0xFF800000> : vector<32xf32>
    %279 = vector.multi_reduction <maximumf>, %278, %cst_88 [1] : vector<32x32xf32> to vector<32xf32>
    %280 = vector.shape_cast %279 : vector<32xf32> to vector<32x1xf32>
    %281 = vector.broadcast %280 : vector<32x1xf32> to vector<32x32xf32>
    %282 = arith.subf %278, %281 : vector<32x32xf32>
    %283 = math.exp %282 : vector<32x32xf32>
    %cst_89 = arith.constant dense<0.000000e+00> : vector<32xf32>
    %284 = vector.multi_reduction <add>, %283, %cst_89 [1] : vector<32x32xf32> to vector<32xf32>
    %285 = vector.shape_cast %284 : vector<32xf32> to vector<32x1xf32>
    %286 = tpu.reciprocal %285 {approx = true} : vector<32x1xf32> -> vector<32x1xf32>
    %287 = vector.broadcast %286 : vector<32x1xf32> to vector<32x32xf32>
    %288 = arith.mulf %283, %287 : vector<32x32xf32>
    %289 = arith.truncf %288 : vector<32x32xf32> to vector<32x32xbf16>
    %290 = arith.truncf %272 : vector<32x8xf32> to vector<32x8xbf16>
    %cst_90 = arith.constant dense<0.000000e+00> : vector<32x8xf32>
    %291 = tpu.matmul %289, %290, %cst_90 {dimension_numbers = #tpu.dot_dimension_numbers<[1], [0], [0], [1], [0, 0, 1, 1], [], []>} : vector<32x32xbf16>, vector<32x8xbf16>, vector<32x8xf32> -> vector<32x8xf32>
    %292 = vector.extract_strided_slice %269 {offsets = [0, 8], sizes = [32, 8], strides = [1, 1]} : vector<32x96xf32> to vector<32x8xf32>
    %293 = vector.extract_strided_slice %269 {offsets = [0, 40], sizes = [32, 8], strides = [1, 1]} : vector<32x96xf32> to vector<32x8xf32>
    %294 = vector.extract_strided_slice %269 {offsets = [0, 72], sizes = [32, 8], strides = [1, 1]} : vector<32x96xf32> to vector<32x8xf32>
    %295 = arith.truncf %292 : vector<32x8xf32> to vector<32x8xbf16>
    %296 = arith.truncf %293 : vector<32x8xf32> to vector<32x8xbf16>
    %cst_91 = arith.constant dense<0.000000e+00> : vector<32x32xf32>
    %297 = tpu.matmul %295, %296, %cst_91 {dimension_numbers = #tpu.dot_dimension_numbers<[1], [1], [0], [0], [0, 0, 1, 0], [], []>} : vector<32x8xbf16>, vector<32x8xbf16>, vector<32x32xf32> -> vector<32x32xf32>
    %cst_92 = arith.constant 0.353553385 : f32
    %298 = vector.broadcast %cst_92 : f32 to vector<32x32xf32>
    %299 = arith.mulf %297, %298 : vector<32x32xf32>
    %300 = arith.addf %299, %45 : vector<32x32xf32>
    %cst_93 = arith.constant dense<0xFF800000> : vector<32xf32>
    %301 = vector.multi_reduction <maximumf>, %300, %cst_93 [1] : vector<32x32xf32> to vector<32xf32>
    %302 = vector.shape_cast %301 : vector<32xf32> to vector<32x1xf32>
    %303 = vector.broadcast %302 : vector<32x1xf32> to vector<32x32xf32>
    %304 = arith.subf %300, %303 : vector<32x32xf32>
    %305 = math.exp %304 : vector<32x32xf32>
    %cst_94 = arith.constant dense<0.000000e+00> : vector<32xf32>
    %306 = vector.multi_reduction <add>, %305, %cst_94 [1] : vector<32x32xf32> to vector<32xf32>
    %307 = vector.shape_cast %306 : vector<32xf32> to vector<32x1xf32>
    %308 = tpu.reciprocal %307 {approx = true} : vector<32x1xf32> -> vector<32x1xf32>
    %309 = vector.broadcast %308 : vector<32x1xf32> to vector<32x32xf32>
    %310 = arith.mulf %305, %309 : vector<32x32xf32>
    %311 = arith.truncf %310 : vector<32x32xf32> to vector<32x32xbf16>
    %312 = arith.truncf %294 : vector<32x8xf32> to vector<32x8xbf16>
    %cst_95 = arith.constant dense<0.000000e+00> : vector<32x8xf32>
    %313 = tpu.matmul %311, %312, %cst_95 {dimension_numbers = #tpu.dot_dimension_numbers<[1], [0], [0], [1], [0, 0, 1, 1], [], []>} : vector<32x32xbf16>, vector<32x8xbf16>, vector<32x8xf32> -> vector<32x8xf32>
    %314 = vector.extract_strided_slice %269 {offsets = [0, 16], sizes = [32, 8], strides = [1, 1]} : vector<32x96xf32> to vector<32x8xf32>
    %315 = vector.extract_strided_slice %269 {offsets = [0, 48], sizes = [32, 8], strides = [1, 1]} : vector<32x96xf32> to vector<32x8xf32>
    %316 = vector.extract_strided_slice %269 {offsets = [0, 80], sizes = [32, 8], strides = [1, 1]} : vector<32x96xf32> to vector<32x8xf32>
    %317 = arith.truncf %314 : vector<32x8xf32> to vector<32x8xbf16>
    %318 = arith.truncf %315 : vector<32x8xf32> to vector<32x8xbf16>
    %cst_96 = arith.constant dense<0.000000e+00> : vector<32x32xf32>
    %319 = tpu.matmul %317, %318, %cst_96 {dimension_numbers = #tpu.dot_dimension_numbers<[1], [1], [0], [0], [0, 0, 1, 0], [], []>} : vector<32x8xbf16>, vector<32x8xbf16>, vector<32x32xf32> -> vector<32x32xf32>
    %cst_97 = arith.constant 0.353553385 : f32
    %320 = vector.broadcast %cst_97 : f32 to vector<32x32xf32>
    %321 = arith.mulf %319, %320 : vector<32x32xf32>
    %322 = arith.addf %321, %45 : vector<32x32xf32>
    %cst_98 = arith.constant dense<0xFF800000> : vector<32xf32>
    %323 = vector.multi_reduction <maximumf>, %322, %cst_98 [1] : vector<32x32xf32> to vector<32xf32>
    %324 = vector.shape_cast %323 : vector<32xf32> to vector<32x1xf32>
    %325 = vector.broadcast %324 : vector<32x1xf32> to vector<32x32xf32>
    %326 = arith.subf %322, %325 : vector<32x32xf32>
    %327 = math.exp %326 : vector<32x32xf32>
    %cst_99 = arith.constant dense<0.000000e+00> : vector<32xf32>
    %328 = vector.multi_reduction <add>, %327, %cst_99 [1] : vector<32x32xf32> to vector<32xf32>
    %329 = vector.shape_cast %328 : vector<32xf32> to vector<32x1xf32>
    %330 = tpu.reciprocal %329 {approx = true} : vector<32x1xf32> -> vector<32x1xf32>
    %331 = vector.broadcast %330 : vector<32x1xf32> to vector<32x32xf32>
    %332 = arith.mulf %327, %331 : vector<32x32xf32>
    %333 = arith.truncf %332 : vector<32x32xf32> to vector<32x32xbf16>
    %334 = arith.truncf %316 : vector<32x8xf32> to vector<32x8xbf16>
    %cst_100 = arith.constant dense<0.000000e+00> : vector<32x8xf32>
    %335 = tpu.matmul %333, %334, %cst_100 {dimension_numbers = #tpu.dot_dimension_numbers<[1], [0], [0], [1], [0, 0, 1, 1], [], []>} : vector<32x32xbf16>, vector<32x8xbf16>, vector<32x8xf32> -> vector<32x8xf32>
    %336 = vector.extract_strided_slice %269 {offsets = [0, 24], sizes = [32, 8], strides = [1, 1]} : vector<32x96xf32> to vector<32x8xf32>
    %337 = vector.extract_strided_slice %269 {offsets = [0, 56], sizes = [32, 8], strides = [1, 1]} : vector<32x96xf32> to vector<32x8xf32>
    %338 = vector.extract_strided_slice %269 {offsets = [0, 88], sizes = [32, 8], strides = [1, 1]} : vector<32x96xf32> to vector<32x8xf32>
    %339 = arith.truncf %336 : vector<32x8xf32> to vector<32x8xbf16>
    %340 = arith.truncf %337 : vector<32x8xf32> to vector<32x8xbf16>
    %cst_101 = arith.constant dense<0.000000e+00> : vector<32x32xf32>
    %341 = tpu.matmul %339, %340, %cst_101 {dimension_numbers = #tpu.dot_dimension_numbers<[1], [1], [0], [0], [0, 0, 1, 0], [], []>} : vector<32x8xbf16>, vector<32x8xbf16>, vector<32x32xf32> -> vector<32x32xf32>
    %cst_102 = arith.constant 0.353553385 : f32
    %342 = vector.broadcast %cst_102 : f32 to vector<32x32xf32>
    %343 = arith.mulf %341, %342 : vector<32x32xf32>
    %344 = arith.addf %343, %45 : vector<32x32xf32>
    %cst_103 = arith.constant dense<0xFF800000> : vector<32xf32>
    %345 = vector.multi_reduction <maximumf>, %344, %cst_103 [1] : vector<32x32xf32> to vector<32xf32>
    %346 = vector.shape_cast %345 : vector<32xf32> to vector<32x1xf32>
    %347 = vector.broadcast %346 : vector<32x1xf32> to vector<32x32xf32>
    %348 = arith.subf %344, %347 : vector<32x32xf32>
    %349 = math.exp %348 : vector<32x32xf32>
    %cst_104 = arith.constant dense<0.000000e+00> : vector<32xf32>
    %350 = vector.multi_reduction <add>, %349, %cst_104 [1] : vector<32x32xf32> to vector<32xf32>
    %351 = vector.shape_cast %350 : vector<32xf32> to vector<32x1xf32>
    %352 = tpu.reciprocal %351 {approx = true} : vector<32x1xf32> -> vector<32x1xf32>
    %353 = vector.broadcast %352 : vector<32x1xf32> to vector<32x32xf32>
    %354 = arith.mulf %349, %353 : vector<32x32xf32>
    %355 = arith.truncf %354 : vector<32x32xf32> to vector<32x32xbf16>
    %356 = arith.truncf %338 : vector<32x8xf32> to vector<32x8xbf16>
    %cst_105 = arith.constant dense<0.000000e+00> : vector<32x8xf32>
    %357 = tpu.matmul %355, %356, %cst_105 {dimension_numbers = #tpu.dot_dimension_numbers<[1], [0], [0], [1], [0, 0, 1, 1], [], []>} : vector<32x32xbf16>, vector<32x8xbf16>, vector<32x8xf32> -> vector<32x8xf32>
    %358 = tpu.concatenate %291, %313, %335, %357 in 1 : vector<32x8xf32>, vector<32x8xf32>, vector<32x8xf32>, vector<32x8xf32> -> vector<32x32xf32>
    %359 = arith.truncf %358 : vector<32x32xf32> to vector<32x32xbf16>
    %cst_106 = arith.constant dense<0.000000e+00> : vector<32x32xf32>
    %360 = tpu.matmul %359, %241, %cst_106 {dimension_numbers = #tpu.dot_dimension_numbers<[1], [0], [0], [1], [0, 0, 1, 1], [], []>} : vector<32x32xbf16>, vector<32x32xbf16>, vector<32x32xf32> -> vector<32x32xf32>
    %361 = arith.addf %227, %360 : vector<32x32xf32>
    %362 = vector.broadcast %235 : vector<1x32xf32> to vector<32x32xf32>
    %363 = arith.addf %361, %362 : vector<32x32xf32>
    %cst_107 = arith.constant dense<0.000000e+00> : vector<32xf32>
    %364 = vector.multi_reduction <add>, %363, %cst_107 [1] : vector<32x32xf32> to vector<32xf32>
    %365 = vector.shape_cast %364 : vector<32xf32> to vector<32x1xf32>
    %cst_108 = arith.constant 3.200000e+01 : f32
    %366 = vector.broadcast %cst_108 : f32 to vector<32x1xf32>
    %367 = arith.divf %365, %366 : vector<32x1xf32>
    %368 = vector.broadcast %367 : vector<32x1xf32> to vector<32x32xf32>
    %369 = arith.subf %363, %368 : vector<32x32xf32>
    %370 = arith.mulf %369, %369 : vector<32x32xf32>
    %cst_109 = arith.constant dense<0.000000e+00> : vector<32xf32>
    %371 = vector.multi_reduction <add>, %370, %cst_109 [1] : vector<32x32xf32> to vector<32xf32>
    %372 = vector.shape_cast %371 : vector<32xf32> to vector<32x1xf32>
    %cst_110 = arith.constant 3.200000e+01 : f32
    %373 = vector.broadcast %cst_110 : f32 to vector<32x1xf32>
    %374 = arith.divf %372, %373 : vector<32x1xf32>
    %375 = vector.broadcast %367 : vector<32x1xf32> to vector<32x32xf32>
    %376 = arith.subf %363, %375 : vector<32x32xf32>
    %cst_111 = arith.constant 9.99999974E-6 : f32
    %377 = vector.broadcast %cst_111 : f32 to vector<32x1xf32>
    %378 = arith.addf %374, %377 : vector<32x1xf32>
    %379 = math.rsqrt %378 : vector<32x1xf32>
    %380 = vector.broadcast %379 : vector<32x1xf32> to vector<32x32xf32>
    %381 = arith.mulf %376, %380 : vector<32x32xf32>
    %382 = vector.broadcast %232 : vector<1x32xf32> to vector<32x32xf32>
    %383 = arith.mulf %381, %382 : vector<32x32xf32>
    %384 = vector.broadcast %233 : vector<1x32xf32> to vector<32x32xf32>
    %385 = arith.addf %383, %384 : vector<32x32xf32>
    %386 = arith.truncf %385 : vector<32x32xf32> to vector<32x32xbf16>
    %cst_112 = arith.constant dense<0.000000e+00> : vector<32x128xf32>
    %387 = tpu.matmul %386, %243, %cst_112 {dimension_numbers = #tpu.dot_dimension_numbers<[1], [0], [0], [1], [0, 0, 1, 1], [], []>} : vector<32x32xbf16>, vector<32x128xbf16>, vector<32x128xf32> -> vector<32x128xf32>
    %388 = vector.broadcast %236 : vector<1x128xf32> to vector<32x128xf32>
    %389 = arith.addf %387, %388 : vector<32x128xf32>
    %390 = arith.mulf %389, %389 : vector<32x128xf32>
    %391 = arith.mulf %389, %390 : vector<32x128xf32>
    %cst_113 = arith.constant 4.471500e-02 : f32
    %392 = vector.broadcast %cst_113 : f32 to vector<32x128xf32>
    %393 = arith.mulf %392, %391 : vector<32x128xf32>
    %394 = arith.addf %389, %393 : vector<32x128xf32>
    %cst_114 = arith.constant 0.797884583 : f32
    %395 = vector.broadcast %cst_114 : f32 to vector<32x128xf32>
    %396 = arith.mulf %395, %394 : vector<32x128xf32>
    %397 = math.tanh %396 : vector<32x128xf32>
    %cst_115 = arith.constant 1.000000e+00 : f32
    %398 = vector.broadcast %cst_115 : f32 to vector<32x128xf32>
    %399 = arith.addf %398, %397 : vector<32x128xf32>
    %cst_116 = arith.constant 5.000000e-01 : f32
    %400 = vector.broadcast %cst_116 : f32 to vector<32x128xf32>
    %401 = arith.mulf %400, %399 : vector<32x128xf32>
    %402 = arith.mulf %389, %401 : vector<32x128xf32>
    %403 = arith.truncf %402 : vector<32x128xf32> to vector<32x128xbf16>
    %c1_117 = arith.constant 1 : index
    %c0_118 = arith.constant 0 : index
    %c0_119 = arith.constant 0 : index
    %404 = vector.load %arg5[%c1_117, %c0_118, %c0_119] : memref<2x128x32xbf16, #tpu.memory_space<vmem>>, vector<1x128x32xbf16>
    %405 = vector.shape_cast %404 : vector<1x128x32xbf16> to vector<128x32xbf16>
    %cst_120 = arith.constant dense<0.000000e+00> : vector<32x32xf32>
    %406 = tpu.matmul %403, %405, %cst_120 {dimension_numbers = #tpu.dot_dimension_numbers<[1], [0], [0], [1], [0, 0, 1, 1], [], []>} : vector<32x128xbf16>, vector<128x32xbf16>, vector<32x32xf32> -> vector<32x32xf32>
    %407 = arith.addf %363, %406 : vector<32x32xf32>
    %408 = vector.broadcast %237 : vector<1x32xf32> to vector<32x32xf32>
    %409 = arith.addf %407, %408 : vector<32x32xf32>
    %c2 = arith.constant 2 : index
    %c0_121 = arith.constant 0 : index
    %c0_122 = arith.constant 0 : index
    %410 = vector.load %arg4[%c2, %c0_121, %c0_122] : memref<3x8x128xf32, #tpu.memory_space<vmem>>, vector<1x8x128xf32>
    %411 = vector.shape_cast %410 : vector<1x8x128xf32> to vector<8x128xf32>
    %412 = vector.extract_strided_slice %411 {offsets = [0, 0], sizes = [1, 32], strides = [1, 1]} : vector<8x128xf32> to vector<1x32xf32>
    %413 = vector.extract_strided_slice %411 {offsets = [1, 0], sizes = [1, 32], strides = [1, 1]} : vector<8x128xf32> to vector<1x32xf32>
    %cst_123 = arith.constant dense<0.000000e+00> : vector<32xf32>
    %414 = vector.multi_reduction <add>, %409, %cst_123 [1] : vector<32x32xf32> to vector<32xf32>
    %415 = vector.shape_cast %414 : vector<32xf32> to vector<32x1xf32>
    %cst_124 = arith.constant 3.200000e+01 : f32
    %416 = vector.broadcast %cst_124 : f32 to vector<32x1xf32>
    %417 = arith.divf %415, %416 : vector<32x1xf32>
    %418 = vector.broadcast %417 : vector<32x1xf32> to vector<32x32xf32>
    %419 = arith.subf %409, %418 : vector<32x32xf32>
    %420 = arith.mulf %419, %419 : vector<32x32xf32>
    %cst_125 = arith.constant dense<0.000000e+00> : vector<32xf32>
    %421 = vector.multi_reduction <add>, %420, %cst_125 [1] : vector<32x32xf32> to vector<32xf32>
    %422 = vector.shape_cast %421 : vector<32xf32> to vector<32x1xf32>
    %cst_126 = arith.constant 3.200000e+01 : f32
    %423 = vector.broadcast %cst_126 : f32 to vector<32x1xf32>
    %424 = arith.divf %422, %423 : vector<32x1xf32>
    %425 = vector.broadcast %417 : vector<32x1xf32> to vector<32x32xf32>
    %426 = arith.subf %409, %425 : vector<32x32xf32>
    %cst_127 = arith.constant 9.99999974E-6 : f32
    %427 = vector.broadcast %cst_127 : f32 to vector<32x1xf32>
    %428 = arith.addf %424, %427 : vector<32x1xf32>
    %429 = math.rsqrt %428 : vector<32x1xf32>
    %430 = vector.broadcast %429 : vector<32x1xf32> to vector<32x32xf32>
    %431 = arith.mulf %426, %430 : vector<32x32xf32>
    %432 = vector.broadcast %412 : vector<1x32xf32> to vector<32x32xf32>
    %433 = arith.mulf %431, %432 : vector<32x32xf32>
    %434 = vector.broadcast %413 : vector<1x32xf32> to vector<32x32xf32>
    %435 = arith.addf %433, %434 : vector<32x32xf32>
    %c2_128 = arith.constant 2 : index
    %c0_129 = arith.constant 0 : index
    %c0_130 = arith.constant 0 : index
    %436 = vector.load %arg3[%c2_128, %c0_129, %c0_130] : memref<3x32x256xbf16, #tpu.memory_space<vmem>>, vector<1x32x128xbf16>
    %437 = vector.shape_cast %436 : vector<1x32x128xbf16> to vector<32x128xbf16>
    %438 = vector.extract_strided_slice %411 {offsets = [2, 0], sizes = [1, 128], strides = [1, 1]} : vector<8x128xf32> to vector<1x128xf32>
    %439 = arith.truncf %435 : vector<32x32xf32> to vector<32x32xbf16>
    %cst_131 = arith.constant dense<0.000000e+00> : vector<32x128xf32>
    %440 = tpu.matmul %439, %437, %cst_131 {dimension_numbers = #tpu.dot_dimension_numbers<[1], [0], [0], [1], [0, 0, 1, 1], [], []>} : vector<32x32xbf16>, vector<32x128xbf16>, vector<32x128xf32> -> vector<32x128xf32>
    %441 = vector.broadcast %438 : vector<1x128xf32> to vector<32x128xf32>
    %442 = arith.addf %440, %441 : vector<32x128xf32>
    %c0_132 = arith.constant 0 : index
    %c0_133 = arith.constant 0 : index
    %443 = vector.load %arg6[%c0_132, %c0_133] : memref<32x128xf32, #tpu.memory_space<vmem>>, vector<32x128xf32>
    tpu.vector_store %arg6[%c0_132, %c0_133], %442 {strides = array<i32>} : memref<32x128xf32, #tpu.memory_space<vmem>>, vector<32x128xf32>,
    return
  }
}

</mosaic_0001>

<llo_original>
// kernel: maskgit_forward.3
$region0: #{maskgit_forward.3}
  #allocation0 [shape = 'u32[]', space=smem, size = 0x4, offset = 0x4, fixed_abs, tag = 'smem constant byte address 0x4 - core index']
  #allocation1 [shape = 'u32[72,128]{1,0:T(1,128)}', space=vmem, size = 0x9000, scoped, tag = 'internal scratch']
  %s0 = inlined_call_operand.vmem [shape: f32[32,256], index: 0, kind: input, shape index: {}]
  %s1 = inlined_call_operand.vmem [shape: f32[256,64], index: 1, kind: input, shape index: {}]
  %s2 = inlined_call_operand.vmem [shape: bf16[81,32], index: 2, kind: input, shape index: {}]
  %s3 = inlined_call_operand.vmem [shape: bf16[3,32,256], index: 3, kind: input, shape index: {}]
  %s4 = inlined_call_operand.vmem [shape: f32[3,8,128], index: 4, kind: input, shape index: {}]
  %s5 = inlined_call_operand.vmem [shape: bf16[2,128,32], index: 5, kind: input, shape index: {}]
  %s6 = inlined_call_operand.hbm [shape: f32[32,128], index: 6, kind: output, shape index: {0}]
  %s7 = inlined_call_operand.vmem [shape: s32[32,1], index: 7, kind: output, shape index: {1}]
  %8 = xla_tuple %s6, %s7
  %s9 = sld [smem:[#allocation0]]
  $region42: #{maskgit_forward.3} parent=0
    _
  %s11 = ssub.s32 1, %s9
  %s12 = scalar_select 0, %s11, %s9
  $region1: #{maskgit_forward.3} parent=0
    #allocation2 [shape = 'u8[16384]{0}', space=vmem, size = 0x4000, scoped, tag = 'output window, operand 0, single buffered']
    #allocation3 [shape = 's32[1]{0}', space=sflag, size = 0x4, scoped, tag = 'scoped memory for maskgit_forward.3']
    %13 = vsyncpa [#allocation3], 0
    // Predicated region
    $region2: #{maskgit_forward.3} parent=1 // pred_check
      _
    $region3: #{maskgit_forward.3} parent=1 // pred_check_branch
      %15 = sbr.rel (0) target = $region5
    $region4: #{maskgit_forward.3} parent=1 // pred_region
      _
    $region5: #{maskgit_forward.3} parent=1 // pred_fallthru
      _
    // Predicated region
    $region6: #{maskgit_forward.3} parent=1 // pred_check
      _
    $region7: #{maskgit_forward.3} parent=1 // pred_check_branch
      %17 = sbr.rel (0) target = $region9
    $region8: #{maskgit_forward.3} parent=1 // pred_region
      _
    $region9: #{maskgit_forward.3} parent=1 // pred_fallthru
      _
    // Predicated region
    $region10: #{maskgit_forward.3} parent=1 // pred_check
      _
    $region11: #{maskgit_forward.3} parent=1 // pred_check_branch
      %19 = sbr.rel (0) target = $region13
    $region12: #{maskgit_forward.3} parent=1 // pred_region
      _
    $region13: #{maskgit_forward.3} parent=1 // pred_fallthru
      _
    // Predicated region
    $region14: #{maskgit_forward.3} parent=1 // pred_check
      _
    $region15: #{maskgit_forward.3} parent=1 // pred_check_branch
      %21 = sbr.rel (0) target = $region17
    $region16: #{maskgit_forward.3} parent=1 // pred_region
      _
    $region17: #{maskgit_forward.3} parent=1 // pred_fallthru
      _
    // Predicated region
    $region18: #{maskgit_forward.3} parent=1 // pred_check
      _
    $region19: #{maskgit_forward.3} parent=1 // pred_check_branch
      %23 = sbr.rel (0) target = $region21
    $region20: #{maskgit_forward.3} parent=1 // pred_region
      _
    $region21: #{maskgit_forward.3} parent=1 // pred_fallthru
      _
    // Predicated region
    $region22: #{maskgit_forward.3} parent=1 // pred_check
      _
    $region23: #{maskgit_forward.3} parent=1 // pred_check_branch
      %25 = sbr.rel (0) target = $region25
    $region24: #{maskgit_forward.3} parent=1 // pred_region
      _
    $region25: #{maskgit_forward.3} parent=1 // pred_fallthru
      _
    %v27 = vld [vmem:[%s0] sm:$0xff]
    %v28 = vld [vmem:[%s0 + $0x8] sm:$0xff]
    %v29 = vld [vmem:[%s0 + $0x10] sm:$0xff]
    %v30 = vld [vmem:[%s0 + $0x18] sm:$0xff]
    %v31 = vld [vmem:[%s0 + $0x20] sm:$0xff]
    %v32 = vld [vmem:[%s0 + $0x28] sm:$0xff]
    %v33 = vld [vmem:[%s0 + $0x30] sm:$0xff]
    %v34 = vld [vmem:[%s0 + $0x38] sm:$0xff]
    %v35 = vld [vmem:[%s1] sm:$0xff]
    %v36 = vld [vmem:[%s1 + $0x8] sm:$0xff]
    %v37 = vld [vmem:[%s1 + $0x10] sm:$0xff]
    %v38 = vld [vmem:[%s1 + $0x18] sm:$0xff]
    %v39 = vld [vmem:[%s1 + $0x20] sm:$0xff]
    %v40 = vld [vmem:[%s1 + $0x28] sm:$0xff]
    %v41 = vld [vmem:[%s1 + $0x30] sm:$0xff]
    %v42 = vld [vmem:[%s1 + $0x38] sm:$0xff]
    %v43 = vld [vmem:[%s1 + $0x40] sm:$0xff]
    %v44 = vld [vmem:[%s1 + $0x48] sm:$0xff]
    %v45 = vld [vmem:[%s1 + $0x50] sm:$0xff]
    %v46 = vld [vmem:[%s1 + $0x58] sm:$0xff]
    %v47 = vld [vmem:[%s1 + $0x60] sm:$0xff]
    %v48 = vld [vmem:[%s1 + $0x68] sm:$0xff]
    %v49 = vld [vmem:[%s1 + $0x70] sm:$0xff]
    %v50 = vld [vmem:[%s1 + $0x78] sm:$0xff]
    %v51 = vld [vmem:[%s1 + $0x80] sm:$0xff]
    %v52 = vld [vmem:[%s1 + $0x88] sm:$0xff]
    %v53 = vld [vmem:[%s1 + $0x90] sm:$0xff]
    %v54 = vld [vmem:[%s1 + $0x98] sm:$0xff]
    %v55 = vld [vmem:[%s1 + $0xa0] sm:$0xff]
    %v56 = vld [vmem:[%s1 + $0xa8] sm:$0xff]
    %v57 = vld [vmem:[%s1 + $0xb0] sm:$0xff]
    %v58 = vld [vmem:[%s1 + $0xb8] sm:$0xff]
    %v59 = vld [vmem:[%s1 + $0xc0] sm:$0xff]
    %v60 = vld [vmem:[%s1 + $0xc8] sm:$0xff]
    %v61 = vld [vmem:[%s1 + $0xd0] sm:$0xff]
    %v62 = vld [vmem:[%s1 + $0xd8] sm:$0xff]
    %v63 = vld [vmem:[%s1 + $0xe0] sm:$0xff]
    %v64 = vld [vmem:[%s1 + $0xe8] sm:$0xff]
    %v65 = vld [vmem:[%s1 + $0xf0] sm:$0xff]
    %v66 = vld [vmem:[%s1 + $0xf8] sm:$0xff]
    %67 = vmatpush.msra.mxu0 %v50
    %68 = vmatpush.msra.mxu0 %v49
    %69 = vmatpush.msra.mxu0 %v48
    %70 = vmatpush.msra.mxu0 %v47
    %71 = vmatpush.msra.mxu0 %v46
    %72 = vmatpush.msra.mxu0 %v45
    %73 = vmatpush.msra.mxu0 %v44
    %74 = vmatpush.msra.mxu0 %v43
    %75 = vmatpush.msra.mxu0 %v42
    %76 = vmatpush.msra.mxu0 %v41
    %77 = vmatpush.msra.mxu0 %v40
    %78 = vmatpush.msra.mxu0 %v39
    %79 = vmatpush.msra.mxu0 %v38
    %80 = vmatpush.msra.mxu0 %v37
    %81 = vmatpush.msra.mxu0 %v36
    %82 = vmatpush.msra.mxu0 %v35
    %83 = vmatmul.f32.gmra.mxu0 %v27
    %v84 = vpop.f32.mrf.mxu0
    %v85 = vadd.f32 0.0, %v84
    %86 = vmatmul.f32.gmra.mxu0 %v29
    %v87 = vpop.f32.mrf.mxu0
    %v88 = vadd.f32 0.0, %v87
    %89 = vmatmul.f32.gmra.mxu0 %v31
    %v90 = vpop.f32.mrf.mxu0
    %v91 = vadd.f32 0.0, %v90
    %92 = vmatmul.f32.gmra.mxu0 %v33
    %v93 = vpop.f32.mrf.mxu0
    %v94 = vadd.f32 0.0, %v93
    %95 = vdwg.mxu0
    %96 = vmatpush.msra.mxu0 %v66
    %97 = vmatpush.msra.mxu0 %v65
    %98 = vmatpush.msra.mxu0 %v64
    %99 = vmatpush.msra.mxu0 %v63
    %100 = vmatpush.msra.mxu0 %v62
    %101 = vmatpush.msra.mxu0 %v61
    %102 = vmatpush.msra.mxu0 %v60
    %103 = vmatpush.msra.mxu0 %v59
    %104 = vmatpush.msra.mxu0 %v58
    %105 = vmatpush.msra.mxu0 %v57
    %106 = vmatpush.msra.mxu0 %v56
    %107 = vmatpush.msra.mxu0 %v55
    %108 = vmatpush.msra.mxu0 %v54
    %109 = vmatpush.msra.mxu0 %v53
    %110 = vmatpush.msra.mxu0 %v52
    %111 = vmatpush.msra.mxu0 %v51
    %112 = vmatmul.f32.gmra.mxu0 %v28
    %v113 = vpop.f32.mrf.mxu0
    %v114 = vadd.f32 %v85, %v113
    %115 = vmatmul.f32.gmra.mxu0 %v30
    %v116 = vpop.f32.mrf.mxu0
    %v117 = vadd.f32 %v88, %v116
    %118 = vmatmul.f32.gmra.mxu0 %v32
    %v119 = vpop.f32.mrf.mxu0
    %v120 = vadd.f32 %v91, %v119
    %121 = vmatmul.f32.gmra.mxu0 %v34
    %v122 = vpop.f32.mrf.mxu0
    %v123 = vadd.f32 %v94, %v122
    %124 = vdwg.mxu0
    %vm125 = vcmask 523264
    %v126 = vsel %vm125, %v114, inf
    %127 = vmin.xlane.f32.xlu0 %v126
    %v128 = vpop.xlane.xlu0 %127
    %v129 = vsel %vm125, %v117, inf
    %130 = vmin.xlane.f32.xlu0 %v129
    %v131 = vpop.xlane.xlu0 %130
    %v132 = vsel %vm125, %v120, inf
    %133 = vmin.xlane.f32.xlu0 %v132
    %v134 = vpop.xlane.xlu0 %133
    %v135 = vsel %vm125, %v123, inf
    %136 = vmin.xlane.f32.xlu0 %v135
    %v137 = vpop.xlane.xlu0 %136
    %v138 = vlaneseq
    %v139 = vand.u32 %v138, 127
    %vm140 = vcmp.eq.f32.partialorder %v114, %v128
    %vm141 = vcmp.eq.f32.partialorder %v117, %v131
    %vm142 = vcmp.eq.f32.partialorder %v120, %v134
    %vm143 = vcmp.eq.f32.partialorder %v123, %v137
    %v144 = vsel %vm140, %v139, 64
    %v145 = vsel %vm141, %v139, 64
    %v146 = vsel %vm142, %v139, 64
    %v147 = vsel %vm143, %v139, 64
    %v148 = vsel %vm125, %v144, 2147483647
    %v149 = vand.u32 %v148, 65535
    %v150 = vshra.s32 %v148, 16
    %v151 = vcvt.s32.f32 %v149
    %v152 = vcvt.s32.f32 %v150
    %153 = vmin.xlane.f32.xlu0 %v152
    %v154 = vpop.xlane.xlu0 %153
    %vm155 = vcmp.eq.f32.partialorder %v152, %v154
    %v156 = vsel %vm155, %v151, inf
    %157 = vmin.xlane.f32.xlu0 %v156
    %v158 = vpop.xlane.xlu0 %157
    %v159 = vcvt.f32.s32 %v158
    %v160 = vcvt.f32.s32 %v154
    %v161 = vshll.u32 %v160, 16
    %v162 = vadd.s32 %v161, %v159
    %v163 = vsel %vm125, %v145, 2147483647
    %v164 = vand.u32 %v163, 65535
    %v165 = vshra.s32 %v163, 16
    %v166 = vcvt.s32.f32 %v164
    %v167 = vcvt.s32.f32 %v165
    %168 = vmin.xlane.f32.xlu0 %v167
    %v169 = vpop.xlane.xlu0 %168
    %vm170 = vcmp.eq.f32.partialorder %v167, %v169
    %v171 = vsel %vm170, %v166, inf
    %172 = vmin.xlane.f32.xlu0 %v171
    %v173 = vpop.xlane.xlu0 %172
    %v174 = vcvt.f32.s32 %v173
    %v175 = vcvt.f32.s32 %v169
    %v176 = vshll.u32 %v175, 16
    %v177 = vadd.s32 %v176, %v174
    %v178 = vsel %vm125, %v146, 2147483647
    %v179 = vand.u32 %v178, 65535
    %v180 = vshra.s32 %v178, 16
    %v181 = vcvt.s32.f32 %v179
    %v182 = vcvt.s32.f32 %v180
    %183 = vmin.xlane.f32.xlu0 %v182
    %v184 = vpop.xlane.xlu0 %183
    %vm185 = vcmp.eq.f32.partialorder %v182, %v184
    %v186 = vsel %vm185, %v181, inf
    %187 = vmin.xlane.f32.xlu0 %v186
    %v188 = vpop.xlane.xlu0 %187
    %v189 = vcvt.f32.s32 %v188
    %v190 = vcvt.f32.s32 %v184
    %v191 = vshll.u32 %v190, 16
    %v192 = vadd.s32 %v191, %v189
    %v193 = vsel %vm125, %v147, 2147483647
    %v194 = vand.u32 %v193, 65535
    %v195 = vshra.s32 %v193, 16
    %v196 = vcvt.s32.f32 %v194
    %v197 = vcvt.s32.f32 %v195
    %198 = vmin.xlane.f32.xlu0 %v197
    %v199 = vpop.xlane.xlu0 %198
    %vm200 = vcmp.eq.f32.partialorder %v197, %v199
    %v201 = vsel %vm200, %v196, inf
    %202 = vmin.xlane.f32.xlu0 %v201
    %v203 = vpop.xlane.xlu0 %202
    %v204 = vcvt.f32.s32 %v203
    %v205 = vcvt.f32.s32 %v199
    %v206 = vshll.u32 %v205, 16
    %v207 = vadd.s32 %v206, %v204
    %vm208 = vcmp.lt.s32.totalorder %v162, 63
    %v209 = vsel %vm208, %v162, 63
    %vm210 = vcmp.lt.s32.totalorder %v177, 63
    %v211 = vsel %vm210, %v177, 63
    %vm212 = vcmp.lt.s32.totalorder %v192, 63
    %v213 = vsel %vm212, %v192, 63
    %vm214 = vcmp.lt.s32.totalorder %v207, 63
    %v215 = vsel %vm214, %v207, 63
    %vm216 = vcmask 7168
    %217 = vst.msk [vmem:[%s7] sm:$0xff] %vm216, %v209
    %218 = vst.msk [vmem:[%s7 + $0x8] sm:$0xff] %vm216, %v211
    %219 = vst.msk [vmem:[%s7 + $0x10] sm:$0xff] %vm216, %v213
    %220 = vst.msk [vmem:[%s7 + $0x18] sm:$0xff] %vm216, %v215
    %v221 = vld [vmem:[%s0 + $0x8] sm:$0xff]
    %v222 = vld [vmem:[%s0 + $0x18] sm:$0xff]
    %v223 = vld [vmem:[%s0 + $0x28] sm:$0xff]
    %v224 = vld [vmem:[%s0 + $0x38] sm:$0xff]
    %vm225 = vcmp.gt.f32.partialorder %v221, 0.5
    %vm226 = vcmp.gt.f32.partialorder %v222, 0.5
    %vm227 = vcmp.gt.f32.partialorder %v223, 0.5
    %vm228 = vcmp.gt.f32.partialorder %v224, 0.5
    %v229 = vsel %vm225, 64, %v209
    %v230 = vsel %vm226, 64, %v211
    %v231 = vsel %vm227, 64, %v213
    %v232 = vsel %vm228, 64, %v215
    %v233 = vlaneseq
    %v234 = vshrl.u32 %v233, 7
    %v235 = vadd.s32 %v234, 8
    %v236 = vadd.s32 %v234, 16
    %v237 = vadd.s32 %v234, 24
    %v238 = vand.u32 %v234, 15
    %v239 = vand.u32 %v235, 15
    %v240 = vand.u32 %v236, 15
    %v241 = vand.u32 %v237, 15
    %v242 = vadd.s32 %v238, 65
    %v243 = vadd.s32 %v239, 65
    %v244 = vadd.s32 %v240, 65
    %v245 = vadd.s32 %v241, 65
    %246 = vset.pattern.permute.xlu0 65
    %247 = vperm.xlu0 %246, %v229
    %v248 = vpop.permute.xlu0 %247
    %249 = vset.pattern.permute.xlu0 65
    %250 = vperm.xlu0 %249, %v230
    %v251 = vpop.permute.xlu0 %250
    %252 = vset.pattern.permute.xlu0 65
    %253 = vperm.xlu0 %252, %v231
    %v254 = vpop.permute.xlu0 %253
    %255 = vset.pattern.permute.xlu0 65
    %256 = vperm.xlu0 %255, %v232
    %v257 = vpop.permute.xlu0 %256
    %vm258 = vcmp.eq.s32.totalorder %v139, %v248
    %vm259 = vcmp.eq.s32.totalorder %v139, %v251
    %vm260 = vcmp.eq.s32.totalorder %v139, %v254
    %vm261 = vcmp.eq.s32.totalorder %v139, %v257
    %vm262 = vcmp.eq.s32.totalorder %v139, %v242
    %vm263 = vcmp.eq.s32.totalorder %v139, %v243
    %vm264 = vcmp.eq.s32.totalorder %v139, %v244
    %vm265 = vcmp.eq.s32.totalorder %v139, %v245
    %vm266 = vmor %vm258, %vm262
    %vm267 = vmor %vm259, %vm263
    %vm268 = vmor %vm260, %vm264
    %vm269 = vmor %vm261, %vm265
    %v270 = vsel %vm266, 1.0, 0.0
    %v271 = vsel %vm267, 1.0, 0.0
    %v272 = vsel %vm268, 1.0, 0.0
    %v273 = vsel %vm269, 1.0, 0.0
    %v274 = vpack.c.bf16 %v271, %v270
    %v275 = vpack.c.bf16 %v273, %v272
    %v276 = vld [vmem:[%s2] sm:$0xf]
    %v277 = vld [vmem:[%s2 + $0x4] sm:$0xf]
    %v278 = vld [vmem:[%s2 + $0x8] sm:$0xf]
    %v279 = vld [vmem:[%s2 + $0xc] sm:$0xf]
    %v280 = vld [vmem:[%s2 + $0x10] sm:$0xf]
    %v281 = vld [vmem:[%s2 + $0x14] sm:$0xf]
    %v282 = vld [vmem:[%s2 + $0x18] sm:$0xf]
    %v283 = vld [vmem:[%s2 + $0x1c] sm:$0xf]
    %v284 = vld [vmem:[%s2 + $0x20] sm:$0xf]
    %v285 = vld [vmem:[%s2 + $0x24] sm:$0xf]
    %v286 = vld [vmem:[%s2 + $0x28] sm:$0x1]
    %v298 = vunpack.c.l.b16 %v276
    %v299 = vunpack.c.l.b16 %v277
    %v300 = vunpack.c.l.b16 %v278
    %v301 = vunpack.c.l.b16 %v279
    %v302 = vunpack.c.l.b16 %v280
    %v303 = vunpack.c.l.b16 %v281
    %v304 = vunpack.c.l.b16 %v282
    %v305 = vunpack.c.l.b16 %v283
    %v306 = vunpack.c.l.b16 %v284
    %v307 = vunpack.c.l.b16 %v285
    %v308 = vunpack.c.l.b16 %v286
    %v309 = vpack.c.b16 %v299, %v298
    %v310 = vpack.c.b16 %v301, %v300
    %v311 = vpack.c.b16 %v303, %v302
    %v312 = vpack.c.b16 %v305, %v304
    %v313 = vpack.c.b16 %v307, %v306
    %v314 = vpack.c.b16 %v308, %v308
    %vm320 = vcmask 662528
    %v322 = vsel %vm320, %v274, 0
    %v325 = vsel %vm320, %v275, 0
    %vm327 = vcmask 1040384
    %v328 = vsel 0, 4294967295, 65535
    %v329 = vsel %vm327, %v328, 0
    %v331 = vand.u32 %v314, %v329
    %333 = vmatpush.bf16.msra.mxu0 0
    %334 = vmatpush.bf16.msra.mxu0 0
    %335 = vmatpush.bf16.msra.mxu0 %v331
    %336 = vmatpush.bf16.msra.mxu0 %v313
    %337 = vmatpush.bf16.msra.mxu0 %v312
    %338 = vmatpush.bf16.msra.mxu0 %v311
    %339 = vmatpush.bf16.msra.mxu0 %v310
    %340 = vmatpush.bf16.msra.mxu0 %v309
    %341 = vmatmul.bf16.gmra.mxu0 %v322
    %v342 = vpop.f32.mrf.mxu0
    %v343 = vadd.f32 0.0, %v342
    %v344 = vpop.f32.mrf.mxu0
    %v345 = vadd.f32 0.0, %v344
    %346 = vmatmul.bf16.gmra.mxu0 %v325
    %v347 = vpop.f32.mrf.mxu0
    %v348 = vadd.f32 0.0, %v347
    %v349 = vpop.f32.mrf.mxu0
    %v350 = vadd.f32 0.0, %v349
    %351 = vdwg.mxu0
    %v352 = vshra.s32 %v234, 4
    %v353 = vshra.s32 %v235, 4
    %v354 = vshra.s32 %v236, 4
    %v355 = vshra.s32 %v237, 4
    %v356 = vshra.s32 %v139, 4
    %vm357 = vcmp.eq.s32.totalorder %v352, %v356
    %vm358 = vcmp.eq.s32.totalorder %v353, %v356
    %vm359 = vcmp.eq.s32.totalorder %v354, %v356
    %vm360 = vcmp.eq.s32.totalorder %v355, %v356
    %v361 = vsel %vm357, 0.0, -1e+30
    %v362 = vsel %vm358, 0.0, -1e+30
    %v363 = vsel %vm359, 0.0, -1e+30
    %v364 = vsel %vm360, 0.0, -1e+30
    %v365 = vld [vmem:[%s4] sm:$0xff]
    %v366 = vld [vmem:[%s3] sm:$0xf]
    %v367 = vld [vmem:[%s3 + $0x8] sm:$0xf]
    %v368 = vld [vmem:[%s3 + $0x10] sm:$0xf]
    %v369 = vld [vmem:[%s3 + $0x18] sm:$0xf]
    %v370 = vld [vmem:[%s3 + $0x4] sm:$0xf]
    %v371 = vld [vmem:[%s3 + $0xc] sm:$0xf]
    %v372 = vld [vmem:[%s3 + $0x14] sm:$0xf]
    %v373 = vld [vmem:[%s3 + $0x1c] sm:$0xf]
    %vm374 = vcmask 261120
    %v375 = vsel %vm374, %v343, 0.0
    %376 = vadd.xlane.f32.xlu0 %v375
    %v377 = vpop.xlane.xlu0 %376
    %v378 = vsel %vm374, %v345, 0.0
    %379 = vadd.xlane.f32.xlu0 %v378
    %v380 = vpop.xlane.xlu0 %379
    %v381 = vsel %vm374, %v348, 0.0
    %382 = vadd.xlane.f32.xlu0 %v381
    %v383 = vpop.xlane.xlu0 %382
    %v384 = vsel %vm374, %v350, 0.0
    %385 = vadd.xlane.f32.xlu0 %v384
    %v386 = vpop.xlane.xlu0 %385
    %v387 = vrcp.pop 32.0
    %v388 = vmul.f32 32.0, %v387
    %v389 = vsub.f32 1.0, %v388
    %v390 = vmul.f32 %v387, %v389
    %v391 = vadd.f32 %v387, %v390
    %vm392 = vweird.f32 %v387
    %v393 = vsel %vm392, %v387, %v391
    %v394 = vmul.f32 %v377, %v393
    %v395 = vmul.f32 %v380, %v393
    %v396 = vmul.f32 %v383, %v393
    %v397 = vmul.f32 %v386, %v393
    %v398 = vsub.f32 %v343, %v394
    %v399 = vsub.f32 %v345, %v395
    %v400 = vsub.f32 %v348, %v396
    %v401 = vsub.f32 %v350, %v397
    %v402 = vmul.f32 %v398, %v398
    %v403 = vmul.f32 %v399, %v399
    %v404 = vmul.f32 %v400, %v400
    %v405 = vmul.f32 %v401, %v401
    %v406 = vsel %vm374, %v402, 0.0
    %407 = vadd.xlane.f32.xlu0 %v406
    %v408 = vpop.xlane.xlu0 %407
    %v409 = vsel %vm374, %v403, 0.0
    %410 = vadd.xlane.f32.xlu0 %v409
    %v411 = vpop.xlane.xlu0 %410
    %v412 = vsel %vm374, %v404, 0.0
    %413 = vadd.xlane.f32.xlu0 %v412
    %v414 = vpop.xlane.xlu0 %413
    %v415 = vsel %vm374, %v405, 0.0
    %416 = vadd.xlane.f32.xlu0 %v415
    %v417 = vpop.xlane.xlu0 %416
    %v418 = vmul.f32 %v408, %v393
    %v419 = vmul.f32 %v411, %v393
    %v420 = vmul.f32 %v414, %v393
    %v421 = vmul.f32 %v417, %v393
    %v422 = vadd.f32 %v418, 1e-05
    %v423 = vadd.f32 %v419, 1e-05
    %v424 = vadd.f32 %v420, 1e-05
    %v425 = vadd.f32 %v421, 1e-05
    %v426 = vrsqrt.pop %v422
    %v427 = vmul.f32 %v426, %v422
    %v428 = vmul.f32 %v427, %v426
    %v429 = vmul.f32 0.5, %v428
    %v430 = vsub.f32 1.5, %v429
    %v431 = vmul.f32 %v426, %v430
    %vm432 = vweird.f32 %v422
    %vm433 = vweird.f32 %v426
    %vm434 = vmor %vm432, %vm433
    %v435 = vsel %vm434, %v426, %v431
    %v436 = vrsqrt.pop %v423
    %v437 = vmul.f32 %v436, %v423
    %v438 = vmul.f32 %v437, %v436
    %v439 = vmul.f32 0.5, %v438
    %v440 = vsub.f32 1.5, %v439
    %v441 = vmul.f32 %v436, %v440
    %vm442 = vweird.f32 %v423
    %vm443 = vweird.f32 %v436
    %vm444 = vmor %vm442, %vm443
    %v445 = vsel %vm444, %v436, %v441
    %v446 = vrsqrt.pop %v424
    %v447 = vmul.f32 %v446, %v424
    %v448 = vmul.f32 %v447, %v446
    %v449 = vmul.f32 0.5, %v448
    %v450 = vsub.f32 1.5, %v449
    %v451 = vmul.f32 %v446, %v450
    %vm452 = vweird.f32 %v424
    %vm453 = vweird.f32 %v446
    %vm454 = vmor %vm452, %vm453
    %v455 = vsel %vm454, %v446, %v451
    %v456 = vrsqrt.pop %v425
    %v457 = vmul.f32 %v456, %v425
    %v458 = vmul.f32 %v457, %v456
    %v459 = vmul.f32 0.5, %v458
    %v460 = vsub.f32 1.5, %v459
    %v461 = vmul.f32 %v456, %v460
    %vm462 = vweird.f32 %v425
    %vm463 = vweird.f32 %v456
    %vm464 = vmor %vm462, %vm463
    %v465 = vsel %vm464, %v456, %v461
    %v466 = vmul.f32 %v398, %v435
    %v467 = vmul.f32 %v399, %v445
    %v468 = vmul.f32 %v400, %v455
    %v469 = vmul.f32 %v401, %v465
    %v470 = vperm.slane %v365, 0
    %v471 = vmul.f32 %v466, %v470
    %v472 = vmul.f32 %v467, %v470
    %v473 = vmul.f32 %v468, %v470
    %v474 = vmul.f32 %v469, %v470
    %v475 = vperm.slane %v365, 1
    %v476 = vadd.f32 %v471, %v475
    %v477 = vadd.f32 %v472, %v475
    %v478 = vadd.f32 %v473, %v475
    %v479 = vadd.f32 %v474, %v475
    %v480 = vpack.c.bf16 %v477, %v476
    %v481 = vpack.c.bf16 %v479, %v478
    %v482 = vperm.slane %v365, 4
    %v487 = vunpack.c.l.b16 %v366
    %v488 = vunpack.c.l.b16 %v367
    %v489 = vunpack.c.l.b16 %v368
    %v490 = vunpack.c.l.b16 %v369
    %v491 = vpack.c.b16 %v488, %v487
    %v492 = vpack.c.b16 %v490, %v489
    %v496 = vsel %vm374, %v480, 0
    %v499 = vsel %vm374, %v481, 0
    %501 = vmatpush.bf16.msra.mxu0 0
    %502 = vmatpush.bf16.msra.mxu0 0
    %503 = vmatpush.bf16.msra.mxu0 0
    %504 = vmatpush.bf16.msra.mxu0 0
    %505 = vmatpush.bf16.msra.mxu0 0
    %506 = vmatpush.bf16.msra.mxu0 0
    %507 = vmatpush.bf16.msra.mxu0 %v492
    %508 = vmatpush.bf16.msra.mxu0 %v491
    %509 = vmatmul.bf16.gmra.mxu0 %v496
    %v510 = vpop.f32.mrf.mxu0
    %v511 = vadd.f32 %v482, %v510
    %v512 = vpop.f32.mrf.mxu0
    %v513 = vadd.f32 %v482, %v512
    %514 = vmatmul.bf16.gmra.mxu0 %v499
    %v515 = vpop.f32.mrf.mxu0
    %v516 = vadd.f32 %v482, %v515
    %v517 = vpop.f32.mrf.mxu0
    %v518 = vadd.f32 %v482, %v517
    %519 = vdwg.mxu0
    %v520 = vpack.c.bf16 %v513, %v511
    %v521 = vpack.c.bf16 %v518, %v516
    %524 = vrot.lane.b32.xlu0 %v520, 96
    %v525 = vpop.permute.xlu0 %524
    %526 = vrot.lane.b32.xlu0 %v521, 96
    %v527 = vpop.permute.xlu0 %526
    %vm528 = vcmask 64512
    %v530 = vsel %vm528, %v520, 0
    %v533 = vsel %vm528, %v521, 0
    %v536 = vsel %vm528, %v525, 0
    %v539 = vsel %vm528, %v527, 0
    %541 = vmatpush.bf16.xpose.msra.mxu0 0
    %542 = vmatpush.bf16.xpose.msra.mxu0 0
    %543 = vmatpush.bf16.xpose.msra.mxu0 0
    %544 = vmatpush.bf16.xpose.msra.mxu0 0
    %545 = vmatpush.bf16.xpose.msra.mxu0 0
    %546 = vmatpush.bf16.xpose.msra.mxu0 0
    %547 = vmatpush.bf16.xpose.msra.mxu0 %v539
    %548 = vmatpush.bf16.xpose.msra.mxu0 %v536
    %549 = vmatmul.bf16.gmra.mxu0 %v530
    %v550 = vpop.f32.mrf.mxu0
    %v551 = vadd.f32 0.0, %v550
    %v552 = vpop.f32.mrf.mxu0
    %v553 = vadd.f32 0.0, %v552
    %554 = vmatmul.bf16.gmra.mxu0 %v533
    %v555 = vpop.f32.mrf.mxu0
    %v556 = vadd.f32 0.0, %v555
    %v557 = vpop.f32.mrf.mxu0
    %v558 = vadd.f32 0.0, %v557
    %559 = vdwg.mxu0
    %v560 = vmul.f32 %v551, 0.35355338
    %v561 = vmul.f32 %v553, 0.35355338
    %v562 = vmul.f32 %v556, 0.35355338
    %v563 = vmul.f32 %v558, 0.35355338
    %v564 = vadd.f32 %v560, %v361
    %v565 = vadd.f32 %v561, %v362
    %v566 = vadd.f32 %v562, %v363
    %v567 = vadd.f32 %v563, %v364
    %v568 = vsel %vm374, %v564, -inf
    %569 = vmax.xlane.f32.xlu0 %v568
    %v570 = vpop.xlane.xlu0 %569
    %v571 = vsel %vm374, %v565, -inf
    %572 = vmax.xlane.f32.xlu0 %v571
    %v573 = vpop.xlane.xlu0 %572
    %v574 = vsel %vm374, %v566, -inf
    %575 = vmax.xlane.f32.xlu0 %v574
    %v576 = vpop.xlane.xlu0 %575
    %v577 = vsel %vm374, %v567, -inf
    %578 = vmax.xlane.f32.xlu0 %v577
    %v579 = vpop.xlane.xlu0 %578
    %v580 = vsub.f32 %v564, %v570
    %v581 = vsub.f32 %v565, %v573
    %v582 = vsub.f32 %v566, %v576
    %v583 = vsub.f32 %v567, %v579
    %v584 = vmul.f32 %v580, 1.442695
    %v585 = vpow.pop %v584
    %v586 = vmul.f32 %v581, 1.442695
    %v587 = vpow.pop %v586
    %v588 = vmul.f32 %v582, 1.442695
    %v589 = vpow.pop %v588
    %v590 = vmul.f32 %v583, 1.442695
    %v591 = vpow.pop %v590
    %v592 = vsel %vm374, %v585, 0.0
    %593 = vadd.xlane.f32.xlu0 %v592
    %v594 = vpop.xlane.xlu0 %593
    %v595 = vsel %vm374, %v587, 0.0
    %596 = vadd.xlane.f32.xlu0 %v595
    %v597 = vpop.xlane.xlu0 %596
    %v598 = vsel %vm374, %v589, 0.0
    %599 = vadd.xlane.f32.xlu0 %v598
    %v600 = vpop.xlane.xlu0 %599
    %v601 = vsel %vm374, %v591, 0.0
    %602 = vadd.xlane.f32.xlu0 %v601
    %v603 = vpop.xlane.xlu0 %602
    %v604 = vrcp.pop %v594
    %v605 = vrcp.pop %v597
    %v606 = vrcp.pop %v600
    %v607 = vrcp.pop %v603
    %v608 = vmul.f32 %v585, %v604
    %v609 = vmul.f32 %v587, %v605
    %v610 = vmul.f32 %v589, %v606
    %v611 = vmul.f32 %v591, %v607
    %v612 = vpack.c.bf16 %v609, %v608
    %v613 = vpack.c.bf16 %v611, %v610
    %614 = vrot.lane.b32.xlu0 %v520, 64
    %v615 = vpop.permute.xlu0 %614
    %616 = vrot.lane.b32.xlu0 %v521, 64
    %v617 = vpop.permute.xlu0 %616
    %v621 = vsel %vm374, %v612, 0
    %v624 = vsel %vm374, %v613, 0
    %626 = vmatpush.bf16.msra.mxu0 0
    %627 = vmatpush.bf16.msra.mxu0 0
    %628 = vmatpush.bf16.msra.mxu0 0
    %629 = vmatpush.bf16.msra.mxu0 0
    %630 = vmatpush.bf16.msra.mxu0 0
    %631 = vmatpush.bf16.msra.mxu0 0
    %632 = vmatpush.bf16.msra.mxu0 %v617
    %633 = vmatpush.bf16.msra.mxu0 %v615
    %634 = vmatmul.bf16.gmra.mxu0 %v621
    %v635 = vpop.f32.mrf.mxu0
    %v636 = vadd.f32 0.0, %v635
    %v637 = vpop.f32.mrf.mxu0
    %v638 = vadd.f32 0.0, %v637
    %639 = vmatmul.bf16.gmra.mxu0 %v624
    %v640 = vpop.f32.mrf.mxu0
    %v641 = vadd.f32 0.0, %v640
    %v642 = vpop.f32.mrf.mxu0
    %v643 = vadd.f32 0.0, %v642
    %644 = vdwg.mxu0
    %645 = vrot.lane.b32.xlu0 %v520, 120
    %v646 = vpop.permute.xlu0 %645
    %647 = vrot.lane.b32.xlu0 %v521, 120
    %v648 = vpop.permute.xlu0 %647
    %649 = vrot.lane.b32.xlu0 %v520, 88
    %v650 = vpop.permute.xlu0 %649
    %651 = vrot.lane.b32.xlu0 %v521, 88
    %v652 = vpop.permute.xlu0 %651
    %v654 = vsel %vm528, %v646, 0
    %v657 = vsel %vm528, %v648, 0
    %v660 = vsel %vm528, %v650, 0
    %v663 = vsel %vm528, %v652, 0
    %665 = vmatpush.bf16.xpose.msra.mxu0 0
    %666 = vmatpush.bf16.xpose.msra.mxu0 0
    %667 = vmatpush.bf16.xpose.msra.mxu0 0
    %668 = vmatpush.bf16.xpose.msra.mxu0 0
    %669 = vmatpush.bf16.xpose.msra.mxu0 0
    %670 = vmatpush.bf16.xpose.msra.mxu0 0
    %671 = vmatpush.bf16.xpose.msra.mxu0 %v663
    %672 = vmatpush.bf16.xpose.msra.mxu0 %v660
    %673 = vmatmul.bf16.gmra.mxu0 %v654
    %v674 = vpop.f32.mrf.mxu0
    %v675 = vadd.f32 0.0, %v674
    %v676 = vpop.f32.mrf.mxu0
    %v677 = vadd.f32 0.0, %v676
    %678 = vmatmul.bf16.gmra.mxu0 %v657
    %v679 = vpop.f32.mrf.mxu0
    %v680 = vadd.f32 0.0, %v679
    %v681 = vpop.f32.mrf.mxu0
    %v682 = vadd.f32 0.0, %v681
    %683 = vdwg.mxu0
    %v684 = vmul.f32 %v675, 0.35355338
    %v685 = vmul.f32 %v677, 0.35355338
    %v686 = vmul.f32 %v680, 0.35355338
    %v687 = vmul.f32 %v682, 0.35355338
    %v688 = vadd.f32 %v684, %v361
    %v689 = vadd.f32 %v685, %v362
    %v690 = vadd.f32 %v686, %v363
    %v691 = vadd.f32 %v687, %v364
    %v692 = vsel %vm374, %v688, -inf
    %693 = vmax.xlane.f32.xlu0 %v692
    %v694 = vpop.xlane.xlu0 %693
    %v695 = vsel %vm374, %v689, -inf
    %696 = vmax.xlane.f32.xlu0 %v695
    %v697 = vpop.xlane.xlu0 %696
    %v698 = vsel %vm374, %v690, -inf
    %699 = vmax.xlane.f32.xlu0 %v698
    %v700 = vpop.xlane.xlu0 %699
    %v701 = vsel %vm374, %v691, -inf
    %702 = vmax.xlane.f32.xlu0 %v701
    %v703 = vpop.xlane.xlu0 %702
    %v704 = vsub.f32 %v688, %v694
    %v705 = vsub.f32 %v689, %v697
    %v706 = vsub.f32 %v690, %v700
    %v707 = vsub.f32 %v691, %v703
    %v708 = vmul.f32 %v704, 1.442695
    %v709 = vpow.pop %v708
    %v710 = vmul.f32 %v705, 1.442695
    %v711 = vpow.pop %v710
    %v712 = vmul.f32 %v706, 1.442695
    %v713 = vpow.pop %v712
    %v714 = vmul.f32 %v707, 1.442695
    %v715 = vpow.pop %v714
    %v716 = vsel %vm374, %v709, 0.0
    %717 = vadd.xlane.f32.xlu0 %v716
    %v718 = vpop.xlane.xlu0 %717
    %v719 = vsel %vm374, %v711, 0.0
    %720 = vadd.xlane.f32.xlu0 %v719
    %v721 = vpop.xlane.xlu0 %720
    %v722 = vsel %vm374, %v713, 0.0
    %723 = vadd.xlane.f32.xlu0 %v722
    %v724 = vpop.xlane.xlu0 %723
    %v725 = vsel %vm374, %v715, 0.0
    %726 = vadd.xlane.f32.xlu0 %v725
    %v727 = vpop.xlane.xlu0 %726
    %v728 = vrcp.pop %v718
    %v729 = vrcp.pop %v721
    %v730 = vrcp.pop %v724
    %v731 = vrcp.pop %v727
    %v732 = vmul.f32 %v709, %v728
    %v733 = vmul.f32 %v711, %v729
    %v734 = vmul.f32 %v713, %v730
    %v735 = vmul.f32 %v715, %v731
    %v736 = vpack.c.bf16 %v733, %v732
    %v737 = vpack.c.bf16 %v735, %v734
    %738 = vrot.lane.b32.xlu0 %v520, 56
    %v739 = vpop.permute.xlu0 %738
    %740 = vrot.lane.b32.xlu0 %v521, 56
    %v741 = vpop.permute.xlu0 %740
    %v745 = vsel %vm374, %v736, 0
    %v748 = vsel %vm374, %v737, 0
    %750 = vmatpush.bf16.msra.mxu0 0
    %751 = vmatpush.bf16.msra.mxu0 0
    %752 = vmatpush.bf16.msra.mxu0 0
    %753 = vmatpush.bf16.msra.mxu0 0
    %754 = vmatpush.bf16.msra.mxu0 0
    %755 = vmatpush.bf16.msra.mxu0 0
    %756 = vmatpush.bf16.msra.mxu0 %v741
    %757 = vmatpush.bf16.msra.mxu0 %v739
    %758 = vmatmul.bf16.gmra.mxu0 %v745
    %v759 = vpop.f32.mrf.mxu0
    %v760 = vadd.f32 0.0, %v759
    %v761 = vpop.f32.mrf.mxu0
    %v762 = vadd.f32 0.0, %v761
    %763 = vmatmul.bf16.gmra.mxu0 %v748
    %v764 = vpop.f32.mrf.mxu0
    %v765 = vadd.f32 0.0, %v764
    %v766 = vpop.f32.mrf.mxu0
    %v767 = vadd.f32 0.0, %v766
    %768 = vdwg.mxu0
    %769 = vrot.lane.b32.xlu0 %v520, 112
    %v770 = vpop.permute.xlu0 %769
    %771 = vrot.lane.b32.xlu0 %v521, 112
    %v772 = vpop.permute.xlu0 %771
    %773 = vrot.lane.b32.xlu0 %v520, 80
    %v774 = vpop.permute.xlu0 %773
    %775 = vrot.lane.b32.xlu0 %v521, 80
    %v776 = vpop.permute.xlu0 %775
    %v778 = vsel %vm528, %v770, 0
    %v781 = vsel %vm528, %v772, 0
    %v784 = vsel %vm528, %v774, 0
    %v787 = vsel %vm528, %v776, 0
    %789 = vmatpush.bf16.xpose.msra.mxu0 0
    %790 = vmatpush.bf16.xpose.msra.mxu0 0
    %791 = vmatpush.bf16.xpose.msra.mxu0 0
    %792 = vmatpush.bf16.xpose.msra.mxu0 0
    %793 = vmatpush.bf16.xpose.msra.mxu0 0
    %794 = vmatpush.bf16.xpose.msra.mxu0 0
    %795 = vmatpush.bf16.xpose.msra.mxu0 %v787
    %796 = vmatpush.bf16.xpose.msra.mxu0 %v784
    %797 = vmatmul.bf16.gmra.mxu0 %v778
    %v798 = vpop.f32.mrf.mxu0
    %v799 = vadd.f32 0.0, %v798
    %v800 = vpop.f32.mrf.mxu0
    %v801 = vadd.f32 0.0, %v800
    %802 = vmatmul.bf16.gmra.mxu0 %v781
    %v803 = vpop.f32.mrf.mxu0
    %v804 = vadd.f32 0.0, %v803
    %v805 = vpop.f32.mrf.mxu0
    %v806 = vadd.f32 0.0, %v805
    %807 = vdwg.mxu0
    %v808 = vmul.f32 %v799, 0.35355338
    %v809 = vmul.f32 %v801, 0.35355338
    %v810 = vmul.f32 %v804, 0.35355338
    %v811 = vmul.f32 %v806, 0.35355338
    %v812 = vadd.f32 %v808, %v361
    %v813 = vadd.f32 %v809, %v362
    %v814 = vadd.f32 %v810, %v363
    %v815 = vadd.f32 %v811, %v364
    %v816 = vsel %vm374, %v812, -inf
    %817 = vmax.xlane.f32.xlu0 %v816
    %v818 = vpop.xlane.xlu0 %817
    %v819 = vsel %vm374, %v813, -inf
    %820 = vmax.xlane.f32.xlu0 %v819
    %v821 = vpop.xlane.xlu0 %820
    %v822 = vsel %vm374, %v814, -inf
    %823 = vmax.xlane.f32.xlu0 %v822
    %v824 = vpop.xlane.xlu0 %823
    %v825 = vsel %vm374, %v815, -inf
    %826 = vmax.xlane.f32.xlu0 %v825
    %v827 = vpop.xlane.xlu0 %826
    %v828 = vsub.f32 %v812, %v818
    %v829 = vsub.f32 %v813, %v821
    %v830 = vsub.f32 %v814, %v824
    %v831 = vsub.f32 %v815, %v827
    %v832 = vmul.f32 %v828, 1.442695
    %v833 = vpow.pop %v832
    %v834 = vmul.f32 %v829, 1.442695
    %v835 = vpow.pop %v834
    %v836 = vmul.f32 %v830, 1.442695
    %v837 = vpow.pop %v836
    %v838 = vmul.f32 %v831, 1.442695
    %v839 = vpow.pop %v838
    %v840 = vsel %vm374, %v833, 0.0
    %841 = vadd.xlane.f32.xlu0 %v840
    %v842 = vpop.xlane.xlu0 %841
    %v843 = vsel %vm374, %v835, 0.0
    %844 = vadd.xlane.f32.xlu0 %v843
    %v845 = vpop.xlane.xlu0 %844
    %v846 = vsel %vm374, %v837, 0.0
    %847 = vadd.xlane.f32.xlu0 %v846
    %v848 = vpop.xlane.xlu0 %847
    %v849 = vsel %vm374, %v839, 0.0
    %850 = vadd.xlane.f32.xlu0 %v849
    %v851 = vpop.xlane.xlu0 %850
    %v852 = vrcp.pop %v842
    %v853 = vrcp.pop %v845
    %v854 = vrcp.pop %v848
    %v855 = vrcp.pop %v851
    %v856 = vmul.f32 %v833, %v852
    %v857 = vmul.f32 %v835, %v853
    %v858 = vmul.f32 %v837, %v854
    %v859 = vmul.f32 %v839, %v855
    %v860 = vpack.c.bf16 %v857, %v856
    %v861 = vpack.c.bf16 %v859, %v858
    %862 = vrot.lane.b32.xlu0 %v520, 48
    %v863 = vpop.permute.xlu0 %862
    %864 = vrot.lane.b32.xlu0 %v521, 48
    %v865 = vpop.permute.xlu0 %864
    %v869 = vsel %vm374, %v860, 0
    %v872 = vsel %vm374, %v861, 0
    %874 = vmatpush.bf16.msra.mxu0 0
    %875 = vmatpush.bf16.msra.mxu0 0
    %876 = vmatpush.bf16.msra.mxu0 0
    %877 = vmatpush.bf16.msra.mxu0 0
    %878 = vmatpush.bf16.msra.mxu0 0
    %879 = vmatpush.bf16.msra.mxu0 0
    %880 = vmatpush.bf16.msra.mxu0 %v865
    %881 = vmatpush.bf16.msra.mxu0 %v863
    %882 = vmatmul.bf16.gmra.mxu0 %v869
    %v883 = vpop.f32.mrf.mxu0
    %v884 = vadd.f32 0.0, %v883
    %v885 = vpop.f32.mrf.mxu0
    %v886 = vadd.f32 0.0, %v885
    %887 = vmatmul.bf16.gmra.mxu0 %v872
    %v888 = vpop.f32.mrf.mxu0
    %v889 = vadd.f32 0.0, %v888
    %v890 = vpop.f32.mrf.mxu0
    %v891 = vadd.f32 0.0, %v890
    %892 = vdwg.mxu0
    %893 = vrot.lane.b32.xlu0 %v520, 104
    %v894 = vpop.permute.xlu0 %893
    %895 = vrot.lane.b32.xlu0 %v521, 104
    %v896 = vpop.permute.xlu0 %895
    %897 = vrot.lane.b32.xlu0 %v520, 72
    %v898 = vpop.permute.xlu0 %897
    %899 = vrot.lane.b32.xlu0 %v521, 72
    %v900 = vpop.permute.xlu0 %899
    %v902 = vsel %vm528, %v894, 0
    %v905 = vsel %vm528, %v896, 0
    %v908 = vsel %vm528, %v898, 0
    %v911 = vsel %vm528, %v900, 0
    %913 = vmatpush.bf16.xpose.msra.mxu0 0
    %914 = vmatpush.bf16.xpose.msra.mxu0 0
    %915 = vmatpush.bf16.xpose.msra.mxu0 0
    %916 = vmatpush.bf16.xpose.msra.mxu0 0
    %917 = vmatpush.bf16.xpose.msra.mxu0 0
    %918 = vmatpush.bf16.xpose.msra.mxu0 0
    %919 = vmatpush.bf16.xpose.msra.mxu0 %v911
    %920 = vmatpush.bf16.xpose.msra.mxu0 %v908
    %921 = vmatmul.bf16.gmra.mxu0 %v902
    %v922 = vpop.f32.mrf.mxu0
    %v923 = vadd.f32 0.0, %v922
    %v924 = vpop.f32.mrf.mxu0
    %v925 = vadd.f32 0.0, %v924
    %926 = vmatmul.bf16.gmra.mxu0 %v905
    %v927 = vpop.f32.mrf.mxu0
    %v928 = vadd.f32 0.0, %v927
    %v929 = vpop.f32.mrf.mxu0
    %v930 = vadd.f32 0.0, %v929
    %931 = vdwg.mxu0
    %v932 = vmul.f32 %v923, 0.35355338
    %v933 = vmul.f32 %v925, 0.35355338
    %v934 = vmul.f32 %v928, 0.35355338
    %v935 = vmul.f32 %v930, 0.35355338
    %v936 = vadd.f32 %v932, %v361
    %v937 = vadd.f32 %v933, %v362
    %v938 = vadd.f32 %v934, %v363
    %v939 = vadd.f32 %v935, %v364
    %v940 = vsel %vm374, %v936, -inf
    %941 = vmax.xlane.f32.xlu0 %v940
    %v942 = vpop.xlane.xlu0 %941
    %v943 = vsel %vm374, %v937, -inf
    %944 = vmax.xlane.f32.xlu0 %v943
    %v945 = vpop.xlane.xlu0 %944
    %v946 = vsel %vm374, %v938, -inf
    %947 = vmax.xlane.f32.xlu0 %v946
    %v948 = vpop.xlane.xlu0 %947
    %v949 = vsel %vm374, %v939, -inf
    %950 = vmax.xlane.f32.xlu0 %v949
    %v951 = vpop.xlane.xlu0 %950
    %v952 = vsub.f32 %v936, %v942
    %v953 = vsub.f32 %v937, %v945
    %v954 = vsub.f32 %v938, %v948
    %v955 = vsub.f32 %v939, %v951
    %v956 = vmul.f32 %v952, 1.442695
    %v957 = vpow.pop %v956
    %v958 = vmul.f32 %v953, 1.442695
    %v959 = vpow.pop %v958
    %v960 = vmul.f32 %v954, 1.442695
    %v961 = vpow.pop %v960
    %v962 = vmul.f32 %v955, 1.442695
    %v963 = vpow.pop %v962
    %v964 = vsel %vm374, %v957, 0.0
    %965 = vadd.xlane.f32.xlu0 %v964
    %v966 = vpop.xlane.xlu0 %965
    %v967 = vsel %vm374, %v959, 0.0
    %968 = vadd.xlane.f32.xlu0 %v967
    %v969 = vpop.xlane.xlu0 %968
    %v970 = vsel %vm374, %v961, 0.0
    %971 = vadd.xlane.f32.xlu0 %v970
    %v972 = vpop.xlane.xlu0 %971
    %v973 = vsel %vm374, %v963, 0.0
    %974 = vadd.xlane.f32.xlu0 %v973
    %v975 = vpop.xlane.xlu0 %974
    %v976 = vrcp.pop %v966
    %v977 = vrcp.pop %v969
    %v978 = vrcp.pop %v972
    %v979 = vrcp.pop %v975
    %v980 = vmul.f32 %v957, %v976
    %v981 = vmul.f32 %v959, %v977
    %v982 = vmul.f32 %v961, %v978
    %v983 = vmul.f32 %v963, %v979
    %v984 = vpack.c.bf16 %v981, %v980
    %v985 = vpack.c.bf16 %v983, %v982
    %986 = vrot.lane.b32.xlu0 %v520, 40
    %v987 = vpop.permute.xlu0 %986
    %988 = vrot.lane.b32.xlu0 %v521, 40
    %v989 = vpop.permute.xlu0 %988
    %v993 = vsel %vm374, %v984, 0
    %v996 = vsel %vm374, %v985, 0
    %998 = vmatpush.bf16.msra.mxu0 0
    %999 = vmatpush.bf16.msra.mxu0 0
    %1000 = vmatpush.bf16.msra.mxu0 0
    %1001 = vmatpush.bf16.msra.mxu0 0
    %1002 = vmatpush.bf16.msra.mxu0 0
    %1003 = vmatpush.bf16.msra.mxu0 0
    %1004 = vmatpush.bf16.msra.mxu0 %v989
    %1005 = vmatpush.bf16.msra.mxu0 %v987
    %1006 = vmatmul.bf16.gmra.mxu0 %v993
    %v1007 = vpop.f32.mrf.mxu0
    %v1008 = vadd.f32 0.0, %v1007
    %v1009 = vpop.f32.mrf.mxu0
    %v1010 = vadd.f32 0.0, %v1009
    %1011 = vmatmul.bf16.gmra.mxu0 %v996
    %v1012 = vpop.f32.mrf.mxu0
    %v1013 = vadd.f32 0.0, %v1012
    %v1014 = vpop.f32.mrf.mxu0
    %v1015 = vadd.f32 0.0, %v1014
    %1016 = vdwg.mxu0
    %1021 = vrot.lane.b32.xlu0 %v760, 8
    %v1022 = vpop.permute.xlu0 %1021
    %1023 = vrot.lane.b32.xlu0 %v762, 8
    %v1024 = vpop.permute.xlu0 %1023
    %1025 = vrot.lane.b32.xlu0 %v765, 8
    %v1026 = vpop.permute.xlu0 %1025
    %1027 = vrot.lane.b32.xlu0 %v767, 8
    %v1028 = vpop.permute.xlu0 %1027
    %1037 = vrot.lane.b32.xlu0 %v884, 16
    %v1038 = vpop.permute.xlu0 %1037
    %1039 = vrot.lane.b32.xlu0 %v886, 16
    %v1040 = vpop.permute.xlu0 %1039
    %1041 = vrot.lane.b32.xlu0 %v889, 16
    %v1042 = vpop.permute.xlu0 %1041
    %1043 = vrot.lane.b32.xlu0 %v891, 16
    %v1044 = vpop.permute.xlu0 %1043
    %1053 = vrot.lane.b32.xlu0 %v1008, 24
    %v1054 = vpop.permute.xlu0 %1053
    %1055 = vrot.lane.b32.xlu0 %v1010, 24
    %v1056 = vpop.permute.xlu0 %1055
    %1057 = vrot.lane.b32.xlu0 %v1013, 24
    %v1058 = vpop.permute.xlu0 %1057
    %1059 = vrot.lane.b32.xlu0 %v1015, 24
    %v1060 = vpop.permute.xlu0 %1059
    %v1065 = vsel %vm528, %v636, %v1022
    %v1066 = vsel %vm528, %v638, %v1024
    %v1067 = vsel %vm528, %v641, %v1026
    %v1068 = vsel %vm528, %v643, %v1028
    %vm1069 = vcmask 130048
    %v1070 = vsel %vm1069, %v1065, %v1038
    %v1071 = vsel %vm1069, %v1066, %v1040
    %v1072 = vsel %vm1069, %v1067, %v1042
    %v1073 = vsel %vm1069, %v1068, %v1044
    %vm1074 = vcmask 195584
    %v1075 = vsel %vm1074, %v1070, %v1054
    %v1076 = vsel %vm1074, %v1071, %v1056
    %v1077 = vsel %vm1074, %v1072, %v1058
    %v1078 = vsel %vm1074, %v1073, %v1060
    %v1079 = vpack.c.bf16 %v1076, %v1075
    %v1080 = vpack.c.bf16 %v1078, %v1077
    %1081 = vrot.lane.b32.xlu0 %v491, 32
    %v1082 = vpop.permute.xlu0 %1081
    %1083 = vrot.lane.b32.xlu0 %v492, 32
    %v1084 = vpop.permute.xlu0 %1083
    %v1088 = vsel %vm374, %v1079, 0
    %v1091 = vsel %vm374, %v1080, 0
    %1093 = vmatpush.bf16.msra.mxu0 0
    %1094 = vmatpush.bf16.msra.mxu0 0
    %1095 = vmatpush.bf16.msra.mxu0 0
    %1096 = vmatpush.bf16.msra.mxu0 0
    %1097 = vmatpush.bf16.msra.mxu0 0
    %1098 = vmatpush.bf16.msra.mxu0 0
    %1099 = vmatpush.bf16.msra.mxu0 %v1084
    %1100 = vmatpush.bf16.msra.mxu0 %v1082
    %1101 = vmatmul.bf16.gmra.mxu0 %v1088
    %v1102 = vpop.f32.mrf.mxu0
    %v1103 = vadd.f32 0.0, %v1102
    %v1104 = vpop.f32.mrf.mxu0
    %v1105 = vadd.f32 0.0, %v1104
    %1106 = vmatmul.bf16.gmra.mxu0 %v1091
    %v1107 = vpop.f32.mrf.mxu0
    %v1108 = vadd.f32 0.0, %v1107
    %v1109 = vpop.f32.mrf.mxu0
    %v1110 = vadd.f32 0.0, %v1109
    %1111 = vdwg.mxu0
    %v1112 = vadd.f32 %v343, %v1103
    %v1113 = vadd.f32 %v345, %v1105
    %v1114 = vadd.f32 %v348, %v1108
    %v1115 = vadd.f32 %v350, %v1110
    %v1116 = vperm.slane %v365, 5
    %v1117 = vadd.f32 %v1112, %v1116
    %v1118 = vadd.f32 %v1113, %v1116
    %v1119 = vadd.f32 %v1114, %v1116
    %v1120 = vadd.f32 %v1115, %v1116
    %v1121 = vsel %vm374, %v1117, 0.0
    %1122 = vadd.xlane.f32.xlu0 %v1121
    %v1123 = vpop.xlane.xlu0 %1122
    %v1124 = vsel %vm374, %v1118, 0.0
    %1125 = vadd.xlane.f32.xlu0 %v1124
    %v1126 = vpop.xlane.xlu0 %1125
    %v1127 = vsel %vm374, %v1119, 0.0
    %1128 = vadd.xlane.f32.xlu0 %v1127
    %v1129 = vpop.xlane.xlu0 %1128
    %v1130 = vsel %vm374, %v1120, 0.0
    %1131 = vadd.xlane.f32.xlu0 %v1130
    %v1132 = vpop.xlane.xlu0 %1131
    %v1133 = vmul.f32 %v1123, %v393
    %v1134 = vmul.f32 %v1126, %v393
    %v1135 = vmul.f32 %v1129, %v393
    %v1136 = vmul.f32 %v1132, %v393
    %v1137 = vsub.f32 %v1117, %v1133
    %v1138 = vsub.f32 %v1118, %v1134
    %v1139 = vsub.f32 %v1119, %v1135
    %v1140 = vsub.f32 %v1120, %v1136
    %v1141 = vmul.f32 %v1137, %v1137
    %v1142 = vmul.f32 %v1138, %v1138
    %v1143 = vmul.f32 %v1139, %v1139
    %v1144 = vmul.f32 %v1140, %v1140
    %v1145 = vsel %vm374, %v1141, 0.0
    %1146 = vadd.xlane.f32.xlu0 %v1145
    %v1147 = vpop.xlane.xlu0 %1146
    %v1148 = vsel %vm374, %v1142, 0.0
    %1149 = vadd.xlane.f32.xlu0 %v1148
    %v1150 = vpop.xlane.xlu0 %1149
    %v1151 = vsel %vm374, %v1143, 0.0
    %1152 = vadd.xlane.f32.xlu0 %v1151
    %v1153 = vpop.xlane.xlu0 %1152
    %v1154 = vsel %vm374, %v1144, 0.0
    %1155 = vadd.xlane.f32.xlu0 %v1154
    %v1156 = vpop.xlane.xlu0 %1155
    %v1157 = vmul.f32 %v1147, %v393
    %v1158 = vmul.f32 %v1150, %v393
    %v1159 = vmul.f32 %v1153, %v393
    %v1160 = vmul.f32 %v1156, %v393
    %v1161 = vadd.f32 %v1157, 1e-05
    %v1162 = vadd.f32 %v1158, 1e-05
    %v1163 = vadd.f32 %v1159, 1e-05
    %v1164 = vadd.f32 %v1160, 1e-05
    %v1165 = vrsqrt.pop %v1161
    %v1166 = vmul.f32 %v1165, %v1161
    %v1167 = vmul.f32 %v1166, %v1165
    %v1168 = vmul.f32 0.5, %v1167
    %v1169 = vsub.f32 1.5, %v1168
    %v1170 = vmul.f32 %v1165, %v1169
    %vm1171 = vweird.f32 %v1161
    %vm1172 = vweird.f32 %v1165
    %vm1173 = vmor %vm1171, %vm1172
    %v1174 = vsel %vm1173, %v1165, %v1170
    %v1175 = vrsqrt.pop %v1162
    %v1176 = vmul.f32 %v1175, %v1162
    %v1177 = vmul.f32 %v1176, %v1175
    %v1178 = vmul.f32 0.5, %v1177
    %v1179 = vsub.f32 1.5, %v1178
    %v1180 = vmul.f32 %v1175, %v1179
    %vm1181 = vweird.f32 %v1162
    %vm1182 = vweird.f32 %v1175
    %vm1183 = vmor %vm1181, %vm1182
    %v1184 = vsel %vm1183, %v1175, %v1180
    %v1185 = vrsqrt.pop %v1163
    %v1186 = vmul.f32 %v1185, %v1163
    %v1187 = vmul.f32 %v1186, %v1185
    %v1188 = vmul.f32 0.5, %v1187
    %v1189 = vsub.f32 1.5, %v1188
    %v1190 = vmul.f32 %v1185, %v1189
    %vm1191 = vweird.f32 %v1163
    %vm1192 = vweird.f32 %v1185
    %vm1193 = vmor %vm1191, %vm1192
    %v1194 = vsel %vm1193, %v1185, %v1190
    %v1195 = vrsqrt.pop %v1164
    %v1196 = vmul.f32 %v1195, %v1164
    %v1197 = vmul.f32 %v1196, %v1195
    %v1198 = vmul.f32 0.5, %v1197
    %v1199 = vsub.f32 1.5, %v1198
    %v1200 = vmul.f32 %v1195, %v1199
    %vm1201 = vweird.f32 %v1164
    %vm1202 = vweird.f32 %v1195
    %vm1203 = vmor %vm1201, %vm1202
    %v1204 = vsel %vm1203, %v1195, %v1200
    %v1205 = vmul.f32 %v1137, %v1174
    %v1206 = vmul.f32 %v1138, %v1184
    %v1207 = vmul.f32 %v1139, %v1194
    %v1208 = vmul.f32 %v1140, %v1204
    %v1209 = vperm.slane %v365, 2
    %v1210 = vmul.f32 %v1205, %v1209
    %v1211 = vmul.f32 %v1206, %v1209
    %v1212 = vmul.f32 %v1207, %v1209
    %v1213 = vmul.f32 %v1208, %v1209
    %v1214 = vperm.slane %v365, 3
    %v1215 = vadd.f32 %v1210, %v1214
    %v1216 = vadd.f32 %v1211, %v1214
    %v1217 = vadd.f32 %v1212, %v1214
    %v1218 = vadd.f32 %v1213, %v1214
    %v1219 = vpack.c.bf16 %v1216, %v1215
    %v1220 = vpack.c.bf16 %v1218, %v1217
    %v1221 = vperm.slane %v365, 6
    %v1226 = vunpack.c.l.b16 %v370
    %v1227 = vunpack.c.l.b16 %v371
    %v1228 = vunpack.c.l.b16 %v372
    %v1229 = vunpack.c.l.b16 %v373
    %v1230 = vpack.c.b16 %v1227, %v1226
    %v1231 = vpack.c.b16 %v1229, %v1228
    %v1235 = vsel %vm374, %v1219, 0
    %v1238 = vsel %vm374, %v1220, 0
    %1240 = vmatpush.bf16.msra.mxu0 0
    %1241 = vmatpush.bf16.msra.mxu0 0
    %1242 = vmatpush.bf16.msra.mxu0 0
    %1243 = vmatpush.bf16.msra.mxu0 0
    %1244 = vmatpush.bf16.msra.mxu0 0
    %1245 = vmatpush.bf16.msra.mxu0 0
    %1246 = vmatpush.bf16.msra.mxu0 %v1231
    %1247 = vmatpush.bf16.msra.mxu0 %v1230
    %1248 = vmatmul.bf16.gmra.mxu0 %v1235
    %v1249 = vpop.f32.mrf.mxu0
    %v1250 = vadd.f32 %v1221, %v1249
    %v1251 = vpop.f32.mrf.mxu0
    %v1252 = vadd.f32 %v1221, %v1251
    %1253 = vmatmul.bf16.gmra.mxu0 %v1238
    %v1254 = vpop.f32.mrf.mxu0
    %v1255 = vadd.f32 %v1221, %v1254
    %v1256 = vpop.f32.mrf.mxu0
    %v1257 = vadd.f32 %v1221, %v1256
    %1258 = vdwg.mxu0
    %v1259 = vmul.f32 %v1250, %v1250
    %v1260 = vmul.f32 %v1252, %v1252
    %v1261 = vmul.f32 %v1255, %v1255
    %v1262 = vmul.f32 %v1257, %v1257
    %v1263 = vmul.f32 %v1250, %v1259
    %v1264 = vmul.f32 %v1252, %v1260
    %v1265 = vmul.f32 %v1255, %v1261
    %v1266 = vmul.f32 %v1257, %v1262
    %v1267 = vmul.f32 %v1263, 0.044715
    %v1268 = vmul.f32 %v1264, 0.044715
    %v1269 = vmul.f32 %v1265, 0.044715
    %v1270 = vmul.f32 %v1266, 0.044715
    %v1271 = vadd.f32 %v1250, %v1267
    %v1272 = vadd.f32 %v1252, %v1268
    %v1273 = vadd.f32 %v1255, %v1269
    %v1274 = vadd.f32 %v1257, %v1270
    %v1275 = vmul.f32 %v1271, 0.7978846
    %v1276 = vmul.f32 %v1272, 0.7978846
    %v1277 = vmul.f32 %v1273, 0.7978846
    %v1278 = vmul.f32 %v1274, 0.7978846
    %v1279 = vtanh.pop %v1275
    %v1280 = vtanh.pop %v1276
    %v1281 = vtanh.pop %v1277
    %v1282 = vtanh.pop %v1278
    %v1283 = vadd.f32 %v1279, 1.0
    %v1284 = vadd.f32 %v1280, 1.0
    %v1285 = vadd.f32 %v1281, 1.0
    %v1286 = vadd.f32 %v1282, 1.0
    %v1287 = vmul.f32 %v1283, 0.5
    %v1288 = vmul.f32 %v1284, 0.5
    %v1289 = vmul.f32 %v1285, 0.5
    %v1290 = vmul.f32 %v1286, 0.5
    %v1291 = vmul.f32 %v1250, %v1287
    %v1292 = vmul.f32 %v1252, %v1288
    %v1293 = vmul.f32 %v1255, %v1289
    %v1294 = vmul.f32 %v1257, %v1290
    %v1295 = vpack.c.bf16 %v1292, %v1291
    %v1296 = vpack.c.bf16 %v1294, %v1293
    %v1297 = vld [vmem:[%s5] sm:$0xf]
    %v1298 = vld [vmem:[%s5 + $0x4] sm:$0xf]
    %v1299 = vld [vmem:[%s5 + $0x8] sm:$0xf]
    %v1300 = vld [vmem:[%s5 + $0xc] sm:$0xf]
    %v1301 = vld [vmem:[%s5 + $0x10] sm:$0xf]
    %v1302 = vld [vmem:[%s5 + $0x14] sm:$0xf]
    %v1303 = vld [vmem:[%s5 + $0x18] sm:$0xf]
    %v1304 = vld [vmem:[%s5 + $0x1c] sm:$0xf]
    %v1305 = vld [vmem:[%s5 + $0x20] sm:$0xf]
    %v1306 = vld [vmem:[%s5 + $0x24] sm:$0xf]
    %v1307 = vld [vmem:[%s5 + $0x28] sm:$0xf]
    %v1308 = vld [vmem:[%s5 + $0x2c] sm:$0xf]
    %v1309 = vld [vmem:[%s5 + $0x30] sm:$0xf]
    %v1310 = vld [vmem:[%s5 + $0x34] sm:$0xf]
    %v1311 = vld [vmem:[%s5 + $0x38] sm:$0xf]
    %v1312 = vld [vmem:[%s5 + $0x3c] sm:$0xf]
    %v1329 = vunpack.c.l.b16 %v1297
    %v1330 = vunpack.c.l.b16 %v1298
    %v1331 = vunpack.c.l.b16 %v1299
    %v1332 = vunpack.c.l.b16 %v1300
    %v1333 = vunpack.c.l.b16 %v1301
    %v1334 = vunpack.c.l.b16 %v1302
    %v1335 = vunpack.c.l.b16 %v1303
    %v1336 = vunpack.c.l.b16 %v1304
    %v1337 = vunpack.c.l.b16 %v1305
    %v1338 = vunpack.c.l.b16 %v1306
    %v1339 = vunpack.c.l.b16 %v1307
    %v1340 = vunpack.c.l.b16 %v1308
    %v1341 = vunpack.c.l.b16 %v1309
    %v1342 = vunpack.c.l.b16 %v1310
    %v1343 = vunpack.c.l.b16 %v1311
    %v1344 = vunpack.c.l.b16 %v1312
    %v1345 = vpack.c.b16 %v1330, %v1329
    %v1346 = vpack.c.b16 %v1332, %v1331
    %v1347 = vpack.c.b16 %v1334, %v1333
    %v1348 = vpack.c.b16 %v1336, %v1335
    %v1349 = vpack.c.b16 %v1338, %v1337
    %v1350 = vpack.c.b16 %v1340, %v1339
    %v1351 = vpack.c.b16 %v1342, %v1341
    %v1352 = vpack.c.b16 %v1344, %v1343
    %1361 = vmatpush.bf16.msra.mxu0 %v1352
    %1362 = vmatpush.bf16.msra.mxu0 %v1351
    %1363 = vmatpush.bf16.msra.mxu0 %v1350
    %1364 = vmatpush.bf16.msra.mxu0 %v1349
    %1365 = vmatpush.bf16.msra.mxu0 %v1348
    %1366 = vmatpush.bf16.msra.mxu0 %v1347
    %1367 = vmatpush.bf16.msra.mxu0 %v1346
    %1368 = vmatpush.bf16.msra.mxu0 %v1345
    %1369 = vmatmul.bf16.gmra.mxu0 %v1295
    %v1370 = vpop.f32.mrf.mxu0
    %v1371 = vadd.f32 0.0, %v1370
    %v1372 = vpop.f32.mrf.mxu0
    %v1373 = vadd.f32 0.0, %v1372
    %1374 = vmatmul.bf16.gmra.mxu0 %v1296
    %v1375 = vpop.f32.mrf.mxu0
    %v1376 = vadd.f32 0.0, %v1375
    %v1377 = vpop.f32.mrf.mxu0
    %v1378 = vadd.f32 0.0, %v1377
    %1379 = vdwg.mxu0
    %v1380 = vadd.f32 %v1117, %v1371
    %v1381 = vadd.f32 %v1118, %v1373
    %v1382 = vadd.f32 %v1119, %v1376
    %v1383 = vadd.f32 %v1120, %v1378
    %v1384 = vperm.slane %v365, 7
    %v1385 = vadd.f32 %v1380, %v1384
    %v1386 = vadd.f32 %v1381, %v1384
    %v1387 = vadd.f32 %v1382, %v1384
    %v1388 = vadd.f32 %v1383, %v1384
    %s1389 = scalar_lea.vmem %s4, 8
    %v1390 = vld [vmem:[%s1389] sm:$0xff]
    %s1391 = scalar_lea.vmem %s3, 32
    %v1392 = vld [vmem:[%s1391] sm:$0xf]
    %v1393 = vld [vmem:[%s1391 + $0x8] sm:$0xf]
    %v1394 = vld [vmem:[%s1391 + $0x10] sm:$0xf]
    %v1395 = vld [vmem:[%s1391 + $0x18] sm:$0xf]
    %v1396 = vld [vmem:[%s1391 + $0x4] sm:$0xf]
    %v1397 = vld [vmem:[%s1391 + $0xc] sm:$0xf]
    %v1398 = vld [vmem:[%s1391 + $0x14] sm:$0xf]
    %v1399 = vld [vmem:[%s1391 + $0x1c] sm:$0xf]
    %v1400 = vsel %vm374, %v1385, 0.0
    %1401 = vadd.xlane.f32.xlu0 %v1400
    %v1402 = vpop.xlane.xlu0 %1401
    %v1403 = vsel %vm374, %v1386, 0.0
    %1404 = vadd.xlane.f32.xlu0 %v1403
    %v1405 = vpop.xlane.xlu0 %1404
    %v1406 = vsel %vm374, %v1387, 0.0
    %1407 = vadd.xlane.f32.xlu0 %v1406
    %v1408 = vpop.xlane.xlu0 %1407
    %v1409 = vsel %vm374, %v1388, 0.0
    %1410 = vadd.xlane.f32.xlu0 %v1409
    %v1411 = vpop.xlane.xlu0 %1410
    %v1412 = vmul.f32 %v1402, %v393
    %v1413 = vmul.f32 %v1405, %v393
    %v1414 = vmul.f32 %v1408, %v393
    %v1415 = vmul.f32 %v1411, %v393
    %v1416 = vsub.f32 %v1385, %v1412
    %v1417 = vsub.f32 %v1386, %v1413
    %v1418 = vsub.f32 %v1387, %v1414
    %v1419 = vsub.f32 %v1388, %v1415
    %v1420 = vmul.f32 %v1416, %v1416
    %v1421 = vmul.f32 %v1417, %v1417
    %v1422 = vmul.f32 %v1418, %v1418
    %v1423 = vmul.f32 %v1419, %v1419
    %v1424 = vsel %vm374, %v1420, 0.0
    %1425 = vadd.xlane.f32.xlu0 %v1424
    %v1426 = vpop.xlane.xlu0 %1425
    %v1427 = vsel %vm374, %v1421, 0.0
    %1428 = vadd.xlane.f32.xlu0 %v1427
    %v1429 = vpop.xlane.xlu0 %1428
    %v1430 = vsel %vm374, %v1422, 0.0
    %1431 = vadd.xlane.f32.xlu0 %v1430
    %v1432 = vpop.xlane.xlu0 %1431
    %v1433 = vsel %vm374, %v1423, 0.0
    %1434 = vadd.xlane.f32.xlu0 %v1433
    %v1435 = vpop.xlane.xlu0 %1434
    %v1436 = vmul.f32 %v1426, %v393
    %v1437 = vmul.f32 %v1429, %v393
    %v1438 = vmul.f32 %v1432, %v393
    %v1439 = vmul.f32 %v1435, %v393
    %v1440 = vadd.f32 %v1436, 1e-05
    %v1441 = vadd.f32 %v1437, 1e-05
    %v1442 = vadd.f32 %v1438, 1e-05
    %v1443 = vadd.f32 %v1439, 1e-05
    %v1444 = vrsqrt.pop %v1440
    %v1445 = vmul.f32 %v1444, %v1440
    %v1446 = vmul.f32 %v1445, %v1444
    %v1447 = vmul.f32 0.5, %v1446
    %v1448 = vsub.f32 1.5, %v1447
    %v1449 = vmul.f32 %v1444, %v1448
    %vm1450 = vweird.f32 %v1440
    %vm1451 = vweird.f32 %v1444
    %vm1452 = vmor %vm1450, %vm1451
    %v1453 = vsel %vm1452, %v1444, %v1449
    %v1454 = vrsqrt.pop %v1441
    %v1455 = vmul.f32 %v1454, %v1441
    %v1456 = vmul.f32 %v1455, %v1454
    %v1457 = vmul.f32 0.5, %v1456
    %v1458 = vsub.f32 1.5, %v1457
    %v1459 = vmul.f32 %v1454, %v1458
    %vm1460 = vweird.f32 %v1441
    %vm1461 = vweird.f32 %v1454
    %vm1462 = vmor %vm1460, %vm1461
    %v1463 = vsel %vm1462, %v1454, %v1459
    %v1464 = vrsqrt.pop %v1442
    %v1465 = vmul.f32 %v1464, %v1442
    %v1466 = vmul.f32 %v1465, %v1464
    %v1467 = vmul.f32 0.5, %v1466
    %v1468 = vsub.f32 1.5, %v1467
    %v1469 = vmul.f32 %v1464, %v1468
    %vm1470 = vweird.f32 %v1442
    %vm1471 = vweird.f32 %v1464
    %vm1472 = vmor %vm1470, %vm1471
    %v1473 = vsel %vm1472, %v1464, %v1469
    %v1474 = vrsqrt.pop %v1443
    %v1475 = vmul.f32 %v1474, %v1443
    %v1476 = vmul.f32 %v1475, %v1474
    %v1477 = vmul.f32 0.5, %v1476
    %v1478 = vsub.f32 1.5, %v1477
    %v1479 = vmul.f32 %v1474, %v1478
    %vm1480 = vweird.f32 %v1443
    %vm1481 = vweird.f32 %v1474
    %vm1482 = vmor %vm1480, %vm1481
    %v1483 = vsel %vm1482, %v1474, %v1479
    %v1484 = vmul.f32 %v1416, %v1453
    %v1485 = vmul.f32 %v1417, %v1463
    %v1486 = vmul.f32 %v1418, %v1473
    %v1487 = vmul.f32 %v1419, %v1483
    %v1488 = vperm.slane %v1390, 0
    %v1489 = vmul.f32 %v1484, %v1488
    %v1490 = vmul.f32 %v1485, %v1488
    %v1491 = vmul.f32 %v1486, %v1488
    %v1492 = vmul.f32 %v1487, %v1488
    %v1493 = vperm.slane %v1390, 1
    %v1494 = vadd.f32 %v1489, %v1493
    %v1495 = vadd.f32 %v1490, %v1493
    %v1496 = vadd.f32 %v1491, %v1493
    %v1497 = vadd.f32 %v1492, %v1493
    %v1498 = vpack.c.bf16 %v1495, %v1494
    %v1499 = vpack.c.bf16 %v1497, %v1496
    %v1500 = vperm.slane %v1390, 4
    %v1505 = vunpack.c.l.b16 %v1392
    %v1506 = vunpack.c.l.b16 %v1393
    %v1507 = vunpack.c.l.b16 %v1394
    %v1508 = vunpack.c.l.b16 %v1395
    %v1509 = vpack.c.b16 %v1506, %v1505
    %v1510 = vpack.c.b16 %v1508, %v1507
    %v1514 = vsel %vm374, %v1498, 0
    %v1517 = vsel %vm374, %v1499, 0
    %1519 = vmatpush.bf16.msra.mxu0 0
    %1520 = vmatpush.bf16.msra.mxu0 0
    %1521 = vmatpush.bf16.msra.mxu0 0
    %1522 = vmatpush.bf16.msra.mxu0 0
    %1523 = vmatpush.bf16.msra.mxu0 0
    %1524 = vmatpush.bf16.msra.mxu0 0
    %1525 = vmatpush.bf16.msra.mxu0 %v1510
    %1526 = vmatpush.bf16.msra.mxu0 %v1509
    %1527 = vmatmul.bf16.gmra.mxu0 %v1514
    %v1528 = vpop.f32.mrf.mxu0
    %v1529 = vadd.f32 %v1500, %v1528
    %v1530 = vpop.f32.mrf.mxu0
    %v1531 = vadd.f32 %v1500, %v1530
    %1532 = vmatmul.bf16.gmra.mxu0 %v1517
    %v1533 = vpop.f32.mrf.mxu0
    %v1534 = vadd.f32 %v1500, %v1533
    %v1535 = vpop.f32.mrf.mxu0
    %v1536 = vadd.f32 %v1500, %v1535
    %1537 = vdwg.mxu0
    %v1538 = vpack.c.bf16 %v1531, %v1529
    %v1539 = vpack.c.bf16 %v1536, %v1534
    %1542 = vrot.lane.b32.xlu0 %v1538, 96
    %v1543 = vpop.permute.xlu0 %1542
    %1544 = vrot.lane.b32.xlu0 %v1539, 96
    %v1545 = vpop.permute.xlu0 %1544
    %v1547 = vsel %vm528, %v1538, 0
    %v1550 = vsel %vm528, %v1539, 0
    %v1553 = vsel %vm528, %v1543, 0
    %v1556 = vsel %vm528, %v1545, 0
    %1558 = vmatpush.bf16.xpose.msra.mxu0 0
    %1559 = vmatpush.bf16.xpose.msra.mxu0 0
    %1560 = vmatpush.bf16.xpose.msra.mxu0 0
    %1561 = vmatpush.bf16.xpose.msra.mxu0 0
    %1562 = vmatpush.bf16.xpose.msra.mxu0 0
    %1563 = vmatpush.bf16.xpose.msra.mxu0 0
    %1564 = vmatpush.bf16.xpose.msra.mxu0 %v1556
    %1565 = vmatpush.bf16.xpose.msra.mxu0 %v1553
    %1566 = vmatmul.bf16.gmra.mxu0 %v1547
    %v1567 = vpop.f32.mrf.mxu0
    %v1568 = vadd.f32 0.0, %v1567
    %v1569 = vpop.f32.mrf.mxu0
    %v1570 = vadd.f32 0.0, %v1569
    %1571 = vmatmul.bf16.gmra.mxu0 %v1550
    %v1572 = vpop.f32.mrf.mxu0
    %v1573 = vadd.f32 0.0, %v1572
    %v1574 = vpop.f32.mrf.mxu0
    %v1575 = vadd.f32 0.0, %v1574
    %1576 = vdwg.mxu0
    %v1577 = vmul.f32 %v1568, 0.35355338
    %v1578 = vmul.f32 %v1570, 0.35355338
    %v1579 = vmul.f32 %v1573, 0.35355338
    %v1580 = vmul.f32 %v1575, 0.35355338
    %v1581 = vadd.f32 %v1577, %v361
    %v1582 = vadd.f32 %v1578, %v362
    %v1583 = vadd.f32 %v1579, %v363
    %v1584 = vadd.f32 %v1580, %v364
    %v1585 = vsel %vm374, %v1581, -inf
    %1586 = vmax.xlane.f32.xlu0 %v1585
    %v1587 = vpop.xlane.xlu0 %1586
    %v1588 = vsel %vm374, %v1582, -inf
    %1589 = vmax.xlane.f32.xlu0 %v1588
    %v1590 = vpop.xlane.xlu0 %1589
    %v1591 = vsel %vm374, %v1583, -inf
    %1592 = vmax.xlane.f32.xlu0 %v1591
    %v1593 = vpop.xlane.xlu0 %1592
    %v1594 = vsel %vm374, %v1584, -inf
    %1595 = vmax.xlane.f32.xlu0 %v1594
    %v1596 = vpop.xlane.xlu0 %1595
    %v1597 = vsub.f32 %v1581, %v1587
    %v1598 = vsub.f32 %v1582, %v1590
    %v1599 = vsub.f32 %v1583, %v1593
    %v1600 = vsub.f32 %v1584, %v1596
    %v1601 = vmul.f32 %v1597, 1.442695
    %v1602 = vpow.pop %v1601
    %v1603 = vmul.f32 %v1598, 1.442695
    %v1604 = vpow.pop %v1603
    %v1605 = vmul.f32 %v1599, 1.442695
    %v1606 = vpow.pop %v1605
    %v1607 = vmul.f32 %v1600, 1.442695
    %v1608 = vpow.pop %v1607
    %v1609 = vsel %vm374, %v1602, 0.0
    %1610 = vadd.xlane.f32.xlu0 %v1609
    %v1611 = vpop.xlane.xlu0 %1610
    %v1612 = vsel %vm374, %v1604, 0.0
    %1613 = vadd.xlane.f32.xlu0 %v1612
    %v1614 = vpop.xlane.xlu0 %1613
    %v1615 = vsel %vm374, %v1606, 0.0
    %1616 = vadd.xlane.f32.xlu0 %v1615
    %v1617 = vpop.xlane.xlu0 %1616
    %v1618 = vsel %vm374, %v1608, 0.0
    %1619 = vadd.xlane.f32.xlu0 %v1618
    %v1620 = vpop.xlane.xlu0 %1619
    %v1621 = vrcp.pop %v1611
    %v1622 = vrcp.pop %v1614
    %v1623 = vrcp.pop %v1617
    %v1624 = vrcp.pop %v1620
    %v1625 = vmul.f32 %v1602, %v1621
    %v1626 = vmul.f32 %v1604, %v1622
    %v1627 = vmul.f32 %v1606, %v1623
    %v1628 = vmul.f32 %v1608, %v1624
    %v1629 = vpack.c.bf16 %v1626, %v1625
    %v1630 = vpack.c.bf16 %v1628, %v1627
    %1631 = vrot.lane.b32.xlu0 %v1538, 64
    %v1632 = vpop.permute.xlu0 %1631
    %1633 = vrot.lane.b32.xlu0 %v1539, 64
    %v1634 = vpop.permute.xlu0 %1633
    %v1638 = vsel %vm374, %v1629, 0
    %v1641 = vsel %vm374, %v1630, 0
    %1643 = vmatpush.bf16.msra.mxu0 0
    %1644 = vmatpush.bf16.msra.mxu0 0
    %1645 = vmatpush.bf16.msra.mxu0 0
    %1646 = vmatpush.bf16.msra.mxu0 0
    %1647 = vmatpush.bf16.msra.mxu0 0
    %1648 = vmatpush.bf16.msra.mxu0 0
    %1649 = vmatpush.bf16.msra.mxu0 %v1634
    %1650 = vmatpush.bf16.msra.mxu0 %v1632
    %1651 = vmatmul.bf16.gmra.mxu0 %v1638
    %v1652 = vpop.f32.mrf.mxu0
    %v1653 = vadd.f32 0.0, %v1652
    %v1654 = vpop.f32.mrf.mxu0
    %v1655 = vadd.f32 0.0, %v1654
    %1656 = vmatmul.bf16.gmra.mxu0 %v1641
    %v1657 = vpop.f32.mrf.mxu0
    %v1658 = vadd.f32 0.0, %v1657
    %v1659 = vpop.f32.mrf.mxu0
    %v1660 = vadd.f32 0.0, %v1659
    %1661 = vdwg.mxu0
    %1662 = vrot.lane.b32.xlu0 %v1538, 120
    %v1663 = vpop.permute.xlu0 %1662
    %1664 = vrot.lane.b32.xlu0 %v1539, 120
    %v1665 = vpop.permute.xlu0 %1664
    %1666 = vrot.lane.b32.xlu0 %v1538, 88
    %v1667 = vpop.permute.xlu0 %1666
    %1668 = vrot.lane.b32.xlu0 %v1539, 88
    %v1669 = vpop.permute.xlu0 %1668
    %v1671 = vsel %vm528, %v1663, 0
    %v1674 = vsel %vm528, %v1665, 0
    %v1677 = vsel %vm528, %v1667, 0
    %v1680 = vsel %vm528, %v1669, 0
    %1682 = vmatpush.bf16.xpose.msra.mxu0 0
    %1683 = vmatpush.bf16.xpose.msra.mxu0 0
    %1684 = vmatpush.bf16.xpose.msra.mxu0 0
    %1685 = vmatpush.bf16.xpose.msra.mxu0 0
    %1686 = vmatpush.bf16.xpose.msra.mxu0 0
    %1687 = vmatpush.bf16.xpose.msra.mxu0 0
    %1688 = vmatpush.bf16.xpose.msra.mxu0 %v1680
    %1689 = vmatpush.bf16.xpose.msra.mxu0 %v1677
    %1690 = vmatmul.bf16.gmra.mxu0 %v1671
    %v1691 = vpop.f32.mrf.mxu0
    %v1692 = vadd.f32 0.0, %v1691
    %v1693 = vpop.f32.mrf.mxu0
    %v1694 = vadd.f32 0.0, %v1693
    %1695 = vmatmul.bf16.gmra.mxu0 %v1674
    %v1696 = vpop.f32.mrf.mxu0
    %v1697 = vadd.f32 0.0, %v1696
    %v1698 = vpop.f32.mrf.mxu0
    %v1699 = vadd.f32 0.0, %v1698
    %1700 = vdwg.mxu0
    %v1701 = vmul.f32 %v1692, 0.35355338
    %v1702 = vmul.f32 %v1694, 0.35355338
    %v1703 = vmul.f32 %v1697, 0.35355338
    %v1704 = vmul.f32 %v1699, 0.35355338
    %v1705 = vadd.f32 %v1701, %v361
    %v1706 = vadd.f32 %v1702, %v362
    %v1707 = vadd.f32 %v1703, %v363
    %v1708 = vadd.f32 %v1704, %v364
    %v1709 = vsel %vm374, %v1705, -inf
    %1710 = vmax.xlane.f32.xlu0 %v1709
    %v1711 = vpop.xlane.xlu0 %1710
    %v1712 = vsel %vm374, %v1706, -inf
    %1713 = vmax.xlane.f32.xlu0 %v1712
    %v1714 = vpop.xlane.xlu0 %1713
    %v1715 = vsel %vm374, %v1707, -inf
    %1716 = vmax.xlane.f32.xlu0 %v1715
    %v1717 = vpop.xlane.xlu0 %1716
    %v1718 = vsel %vm374, %v1708, -inf
    %1719 = vmax.xlane.f32.xlu0 %v1718
    %v1720 = vpop.xlane.xlu0 %1719
    %v1721 = vsub.f32 %v1705, %v1711
    %v1722 = vsub.f32 %v1706, %v1714
    %v1723 = vsub.f32 %v1707, %v1717
    %v1724 = vsub.f32 %v1708, %v1720
    %v1725 = vmul.f32 %v1721, 1.442695
    %v1726 = vpow.pop %v1725
    %v1727 = vmul.f32 %v1722, 1.442695
    %v1728 = vpow.pop %v1727
    %v1729 = vmul.f32 %v1723, 1.442695
    %v1730 = vpow.pop %v1729
    %v1731 = vmul.f32 %v1724, 1.442695
    %v1732 = vpow.pop %v1731
    %v1733 = vsel %vm374, %v1726, 0.0
    %1734 = vadd.xlane.f32.xlu0 %v1733
    %v1735 = vpop.xlane.xlu0 %1734
    %v1736 = vsel %vm374, %v1728, 0.0
    %1737 = vadd.xlane.f32.xlu0 %v1736
    %v1738 = vpop.xlane.xlu0 %1737
    %v1739 = vsel %vm374, %v1730, 0.0
    %1740 = vadd.xlane.f32.xlu0 %v1739
    %v1741 = vpop.xlane.xlu0 %1740
    %v1742 = vsel %vm374, %v1732, 0.0
    %1743 = vadd.xlane.f32.xlu0 %v1742
    %v1744 = vpop.xlane.xlu0 %1743
    %v1745 = vrcp.pop %v1735
    %v1746 = vrcp.pop %v1738
    %v1747 = vrcp.pop %v1741
    %v1748 = vrcp.pop %v1744
    %v1749 = vmul.f32 %v1726, %v1745
    %v1750 = vmul.f32 %v1728, %v1746
    %v1751 = vmul.f32 %v1730, %v1747
    %v1752 = vmul.f32 %v1732, %v1748
    %v1753 = vpack.c.bf16 %v1750, %v1749
    %v1754 = vpack.c.bf16 %v1752, %v1751
    %1755 = vrot.lane.b32.xlu0 %v1538, 56
    %v1756 = vpop.permute.xlu0 %1755
    %1757 = vrot.lane.b32.xlu0 %v1539, 56
    %v1758 = vpop.permute.xlu0 %1757
    %v1762 = vsel %vm374, %v1753, 0
    %v1765 = vsel %vm374, %v1754, 0
    %1767 = vmatpush.bf16.msra.mxu0 0
    %1768 = vmatpush.bf16.msra.mxu0 0
    %1769 = vmatpush.bf16.msra.mxu0 0
    %1770 = vmatpush.bf16.msra.mxu0 0
    %1771 = vmatpush.bf16.msra.mxu0 0
    %1772 = vmatpush.bf16.msra.mxu0 0
    %1773 = vmatpush.bf16.msra.mxu0 %v1758
    %1774 = vmatpush.bf16.msra.mxu0 %v1756
    %1775 = vmatmul.bf16.gmra.mxu0 %v1762
    %v1776 = vpop.f32.mrf.mxu0
    %v1777 = vadd.f32 0.0, %v1776
    %v1778 = vpop.f32.mrf.mxu0
    %v1779 = vadd.f32 0.0, %v1778
    %1780 = vmatmul.bf16.gmra.mxu0 %v1765
    %v1781 = vpop.f32.mrf.mxu0
    %v1782 = vadd.f32 0.0, %v1781
    %v1783 = vpop.f32.mrf.mxu0
    %v1784 = vadd.f32 0.0, %v1783
    %1785 = vdwg.mxu0
    %1786 = vrot.lane.b32.xlu0 %v1538, 112
    %v1787 = vpop.permute.xlu0 %1786
    %1788 = vrot.lane.b32.xlu0 %v1539, 112
    %v1789 = vpop.permute.xlu0 %1788
    %1790 = vrot.lane.b32.xlu0 %v1538, 80
    %v1791 = vpop.permute.xlu0 %1790
    %1792 = vrot.lane.b32.xlu0 %v1539, 80
    %v1793 = vpop.permute.xlu0 %1792
    %v1795 = vsel %vm528, %v1787, 0
    %v1798 = vsel %vm528, %v1789, 0
    %v1801 = vsel %vm528, %v1791, 0
    %v1804 = vsel %vm528, %v1793, 0
    %1806 = vmatpush.bf16.xpose.msra.mxu0 0
    %1807 = vmatpush.bf16.xpose.msra.mxu0 0
    %1808 = vmatpush.bf16.xpose.msra.mxu0 0
    %1809 = vmatpush.bf16.xpose.msra.mxu0 0
    %1810 = vmatpush.bf16.xpose.msra.mxu0 0
    %1811 = vmatpush.bf16.xpose.msra.mxu0 0
    %1812 = vmatpush.bf16.xpose.msra.mxu0 %v1804
    %1813 = vmatpush.bf16.xpose.msra.mxu0 %v1801
    %1814 = vmatmul.bf16.gmra.mxu0 %v1795
    %v1815 = vpop.f32.mrf.mxu0
    %v1816 = vadd.f32 0.0, %v1815
    %v1817 = vpop.f32.mrf.mxu0
    %v1818 = vadd.f32 0.0, %v1817
    %1819 = vmatmul.bf16.gmra.mxu0 %v1798
    %v1820 = vpop.f32.mrf.mxu0
    %v1821 = vadd.f32 0.0, %v1820
    %v1822 = vpop.f32.mrf.mxu0
    %v1823 = vadd.f32 0.0, %v1822
    %1824 = vdwg.mxu0
    %v1825 = vmul.f32 %v1816, 0.35355338
    %v1826 = vmul.f32 %v1818, 0.35355338
    %v1827 = vmul.f32 %v1821, 0.35355338
    %v1828 = vmul.f32 %v1823, 0.35355338
    %v1829 = vadd.f32 %v1825, %v361
    %v1830 = vadd.f32 %v1826, %v362
    %v1831 = vadd.f32 %v1827, %v363
    %v1832 = vadd.f32 %v1828, %v364
    %v1833 = vsel %vm374, %v1829, -inf
    %1834 = vmax.xlane.f32.xlu0 %v1833
    %v1835 = vpop.xlane.xlu0 %1834
    %v1836 = vsel %vm374, %v1830, -inf
    %1837 = vmax.xlane.f32.xlu0 %v1836
    %v1838 = vpop.xlane.xlu0 %1837
    %v1839 = vsel %vm374, %v1831, -inf
    %1840 = vmax.xlane.f32.xlu0 %v1839
    %v1841 = vpop.xlane.xlu0 %1840
    %v1842 = vsel %vm374, %v1832, -inf
    %1843 = vmax.xlane.f32.xlu0 %v1842
    %v1844 = vpop.xlane.xlu0 %1843
    %v1845 = vsub.f32 %v1829, %v1835
    %v1846 = vsub.f32 %v1830, %v1838
    %v1847 = vsub.f32 %v1831, %v1841
    %v1848 = vsub.f32 %v1832, %v1844
    %v1849 = vmul.f32 %v1845, 1.442695
    %v1850 = vpow.pop %v1849
    %v1851 = vmul.f32 %v1846, 1.442695
    %v1852 = vpow.pop %v1851
    %v1853 = vmul.f32 %v1847, 1.442695
    %v1854 = vpow.pop %v1853
    %v1855 = vmul.f32 %v1848, 1.442695
    %v1856 = vpow.pop %v1855
    %v1857 = vsel %vm374, %v1850, 0.0
    %1858 = vadd.xlane.f32.xlu0 %v1857
    %v1859 = vpop.xlane.xlu0 %1858
    %v1860 = vsel %vm374, %v1852, 0.0
    %1861 = vadd.xlane.f32.xlu0 %v1860
    %v1862 = vpop.xlane.xlu0 %1861
    %v1863 = vsel %vm374, %v1854, 0.0
    %1864 = vadd.xlane.f32.xlu0 %v1863
    %v1865 = vpop.xlane.xlu0 %1864
    %v1866 = vsel %vm374, %v1856, 0.0
    %1867 = vadd.xlane.f32.xlu0 %v1866
    %v1868 = vpop.xlane.xlu0 %1867
    %v1869 = vrcp.pop %v1859
    %v1870 = vrcp.pop %v1862
    %v1871 = vrcp.pop %v1865
    %v1872 = vrcp.pop %v1868
    %v1873 = vmul.f32 %v1850, %v1869
    %v1874 = vmul.f32 %v1852, %v1870
    %v1875 = vmul.f32 %v1854, %v1871
    %v1876 = vmul.f32 %v1856, %v1872
    %v1877 = vpack.c.bf16 %v1874, %v1873
    %v1878 = vpack.c.bf16 %v1876, %v1875
    %1879 = vrot.lane.b32.xlu0 %v1538, 48
    %v1880 = vpop.permute.xlu0 %1879
    %1881 = vrot.lane.b32.xlu0 %v1539, 48
    %v1882 = vpop.permute.xlu0 %1881
    %v1886 = vsel %vm374, %v1877, 0
    %v1889 = vsel %vm374, %v1878, 0
    %1891 = vmatpush.bf16.msra.mxu0 0
    %1892 = vmatpush.bf16.msra.mxu0 0
    %1893 = vmatpush.bf16.msra.mxu0 0
    %1894 = vmatpush.bf16.msra.mxu0 0
    %1895 = vmatpush.bf16.msra.mxu0 0
    %1896 = vmatpush.bf16.msra.mxu0 0
    %1897 = vmatpush.bf16.msra.mxu0 %v1882
    %1898 = vmatpush.bf16.msra.mxu0 %v1880
    %1899 = vmatmul.bf16.gmra.mxu0 %v1886
    %v1900 = vpop.f32.mrf.mxu0
    %v1901 = vadd.f32 0.0, %v1900
    %v1902 = vpop.f32.mrf.mxu0
    %v1903 = vadd.f32 0.0, %v1902
    %1904 = vmatmul.bf16.gmra.mxu0 %v1889
    %v1905 = vpop.f32.mrf.mxu0
    %v1906 = vadd.f32 0.0, %v1905
    %v1907 = vpop.f32.mrf.mxu0
    %v1908 = vadd.f32 0.0, %v1907
    %1909 = vdwg.mxu0
    %1910 = vrot.lane.b32.xlu0 %v1538, 104
    %v1911 = vpop.permute.xlu0 %1910
    %1912 = vrot.lane.b32.xlu0 %v1539, 104
    %v1913 = vpop.permute.xlu0 %1912
    %1914 = vrot.lane.b32.xlu0 %v1538, 72
    %v1915 = vpop.permute.xlu0 %1914
    %1916 = vrot.lane.b32.xlu0 %v1539, 72
    %v1917 = vpop.permute.xlu0 %1916
    %v1919 = vsel %vm528, %v1911, 0
    %v1922 = vsel %vm528, %v1913, 0
    %v1925 = vsel %vm528, %v1915, 0
    %v1928 = vsel %vm528, %v1917, 0
    %1930 = vmatpush.bf16.xpose.msra.mxu0 0
    %1931 = vmatpush.bf16.xpose.msra.mxu0 0
    %1932 = vmatpush.bf16.xpose.msra.mxu0 0
    %1933 = vmatpush.bf16.xpose.msra.mxu0 0
    %1934 = vmatpush.bf16.xpose.msra.mxu0 0
    %1935 = vmatpush.bf16.xpose.msra.mxu0 0
    %1936 = vmatpush.bf16.xpose.msra.mxu0 %v1928
    %1937 = vmatpush.bf16.xpose.msra.mxu0 %v1925
    %1938 = vmatmul.bf16.gmra.mxu0 %v1919
    %v1939 = vpop.f32.mrf.mxu0
    %v1940 = vadd.f32 0.0, %v1939
    %v1941 = vpop.f32.mrf.mxu0
    %v1942 = vadd.f32 0.0, %v1941
    %1943 = vmatmul.bf16.gmra.mxu0 %v1922
    %v1944 = vpop.f32.mrf.mxu0
    %v1945 = vadd.f32 0.0, %v1944
    %v1946 = vpop.f32.mrf.mxu0
    %v1947 = vadd.f32 0.0, %v1946
    %1948 = vdwg.mxu0
    %v1949 = vmul.f32 %v1940, 0.35355338
    %v1950 = vmul.f32 %v1942, 0.35355338
    %v1951 = vmul.f32 %v1945, 0.35355338
    %v1952 = vmul.f32 %v1947, 0.35355338
    %v1953 = vadd.f32 %v1949, %v361
    %v1954 = vadd.f32 %v1950, %v362
    %v1955 = vadd.f32 %v1951, %v363
    %v1956 = vadd.f32 %v1952, %v364
    %v1957 = vsel %vm374, %v1953, -inf
    %1958 = vmax.xlane.f32.xlu0 %v1957
    %v1959 = vpop.xlane.xlu0 %1958
    %v1960 = vsel %vm374, %v1954, -inf
    %1961 = vmax.xlane.f32.xlu0 %v1960
    %v1962 = vpop.xlane.xlu0 %1961
    %v1963 = vsel %vm374, %v1955, -inf
    %1964 = vmax.xlane.f32.xlu0 %v1963
    %v1965 = vpop.xlane.xlu0 %1964
    %v1966 = vsel %vm374, %v1956, -inf
    %1967 = vmax.xlane.f32.xlu0 %v1966
    %v1968 = vpop.xlane.xlu0 %1967
    %v1969 = vsub.f32 %v1953, %v1959
    %v1970 = vsub.f32 %v1954, %v1962
    %v1971 = vsub.f32 %v1955, %v1965
    %v1972 = vsub.f32 %v1956, %v1968
    %v1973 = vmul.f32 %v1969, 1.442695
    %v1974 = vpow.pop %v1973
    %v1975 = vmul.f32 %v1970, 1.442695
    %v1976 = vpow.pop %v1975
    %v1977 = vmul.f32 %v1971, 1.442695
    %v1978 = vpow.pop %v1977
    %v1979 = vmul.f32 %v1972, 1.442695
    %v1980 = vpow.pop %v1979
    %v1981 = vsel %vm374, %v1974, 0.0
    %1982 = vadd.xlane.f32.xlu0 %v1981
    %v1983 = vpop.xlane.xlu0 %1982
    %v1984 = vsel %vm374, %v1976, 0.0
    %1985 = vadd.xlane.f32.xlu0 %v1984
    %v1986 = vpop.xlane.xlu0 %1985
    %v1987 = vsel %vm374, %v1978, 0.0
    %1988 = vadd.xlane.f32.xlu0 %v1987
    %v1989 = vpop.xlane.xlu0 %1988
    %v1990 = vsel %vm374, %v1980, 0.0
    %1991 = vadd.xlane.f32.xlu0 %v1990
    %v1992 = vpop.xlane.xlu0 %1991
    %v1993 = vrcp.pop %v1983
    %v1994 = vrcp.pop %v1986
    %v1995 = vrcp.pop %v1989
    %v1996 = vrcp.pop %v1992
    %v1997 = vmul.f32 %v1974, %v1993
    %v1998 = vmul.f32 %v1976, %v1994
    %v1999 = vmul.f32 %v1978, %v1995
    %v2000 = vmul.f32 %v1980, %v1996
    %v2001 = vpack.c.bf16 %v1998, %v1997
    %v2002 = vpack.c.bf16 %v2000, %v1999
    %2003 = vrot.lane.b32.xlu0 %v1538, 40
    %v2004 = vpop.permute.xlu0 %2003
    %2005 = vrot.lane.b32.xlu0 %v1539, 40
    %v2006 = vpop.permute.xlu0 %2005
    %v2010 = vsel %vm374, %v2001, 0
    %v2013 = vsel %vm374, %v2002, 0
    %2015 = vmatpush.bf16.msra.mxu0 0
    %2016 = vmatpush.bf16.msra.mxu0 0
    %2017 = vmatpush.bf16.msra.mxu0 0
    %2018 = vmatpush.bf16.msra.mxu0 0
    %2019 = vmatpush.bf16.msra.mxu0 0
    %2020 = vmatpush.bf16.msra.mxu0 0
    %2021 = vmatpush.bf16.msra.mxu0 %v2006
    %2022 = vmatpush.bf16.msra.mxu0 %v2004
    %2023 = vmatmul.bf16.gmra.mxu0 %v2010
    %v2024 = vpop.f32.mrf.mxu0
    %v2025 = vadd.f32 0.0, %v2024
    %v2026 = vpop.f32.mrf.mxu0
    %v2027 = vadd.f32 0.0, %v2026
    %2028 = vmatmul.bf16.gmra.mxu0 %v2013
    %v2029 = vpop.f32.mrf.mxu0
    %v2030 = vadd.f32 0.0, %v2029
    %v2031 = vpop.f32.mrf.mxu0
    %v2032 = vadd.f32 0.0, %v2031
    %2033 = vdwg.mxu0
    %2038 = vrot.lane.b32.xlu0 %v1777, 8
    %v2039 = vpop.permute.xlu0 %2038
    %2040 = vrot.lane.b32.xlu0 %v1779, 8
    %v2041 = vpop.permute.xlu0 %2040
    %2042 = vrot.lane.b32.xlu0 %v1782, 8
    %v2043 = vpop.permute.xlu0 %2042
    %2044 = vrot.lane.b32.xlu0 %v1784, 8
    %v2045 = vpop.permute.xlu0 %2044
    %2054 = vrot.lane.b32.xlu0 %v1901, 16
    %v2055 = vpop.permute.xlu0 %2054
    %2056 = vrot.lane.b32.xlu0 %v1903, 16
    %v2057 = vpop.permute.xlu0 %2056
    %2058 = vrot.lane.b32.xlu0 %v1906, 16
    %v2059 = vpop.permute.xlu0 %2058
    %2060 = vrot.lane.b32.xlu0 %v1908, 16
    %v2061 = vpop.permute.xlu0 %2060
    %2070 = vrot.lane.b32.xlu0 %v2025, 24
    %v2071 = vpop.permute.xlu0 %2070
    %2072 = vrot.lane.b32.xlu0 %v2027, 24
    %v2073 = vpop.permute.xlu0 %2072
    %2074 = vrot.lane.b32.xlu0 %v2030, 24
    %v2075 = vpop.permute.xlu0 %2074
    %2076 = vrot.lane.b32.xlu0 %v2032, 24
    %v2077 = vpop.permute.xlu0 %2076
    %v2082 = vsel %vm528, %v1653, %v2039
    %v2083 = vsel %vm528, %v1655, %v2041
    %v2084 = vsel %vm528, %v1658, %v2043
    %v2085 = vsel %vm528, %v1660, %v2045
    %v2086 = vsel %vm1069, %v2082, %v2055
    %v2087 = vsel %vm1069, %v2083, %v2057
    %v2088 = vsel %vm1069, %v2084, %v2059
    %v2089 = vsel %vm1069, %v2085, %v2061
    %v2090 = vsel %vm1074, %v2086, %v2071
    %v2091 = vsel %vm1074, %v2087, %v2073
    %v2092 = vsel %vm1074, %v2088, %v2075
    %v2093 = vsel %vm1074, %v2089, %v2077
    %v2094 = vpack.c.bf16 %v2091, %v2090
    %v2095 = vpack.c.bf16 %v2093, %v2092
    %2096 = vrot.lane.b32.xlu0 %v1509, 32
    %v2097 = vpop.permute.xlu0 %2096
    %2098 = vrot.lane.b32.xlu0 %v1510, 32
    %v2099 = vpop.permute.xlu0 %2098
    %v2103 = vsel %vm374, %v2094, 0
    %v2106 = vsel %vm374, %v2095, 0
    %2108 = vmatpush.bf16.msra.mxu0 0
    %2109 = vmatpush.bf16.msra.mxu0 0
    %2110 = vmatpush.bf16.msra.mxu0 0
    %2111 = vmatpush.bf16.msra.mxu0 0
    %2112 = vmatpush.bf16.msra.mxu0 0
    %2113 = vmatpush.bf16.msra.mxu0 0
    %2114 = vmatpush.bf16.msra.mxu0 %v2099
    %2115 = vmatpush.bf16.msra.mxu0 %v2097
    %2116 = vmatmul.bf16.gmra.mxu0 %v2103
    %v2117 = vpop.f32.mrf.mxu0
    %v2118 = vadd.f32 0.0, %v2117
    %v2119 = vpop.f32.mrf.mxu0
    %v2120 = vadd.f32 0.0, %v2119
    %2121 = vmatmul.bf16.gmra.mxu0 %v2106
    %v2122 = vpop.f32.mrf.mxu0
    %v2123 = vadd.f32 0.0, %v2122
    %v2124 = vpop.f32.mrf.mxu0
    %v2125 = vadd.f32 0.0, %v2124
    %2126 = vdwg.mxu0
    %v2127 = vadd.f32 %v1385, %v2118
    %v2128 = vadd.f32 %v1386, %v2120
    %v2129 = vadd.f32 %v1387, %v2123
    %v2130 = vadd.f32 %v1388, %v2125
    %v2131 = vperm.slane %v1390, 5
    %v2132 = vadd.f32 %v2127, %v2131
    %v2133 = vadd.f32 %v2128, %v2131
    %v2134 = vadd.f32 %v2129, %v2131
    %v2135 = vadd.f32 %v2130, %v2131
    %v2136 = vsel %vm374, %v2132, 0.0
    %2137 = vadd.xlane.f32.xlu0 %v2136
    %v2138 = vpop.xlane.xlu0 %2137
    %v2139 = vsel %vm374, %v2133, 0.0
    %2140 = vadd.xlane.f32.xlu0 %v2139
    %v2141 = vpop.xlane.xlu0 %2140
    %v2142 = vsel %vm374, %v2134, 0.0
    %2143 = vadd.xlane.f32.xlu0 %v2142
    %v2144 = vpop.xlane.xlu0 %2143
    %v2145 = vsel %vm374, %v2135, 0.0
    %2146 = vadd.xlane.f32.xlu0 %v2145
    %v2147 = vpop.xlane.xlu0 %2146
    %v2148 = vmul.f32 %v2138, %v393
    %v2149 = vmul.f32 %v2141, %v393
    %v2150 = vmul.f32 %v2144, %v393
    %v2151 = vmul.f32 %v2147, %v393
    %v2152 = vsub.f32 %v2132, %v2148
    %v2153 = vsub.f32 %v2133, %v2149
    %v2154 = vsub.f32 %v2134, %v2150
    %v2155 = vsub.f32 %v2135, %v2151
    %v2156 = vmul.f32 %v2152, %v2152
    %v2157 = vmul.f32 %v2153, %v2153
    %v2158 = vmul.f32 %v2154, %v2154
    %v2159 = vmul.f32 %v2155, %v2155
    %v2160 = vsel %vm374, %v2156, 0.0
    %2161 = vadd.xlane.f32.xlu0 %v2160
    %v2162 = vpop.xlane.xlu0 %2161
    %v2163 = vsel %vm374, %v2157, 0.0
    %2164 = vadd.xlane.f32.xlu0 %v2163
    %v2165 = vpop.xlane.xlu0 %2164
    %v2166 = vsel %vm374, %v2158, 0.0
    %2167 = vadd.xlane.f32.xlu0 %v2166
    %v2168 = vpop.xlane.xlu0 %2167
    %v2169 = vsel %vm374, %v2159, 0.0
    %2170 = vadd.xlane.f32.xlu0 %v2169
    %v2171 = vpop.xlane.xlu0 %2170
    %v2172 = vmul.f32 %v2162, %v393
    %v2173 = vmul.f32 %v2165, %v393
    %v2174 = vmul.f32 %v2168, %v393
    %v2175 = vmul.f32 %v2171, %v393
    %v2176 = vadd.f32 %v2172, 1e-05
    %v2177 = vadd.f32 %v2173, 1e-05
    %v2178 = vadd.f32 %v2174, 1e-05
    %v2179 = vadd.f32 %v2175, 1e-05
    %v2180 = vrsqrt.pop %v2176
    %v2181 = vmul.f32 %v2180, %v2176
    %v2182 = vmul.f32 %v2181, %v2180
    %v2183 = vmul.f32 0.5, %v2182
    %v2184 = vsub.f32 1.5, %v2183
    %v2185 = vmul.f32 %v2180, %v2184
    %vm2186 = vweird.f32 %v2176
    %vm2187 = vweird.f32 %v2180
    %vm2188 = vmor %vm2186, %vm2187
    %v2189 = vsel %vm2188, %v2180, %v2185
    %v2190 = vrsqrt.pop %v2177
    %v2191 = vmul.f32 %v2190, %v2177
    %v2192 = vmul.f32 %v2191, %v2190
    %v2193 = vmul.f32 0.5, %v2192
    %v2194 = vsub.f32 1.5, %v2193
    %v2195 = vmul.f32 %v2190, %v2194
    %vm2196 = vweird.f32 %v2177
    %vm2197 = vweird.f32 %v2190
    %vm2198 = vmor %vm2196, %vm2197
    %v2199 = vsel %vm2198, %v2190, %v2195
    %v2200 = vrsqrt.pop %v2178
    %v2201 = vmul.f32 %v2200, %v2178
    %v2202 = vmul.f32 %v2201, %v2200
    %v2203 = vmul.f32 0.5, %v2202
    %v2204 = vsub.f32 1.5, %v2203
    %v2205 = vmul.f32 %v2200, %v2204
    %vm2206 = vweird.f32 %v2178
    %vm2207 = vweird.f32 %v2200
    %vm2208 = vmor %vm2206, %vm2207
    %v2209 = vsel %vm2208, %v2200, %v2205
    %v2210 = vrsqrt.pop %v2179
    %v2211 = vmul.f32 %v2210, %v2179
    %v2212 = vmul.f32 %v2211, %v2210
    %v2213 = vmul.f32 0.5, %v2212
    %v2214 = vsub.f32 1.5, %v2213
    %v2215 = vmul.f32 %v2210, %v2214
    %vm2216 = vweird.f32 %v2179
    %vm2217 = vweird.f32 %v2210
    %vm2218 = vmor %vm2216, %vm2217
    %v2219 = vsel %vm2218, %v2210, %v2215
    %v2220 = vmul.f32 %v2152, %v2189
    %v2221 = vmul.f32 %v2153, %v2199
    %v2222 = vmul.f32 %v2154, %v2209
    %v2223 = vmul.f32 %v2155, %v2219
    %v2224 = vperm.slane %v1390, 2
    %v2225 = vmul.f32 %v2220, %v2224
    %v2226 = vmul.f32 %v2221, %v2224
    %v2227 = vmul.f32 %v2222, %v2224
    %v2228 = vmul.f32 %v2223, %v2224
    %v2229 = vperm.slane %v1390, 3
    %v2230 = vadd.f32 %v2225, %v2229
    %v2231 = vadd.f32 %v2226, %v2229
    %v2232 = vadd.f32 %v2227, %v2229
    %v2233 = vadd.f32 %v2228, %v2229
    %v2234 = vpack.c.bf16 %v2231, %v2230
    %v2235 = vpack.c.bf16 %v2233, %v2232
    %v2236 = vperm.slane %v1390, 6
    %v2241 = vunpack.c.l.b16 %v1396
    %v2242 = vunpack.c.l.b16 %v1397
    %v2243 = vunpack.c.l.b16 %v1398
    %v2244 = vunpack.c.l.b16 %v1399
    %v2245 = vpack.c.b16 %v2242, %v2241
    %v2246 = vpack.c.b16 %v2244, %v2243
    %v2250 = vsel %vm374, %v2234, 0
    %v2253 = vsel %vm374, %v2235, 0
    %2255 = vmatpush.bf16.msra.mxu0 0
    %2256 = vmatpush.bf16.msra.mxu0 0
    %2257 = vmatpush.bf16.msra.mxu0 0
    %2258 = vmatpush.bf16.msra.mxu0 0
    %2259 = vmatpush.bf16.msra.mxu0 0
    %2260 = vmatpush.bf16.msra.mxu0 0
    %2261 = vmatpush.bf16.msra.mxu0 %v2246
    %2262 = vmatpush.bf16.msra.mxu0 %v2245
    %2263 = vmatmul.bf16.gmra.mxu0 %v2250
    %v2264 = vpop.f32.mrf.mxu0
    %v2265 = vadd.f32 %v2236, %v2264
    %v2266 = vpop.f32.mrf.mxu0
    %v2267 = vadd.f32 %v2236, %v2266
    %2268 = vmatmul.bf16.gmra.mxu0 %v2253
    %v2269 = vpop.f32.mrf.mxu0
    %v2270 = vadd.f32 %v2236, %v2269
    %v2271 = vpop.f32.mrf.mxu0
    %v2272 = vadd.f32 %v2236, %v2271
    %2273 = vdwg.mxu0
    %v2274 = vmul.f32 %v2265, %v2265
    %v2275 = vmul.f32 %v2267, %v2267
    %v2276 = vmul.f32 %v2270, %v2270
    %v2277 = vmul.f32 %v2272, %v2272
    %v2278 = vmul.f32 %v2265, %v2274
    %v2279 = vmul.f32 %v2267, %v2275
    %v2280 = vmul.f32 %v2270, %v2276
    %v2281 = vmul.f32 %v2272, %v2277
    %v2282 = vmul.f32 %v2278, 0.044715
    %v2283 = vmul.f32 %v2279, 0.044715
    %v2284 = vmul.f32 %v2280, 0.044715
    %v2285 = vmul.f32 %v2281, 0.044715
    %v2286 = vadd.f32 %v2265, %v2282
    %v2287 = vadd.f32 %v2267, %v2283
    %v2288 = vadd.f32 %v2270, %v2284
    %v2289 = vadd.f32 %v2272, %v2285
    %v2290 = vmul.f32 %v2286, 0.7978846
    %v2291 = vmul.f32 %v2287, 0.7978846
    %v2292 = vmul.f32 %v2288, 0.7978846
    %v2293 = vmul.f32 %v2289, 0.7978846
    %v2294 = vtanh.pop %v2290
    %v2295 = vtanh.pop %v2291
    %v2296 = vtanh.pop %v2292
    %v2297 = vtanh.pop %v2293
    %v2298 = vadd.f32 %v2294, 1.0
    %v2299 = vadd.f32 %v2295, 1.0
    %v2300 = vadd.f32 %v2296, 1.0
    %v2301 = vadd.f32 %v2297, 1.0
    %v2302 = vmul.f32 %v2298, 0.5
    %v2303 = vmul.f32 %v2299, 0.5
    %v2304 = vmul.f32 %v2300, 0.5
    %v2305 = vmul.f32 %v2301, 0.5
    %v2306 = vmul.f32 %v2265, %v2302
    %v2307 = vmul.f32 %v2267, %v2303
    %v2308 = vmul.f32 %v2270, %v2304
    %v2309 = vmul.f32 %v2272, %v2305
    %v2310 = vpack.c.bf16 %v2307, %v2306
    %v2311 = vpack.c.bf16 %v2309, %v2308
    %s2312 = scalar_lea.vmem %s5, 64
    %v2313 = vld [vmem:[%s2312] sm:$0xf]
    %v2314 = vld [vmem:[%s2312 + $0x4] sm:$0xf]
    %v2315 = vld [vmem:[%s2312 + $0x8] sm:$0xf]
    %v2316 = vld [vmem:[%s2312 + $0xc] sm:$0xf]
    %v2317 = vld [vmem:[%s2312 + $0x10] sm:$0xf]
    %v2318 = vld [vmem:[%s2312 + $0x14] sm:$0xf]
    %v2319 = vld [vmem:[%s2312 + $0x18] sm:$0xf]
    %v2320 = vld [vmem:[%s2312 + $0x1c] sm:$0xf]
    %v2321 = vld [vmem:[%s2312 + $0x20] sm:$0xf]
    %v2322 = vld [vmem:[%s2312 + $0x24] sm:$0xf]
    %v2323 = vld [vmem:[%s2312 + $0x28] sm:$0xf]
    %v2324 = vld [vmem:[%s2312 + $0x2c] sm:$0xf]
    %v2325 = vld [vmem:[%s2312 + $0x30] sm:$0xf]
    %v2326 = vld [vmem:[%s2312 + $0x34] sm:$0xf]
    %v2327 = vld [vmem:[%s2312 + $0x38] sm:$0xf]
    %v2328 = vld [vmem:[%s2312 + $0x3c] sm:$0xf]
    %v2345 = vunpack.c.l.b16 %v2313
    %v2346 = vunpack.c.l.b16 %v2314
    %v2347 = vunpack.c.l.b16 %v2315
    %v2348 = vunpack.c.l.b16 %v2316
    %v2349 = vunpack.c.l.b16 %v2317
    %v2350 = vunpack.c.l.b16 %v2318
    %v2351 = vunpack.c.l.b16 %v2319
    %v2352 = vunpack.c.l.b16 %v2320
    %v2353 = vunpack.c.l.b16 %v2321
    %v2354 = vunpack.c.l.b16 %v2322
    %v2355 = vunpack.c.l.b16 %v2323
    %v2356 = vunpack.c.l.b16 %v2324
    %v2357 = vunpack.c.l.b16 %v2325
    %v2358 = vunpack.c.l.b16 %v2326
    %v2359 = vunpack.c.l.b16 %v2327
    %v2360 = vunpack.c.l.b16 %v2328
    %v2361 = vpack.c.b16 %v2346, %v2345
    %v2362 = vpack.c.b16 %v2348, %v2347
    %v2363 = vpack.c.b16 %v2350, %v2349
    %v2364 = vpack.c.b16 %v2352, %v2351
    %v2365 = vpack.c.b16 %v2354, %v2353
    %v2366 = vpack.c.b16 %v2356, %v2355
    %v2367 = vpack.c.b16 %v2358, %v2357
    %v2368 = vpack.c.b16 %v2360, %v2359
    %2377 = vmatpush.bf16.msra.mxu0 %v2368
    %2378 = vmatpush.bf16.msra.mxu0 %v2367
    %2379 = vmatpush.bf16.msra.mxu0 %v2366
    %2380 = vmatpush.bf16.msra.mxu0 %v2365
    %2381 = vmatpush.bf16.msra.mxu0 %v2364
    %2382 = vmatpush.bf16.msra.mxu0 %v2363
    %2383 = vmatpush.bf16.msra.mxu0 %v2362
    %2384 = vmatpush.bf16.msra.mxu0 %v2361
    %2385 = vmatmul.bf16.gmra.mxu0 %v2310
    %v2386 = vpop.f32.mrf.mxu0
    %v2387 = vadd.f32 0.0, %v2386
    %v2388 = vpop.f32.mrf.mxu0
    %v2389 = vadd.f32 0.0, %v2388
    %2390 = vmatmul.bf16.gmra.mxu0 %v2311
    %v2391 = vpop.f32.mrf.mxu0
    %v2392 = vadd.f32 0.0, %v2391
    %v2393 = vpop.f32.mrf.mxu0
    %v2394 = vadd.f32 0.0, %v2393
    %2395 = vdwg.mxu0
    %v2396 = vadd.f32 %v2132, %v2387
    %v2397 = vadd.f32 %v2133, %v2389
    %v2398 = vadd.f32 %v2134, %v2392
    %v2399 = vadd.f32 %v2135, %v2394
    %v2400 = vperm.slane %v1390, 7
    %v2401 = vadd.f32 %v2396, %v2400
    %v2402 = vadd.f32 %v2397, %v2400
    %v2403 = vadd.f32 %v2398, %v2400
    %v2404 = vadd.f32 %v2399, %v2400
    %s2405 = scalar_lea.vmem %s4, 16
    %v2406 = vld [vmem:[%s2405] sm:$0xff]
    %v2407 = vsel %vm374, %v2401, 0.0
    %2408 = vadd.xlane.f32.xlu0 %v2407
    %v2409 = vpop.xlane.xlu0 %2408
    %v2410 = vsel %vm374, %v2402, 0.0
    %2411 = vadd.xlane.f32.xlu0 %v2410
    %v2412 = vpop.xlane.xlu0 %2411
    %v2413 = vsel %vm374, %v2403, 0.0
    %2414 = vadd.xlane.f32.xlu0 %v2413
    %v2415 = vpop.xlane.xlu0 %2414
    %v2416 = vsel %vm374, %v2404, 0.0
    %2417 = vadd.xlane.f32.xlu0 %v2416
    %v2418 = vpop.xlane.xlu0 %2417
    %v2419 = vmul.f32 %v2409, %v393
    %v2420 = vmul.f32 %v2412, %v393
    %v2421 = vmul.f32 %v2415, %v393
    %v2422 = vmul.f32 %v2418, %v393
    %v2423 = vsub.f32 %v2401, %v2419
    %v2424 = vsub.f32 %v2402, %v2420
    %v2425 = vsub.f32 %v2403, %v2421
    %v2426 = vsub.f32 %v2404, %v2422
    %v2427 = vmul.f32 %v2423, %v2423
    %v2428 = vmul.f32 %v2424, %v2424
    %v2429 = vmul.f32 %v2425, %v2425
    %v2430 = vmul.f32 %v2426, %v2426
    %v2431 = vsel %vm374, %v2427, 0.0
    %2432 = vadd.xlane.f32.xlu0 %v2431
    %v2433 = vpop.xlane.xlu0 %2432
    %v2434 = vsel %vm374, %v2428, 0.0
    %2435 = vadd.xlane.f32.xlu0 %v2434
    %v2436 = vpop.xlane.xlu0 %2435
    %v2437 = vsel %vm374, %v2429, 0.0
    %2438 = vadd.xlane.f32.xlu0 %v2437
    %v2439 = vpop.xlane.xlu0 %2438
    %v2440 = vsel %vm374, %v2430, 0.0
    %2441 = vadd.xlane.f32.xlu0 %v2440
    %v2442 = vpop.xlane.xlu0 %2441
    %v2443 = vmul.f32 %v2433, %v393
    %v2444 = vmul.f32 %v2436, %v393
    %v2445 = vmul.f32 %v2439, %v393
    %v2446 = vmul.f32 %v2442, %v393
    %v2447 = vadd.f32 %v2443, 1e-05
    %v2448 = vadd.f32 %v2444, 1e-05
    %v2449 = vadd.f32 %v2445, 1e-05
    %v2450 = vadd.f32 %v2446, 1e-05
    %v2451 = vrsqrt.pop %v2447
    %v2452 = vmul.f32 %v2451, %v2447
    %v2453 = vmul.f32 %v2452, %v2451
    %v2454 = vmul.f32 0.5, %v2453
    %v2455 = vsub.f32 1.5, %v2454
    %v2456 = vmul.f32 %v2451, %v2455
    %vm2457 = vweird.f32 %v2447
    %vm2458 = vweird.f32 %v2451
    %vm2459 = vmor %vm2457, %vm2458
    %v2460 = vsel %vm2459, %v2451, %v2456
    %v2461 = vrsqrt.pop %v2448
    %v2462 = vmul.f32 %v2461, %v2448
    %v2463 = vmul.f32 %v2462, %v2461
    %v2464 = vmul.f32 0.5, %v2463
    %v2465 = vsub.f32 1.5, %v2464
    %v2466 = vmul.f32 %v2461, %v2465
    %vm2467 = vweird.f32 %v2448
    %vm2468 = vweird.f32 %v2461
    %vm2469 = vmor %vm2467, %vm2468
    %v2470 = vsel %vm2469, %v2461, %v2466
    %v2471 = vrsqrt.pop %v2449
    %v2472 = vmul.f32 %v2471, %v2449
    %v2473 = vmul.f32 %v2472, %v2471
    %v2474 = vmul.f32 0.5, %v2473
    %v2475 = vsub.f32 1.5, %v2474
    %v2476 = vmul.f32 %v2471, %v2475
    %vm2477 = vweird.f32 %v2449
    %vm2478 = vweird.f32 %v2471
    %vm2479 = vmor %vm2477, %vm2478
    %v2480 = vsel %vm2479, %v2471, %v2476
    %v2481 = vrsqrt.pop %v2450
    %v2482 = vmul.f32 %v2481, %v2450
    %v2483 = vmul.f32 %v2482, %v2481
    %v2484 = vmul.f32 0.5, %v2483
    %v2485 = vsub.f32 1.5, %v2484
    %v2486 = vmul.f32 %v2481, %v2485
    %vm2487 = vweird.f32 %v2450
    %vm2488 = vweird.f32 %v2481
    %vm2489 = vmor %vm2487, %vm2488
    %v2490 = vsel %vm2489, %v2481, %v2486
    %v2491 = vmul.f32 %v2423, %v2460
    %v2492 = vmul.f32 %v2424, %v2470
    %v2493 = vmul.f32 %v2425, %v2480
    %v2494 = vmul.f32 %v2426, %v2490
    %v2495 = vperm.slane %v2406, 0
    %v2496 = vmul.f32 %v2491, %v2495
    %v2497 = vmul.f32 %v2492, %v2495
    %v2498 = vmul.f32 %v2493, %v2495
    %v2499 = vmul.f32 %v2494, %v2495
    %v2500 = vperm.slane %v2406, 1
    %v2501 = vadd.f32 %v2496, %v2500
    %v2502 = vadd.f32 %v2497, %v2500
    %v2503 = vadd.f32 %v2498, %v2500
    %v2504 = vadd.f32 %v2499, %v2500
    %s2505 = scalar_lea.vmem %s3, 64
    %v2506 = vld [vmem:[%s2505] sm:$0xf]
    %v2507 = vld [vmem:[%s2505 + $0x8] sm:$0xf]
    %v2508 = vld [vmem:[%s2505 + $0x10] sm:$0xf]
    %v2509 = vld [vmem:[%s2505 + $0x18] sm:$0xf]
    %v2510 = vpack.c.bf16 %v2502, %v2501
    %v2511 = vpack.c.bf16 %v2504, %v2503
    %v2512 = vperm.slane %v2406, 2
    %v2517 = vunpack.c.l.b16 %v2506
    %v2518 = vunpack.c.l.b16 %v2507
    %v2519 = vunpack.c.l.b16 %v2508
    %v2520 = vunpack.c.l.b16 %v2509
    %v2521 = vpack.c.b16 %v2518, %v2517
    %v2522 = vpack.c.b16 %v2520, %v2519
    %v2526 = vsel %vm374, %v2510, 0
    %v2529 = vsel %vm374, %v2511, 0
    %2531 = vmatpush.bf16.msra.mxu0 0
    %2532 = vmatpush.bf16.msra.mxu0 0
    %2533 = vmatpush.bf16.msra.mxu0 0
    %2534 = vmatpush.bf16.msra.mxu0 0
    %2535 = vmatpush.bf16.msra.mxu0 0
    %2536 = vmatpush.bf16.msra.mxu0 0
    %2537 = vmatpush.bf16.msra.mxu0 %v2522
    %2538 = vmatpush.bf16.msra.mxu0 %v2521
    %2539 = vmatmul.bf16.gmra.mxu0 %v2526
    %v2540 = vpop.f32.mrf.mxu0
    %v2541 = vadd.f32 %v2512, %v2540
    %v2542 = vpop.f32.mrf.mxu0
    %v2543 = vadd.f32 %v2512, %v2542
    %2544 = vmatmul.bf16.gmra.mxu0 %v2529
    %v2545 = vpop.f32.mrf.mxu0
    %v2546 = vadd.f32 %v2512, %v2545
    %v2547 = vpop.f32.mrf.mxu0
    %v2548 = vadd.f32 %v2512, %v2547
    %2549 = vdwg.mxu0
    %2550 = vst [vmem:[#allocation2] sm:$0xff] %v2541
    %2551 = vst [vmem:[#allocation2 + $0x8] sm:$0xff] %v2543
    %2552 = vst [vmem:[#allocation2 + $0x10] sm:$0xff] %v2546
    %2553 = vst [vmem:[#allocation2 + $0x18] sm:$0xff] %v2548
    // Predicated region
    $region26: #{maskgit_forward.3} parent=1 // pred_check
      _
    $region27: #{maskgit_forward.3} parent=1 // pred_check_branch
      %2555 = sbr.rel (0) target = $region29
    $region28: #{maskgit_forward.3} parent=1 // pred_region
      %2557 = vsyncadd [#allocation3], 0
      %s2558 = sshll.u32 [#allocation2], 4
      %s2559 = int_to_ptr.vmem [resolvable:$true] %s2558
      %s2560 = sshll.u32 %s6, 4
      %s2561 = int_to_ptr.hbm [resolvable:$true] %s2560
      %2566 = dma.vmem_to_hbm [thread:$0]  %s2559, 512, %s2561, [#allocation3], 128, 128, 8
    $region29: #{maskgit_forward.3} parent=1 // pred_fallthru
      _
    // Predicated region
    $region30: #{maskgit_forward.3} parent=1 // pred_check
      _
    $region31: #{maskgit_forward.3} parent=1 // pred_check_branch
      %2568 = sbr.rel (0) target = $region33
    $region32: #{maskgit_forward.3} parent=1 // pred_region
      _
    $region33: #{maskgit_forward.3} parent=1 // pred_fallthru
      _
    // Predicated region
    $region34: #{maskgit_forward.3} parent=1 // pred_check
      _
    $region35: #{maskgit_forward.3} parent=1 // pred_check_branch
      %2570 = sbr.rel (0) target = $region37
    $region36: #{maskgit_forward.3} parent=1 // pred_region
      %2572 = dma.done [#allocation3], 512
    $region37: #{maskgit_forward.3} parent=1 // pred_fallthru
      _
    // Predicated region
    $region38: #{maskgit_forward.3} parent=1 // pred_check
      _
    $region39: #{maskgit_forward.3} parent=1 // pred_check_branch
      %2574 = sbr.rel (0) target = $region41
    $region40: #{maskgit_forward.3} parent=1 // pred_region
      _
    $region41: #{maskgit_forward.3} parent=1 // pred_fallthru
      _
    %2575 = vsyncpa [#allocation3], 1

</llo_original>
